<compile_context>
chip_gen: v6e
topology: v6e:2x2x1
jax: 0.10.0
libtpu: 0.0.40
codegen_flags: <defaults>
</compile_context>

<pallas_src>
import math
from functools import partial

import jax
import jax.numpy as jnp
from jax.experimental import pallas as pl
from jax.experimental.pallas import tpu as pltpu


def _pick_vmem_limit():
    """Generation-aware scoped-VMEM limit (v7x: 64 MiB physical, v5e/v6e: 128 MiB)."""
    cap = 128 * 1024 * 1024
    try:
        cap = pltpu.get_tpu_info().vmem_capacity_bytes
    except Exception:
        pass
    return max(32 * 1024 * 1024, min(cap - 16 * 1024 * 1024, 100 * 1024 * 1024))


_VMEM_LIMIT = _pick_vmem_limit()
_W_RESIDENT_BYTES = 9 * 1024 * 1024   # weight slabs below this stay VMEM-resident


def _tile(dim, pref, base):
    """Largest block size <= pref that divides dim and is a multiple of base
    (falls back to the full dim, which BlockSpec always allows)."""
    if dim <= pref:
        return dim
    t = (pref // base) * base
    while t >= base:
        if dim % t == 0:
            return t
        t -= base
    return dim


def _lane_base(n):
    # Prefer 256-multiple tiles (fills the 2x256^2 MXU on v6e/v7x), else 128.
    return 256 if n % 256 == 0 else 128


def _gelu(x):
    # tanh-approximation GELU (tanh runs on the EUP slot, ~free under the MXU).
    # TODO(synk): torch nn.GELU default is exact erf; use erf if/when it lowers.
    c = math.sqrt(2.0 / math.pi)
    return 0.5 * x * (1.0 + jnp.tanh(c * (x + 0.044715 * x * x * x)))


# --------------------------- Pallas kernels ---------------------------------

def _ln_matmul_kernel(x_ref, g_ref, b_ref, w_ref, bias_ref, o_ref, xn_ref,
                      *, eps, act):
    """Fused LayerNorm -> matmul -> bias (-> GELU).

    The LN prologue runs once per row tile (j == 0) and its bf16 result is
    cached in VMEM scratch, so extra N tiles only pay MXU time.
    """
    @pl.when(pl.program_id(1) == 0)
    def _():
        x = x_ref[...].astype(jnp.float32)
        mu = jnp.mean(x, axis=-1, keepdims=True)
        var = jnp.mean(jnp.square(x - mu), axis=-1, keepdims=True)
        xn = (x - mu) * jax.lax.rsqrt(var + eps)
        xn = xn * g_ref[...] + b_ref[...]
        xn_ref[...] = xn.astype(xn_ref.dtype)

    y = jnp.dot(xn_ref[...], w_ref[...], preferred_element_type=jnp.float32)
    y = y + bias_ref[...].astype(jnp.float32)
    if act == "gelu":
        y = _gelu(y)
    o_ref[...] = y.astype(o_ref.dtype)


def ln_linear(x, g, b, w, bias, *, act=None, out_dtype=jnp.float32, eps=1e-6,
              tm_pref=1024, tn_pref=512):
    """out = act(LN(x) @ w + bias); x:(M,K) f32/bf16, w bf16, out (M,N)."""
    M, K = x.shape
    N = w.shape[1]
    tm = _tile(M, tm_pref, 8)
    # Weight-resident when it fits: grid-invariant weight block => one DMA total.
    if K * N * w.dtype.itemsize <= _W_RESIDENT_BYTES:
        tn = N
    else:
        tn = _tile(N, tn_pref, _lane_base(N))
    ob = jnp.dtype(out_dtype).itemsize
    return pl.pallas_call(
        partial(_ln_matmul_kernel, eps=eps, act=act),
        out_shape=jax.ShapeDtypeStruct((M, N), out_dtype),
        grid_spec=pltpu.PrefetchScalarGridSpec(
            num_scalar_prefetch=0,
            grid=(M // tm, N // tn),
            in_specs=[
                pl.BlockSpec((tm, K), lambda i, j: (i, 0)),
                pl.BlockSpec((1, K), lambda i, j: (0, 0)),
                pl.BlockSpec((1, K), lambda i, j: (0, 0)),
                pl.BlockSpec((K, tn), lambda i, j: (0, j)),
                pl.BlockSpec((1, tn), lambda i, j: (0, j)),
            ],
            out_specs=pl.BlockSpec((tm, tn), lambda i, j: (i, j)),
            scratch_shapes=[pltpu.VMEM((tm, K), jnp.bfloat16)],
        ),
        compiler_params=pltpu.CompilerParams(
            dimension_semantics=("parallel", "arbitrary"),
            vmem_limit_bytes=_VMEM_LIMIT),
        cost_estimate=pl.CostEstimate(
            flops=2 * M * N * K + 10 * M * K,
            transcendentals=(M * N if act == "gelu" else 0),
            bytes_accessed=M * K * x.dtype.itemsize + K * N * 2 + M * N * ob),
    )(x, g.reshape(1, K), b.reshape(1, K), w, bias.reshape(1, N))


def _matmul_kernel(*refs, act, has_res):
    """K-tiled matmul with f32 VMEM accumulator; bias (+act) (+residual) epilogue."""
    if has_res:
        x_ref, w_ref, bias_ref, res_ref, o_ref, acc_ref = refs
    else:
        x_ref, w_ref, bias_ref, o_ref, acc_ref = refs
        res_ref = None
    k = pl.program_id(2)

    @pl.when(k == 0)
    def _():
        acc_ref[...] = jnp.zeros_like(acc_ref)

    acc_ref[...] += jnp.dot(x_ref[...], w_ref[...],
                            preferred_element_type=jnp.float32)

    @pl.when(k == pl.num_programs(2) - 1)
    def _():
        y = acc_ref[...] + bias_ref[...].astype(jnp.float32)
        if act == "gelu":
            y = _gelu(y)
        if has_res:
            # TODO(synk): on v7x, fetch the residual block with a late manual
            # async copy instead of double-buffering it for the whole K loop.
            y = y + res_ref[...].astype(jnp.float32)
        o_ref[...] = y.astype(o_ref.dtype)


def linear(x, w, bias, *, res=None, act=None, out_dtype=jnp.float32,
           tm_pref=1024, tn_pref=512, tk_pref=512):
    """out = act(x @ w + bias) (+ res); x bf16 (M,K), w bf16 (K,N)."""
    M, K = x.shape
    N = w.shape[1]
    tm = _tile(M, tm_pref, 8)
    # Weight-resident when the full (K, N) slab fits: DMA'd once per call.
    if K * N * w.dtype.itemsize <= _W_RESIDENT_BYTES:
        tn, tk = N, K
    else:
        tn = _tile(N, tn_pref, _lane_base(N))
        tk = _tile(K, tk_pref, _lane_base(K))
    has_res = res is not None
    ob = jnp.dtype(out_dtype).itemsize

    in_specs = [
        pl.BlockSpec((tm, tk), lambda i, j, k: (i, k)),
        pl.BlockSpec((tk, tn), lambda i, j, k: (k, j)),
        pl.BlockSpec((1, tn), lambda i, j, k: (0, j)),
    ]
    args = [x, w, bias.reshape(1, N)]
    bytes_accessed = (M * K * x.dtype.itemsize + K * N * w.dtype.itemsize
                      + M * N * ob)
    if has_res:
        in_specs.append(pl.BlockSpec((tm, tn), lambda i, j, k: (i, j)))
        args.append(res)
        bytes_accessed += M * N * res.dtype.itemsize

    return pl.pallas_call(
        partial(_matmul_kernel, act=act, has_res=has_res),
        out_shape=jax.ShapeDtypeStruct((M, N), out_dtype),
        grid_spec=pltpu.PrefetchScalarGridSpec(
            num_scalar_prefetch=0,
            grid=(M // tm, N // tn, K // tk),
            in_specs=in_specs,
            out_specs=pl.BlockSpec((tm, tn), lambda i, j, k: (i, j)),
            scratch_shapes=[pltpu.VMEM((tm, tn), jnp.float32)],
        ),
        compiler_params=pltpu.CompilerParams(
            dimension_semantics=("parallel", "parallel", "arbitrary"),
            vmem_limit_bytes=_VMEM_LIMIT),
        cost_estimate=pl.CostEstimate(
            flops=2 * M * N * K, transcendentals=0,
            bytes_accessed=bytes_accessed),
    )(*args)


def _attention_kernel(qkv_ref, o_ref, *, heads, head_dim, valid_len):
    """Multi-head attention for a TB-sized batch block; pad keys masked out.

    qkv_ref is one (TB, S, 3*D) block; Q/K/V are static lane-aligned slices
    (D is a multiple of 128).  Per-head outputs are written straight into
    o_ref head slices (no concatenate, no big live value set).
    The 1/sqrt(Dh) scale is already folded into the Q projection weights.
    """
    D = heads * head_dim
    S = qkv_ref.shape[1]
    q = qkv_ref[:, :, 0:D]
    k = qkv_ref[:, :, D:2 * D]
    v = qkv_ref[:, :, 2 * D:3 * D]
    kmask = jax.lax.broadcasted_iota(jnp.int32, (1, 1, S), 2) < valid_len
    # TODO(synk): for long sequences use flash-style KV tiling; ViT S is small.
    for h in range(heads):
        lo = h * head_dim
        qh = q[:, :, lo:lo + head_dim]
        kh = k[:, :, lo:lo + head_dim]
        vh = v[:, :, lo:lo + head_dim]
        # batched QK^T without an explicit transpose (contract last dims).
        s = jax.lax.dot_general(qh, kh, (((2,), (2,)), ((0,), (0,))),
                                preferred_element_type=jnp.float32)   # (TB,S,S)
        s = jnp.where(kmask, s, -1e30)
        m = jnp.max(s, axis=-1, keepdims=True)
        p = jnp.exp(s - m)
        l = jnp.sum(p, axis=-1, keepdims=True)
        o = jax.lax.dot_general(p.astype(vh.dtype), vh,
                                (((2,), (1,)), ((0,), (0,))),
                                preferred_element_type=jnp.float32)   # (TB,S,Dh)
        o_ref[:, :, lo:lo + head_dim] = (
            o * pl.reciprocal(l, approx=True)).astype(o_ref.dtype)


def attention(qkv, *, heads, head_dim, valid_len):
    """qkv: (B, S, 3*D) bf16 with columns [Q | K | V]; returns (B, S, D) bf16."""
    B, S, _ = qkv.shape
    D = heads * head_dim
    TB = _tile(B, 8, 1)          # several batch elements per grid step
    return pl.pallas_call(
        partial(_attention_kernel, heads=heads, head_dim=head_dim,
                valid_len=valid_len),
        out_shape=jax.ShapeDtypeStruct((B, S, D), jnp.bfloat16),
        grid_spec=pltpu.PrefetchScalarGridSpec(
            num_scalar_prefetch=0,
            grid=(B // TB,),
            in_specs=[pl.BlockSpec((TB, S, 3 * D), lambda b: (b, 0, 0))],
            out_specs=pl.BlockSpec((TB, S, D), lambda b: (b, 0, 0)),
        ),
        compiler_params=pltpu.CompilerParams(
            dimension_semantics=("parallel",),
            vmem_limit_bytes=_VMEM_LIMIT),
        cost_estimate=pl.CostEstimate(
            flops=4 * B * heads * S * S * head_dim,
            transcendentals=B * heads * S * S,
            bytes_accessed=3 * B * S * D * 2 + B * S * D * 2),
    )(qkv)


# ------------------------ parameters & forward ------------------------------

def init_params(key, cfg):
    D, P, C = cfg["hidden"], cfg["patch"], cfg["in_ch"]
    n_tok = cfg["n_patches"] + 1
    L = cfg["num_layers"]
    Dh = D // cfg["heads"]
    q_scale = 1.0 / math.sqrt(Dh)
    ks = iter(jax.random.split(key, 8 + 16 * L))

    def wf(shape, scale=0.02):
        return scale * jax.random.normal(next(ks), shape, jnp.float32)

    def w(shape, scale=0.02, dtype=jnp.bfloat16):
        return wf(shape, scale).astype(dtype)

    # prompts: nn.Parameter(zeros(1, L, prompt_len, D)) with uniform(-bound, bound)
    bound = (6.0 / (D + cfg["prompt_len"])) ** 0.5
    prompts = jax.random.uniform(next(ks), (1, L, cfg["prompt_len"], D),
                                 jnp.float32, minval=-bound, maxval=bound)

    params = {
        # conv_proj weight (D,C,P,P) pre-flattened to (C*P*P, D) in bf16 (MXU operand)
        "conv_w": w((C * P * P, D)),
        "conv_b": jnp.zeros((D,), jnp.float32),
        "cls_token": w((1, 1, D), dtype=jnp.float32),
        "pos_emb": w((1, n_tok, D), dtype=jnp.float32),
        "prompts": prompts,
        "ln_f_g": jnp.ones((D,), jnp.float32),
        "ln_f_b": jnp.zeros((D,), jnp.float32),
        "head_w": w((D, cfg["n_classes"])),           # self.linear(768 -> n_classes)
        "head_b": jnp.zeros((cfg["n_classes"],), jnp.float32),
        "layers": [],
    }
    for _ in range(L):
        # qkv columns laid out as [Q | K | V], each head contiguous in Dh.
        # Fold the 1/sqrt(Dh) attention scale into the Q columns (and Q bias)
        # so the attention kernel does no per-head scaling.
        w_qkv = wf((D, 3 * D))
        w_qkv = w_qkv.at[:, :D].set(w_qkv[:, :D] * q_scale)
        b_qkv = jnp.zeros((3 * D,), jnp.float32)  # scale on zeros is a no-op
        params["layers"].append({
            "ln1_g": jnp.ones((D,), jnp.float32), "ln1_b": jnp.zeros((D,), jnp.float32),
            "w_qkv": w_qkv.astype(jnp.bfloat16), "b_qkv": b_qkv,
            "w_out": w((D, D)),     "b_out": jnp.zeros((D,), jnp.float32),
            "ln2_g": jnp.ones((D,), jnp.float32), "ln2_b": jnp.zeros((D,), jnp.float32),
            "w_fc1": w((D, cfg["mlp"])), "b_fc1": jnp.zeros((cfg["mlp"],), jnp.float32),
            "w_fc2": w((cfg["mlp"], D)), "b_fc2": jnp.zeros((D,), jnp.float32),
        })
    return params


def vpt_deep_forward(params, x, cfg):
    """x: NCHW float32 image batch (same convention as the PyTorch module)."""
    B, C, H, W = x.shape
    P = cfg["patch"]
    nH, nW = H // P, W // P
    n = nH * nW
    D = cfg["hidden"]
    Hh = cfg["heads"]
    Dh = D // Hh
    Lp = cfg["prompt_len"]

    S_valid = 1 + Lp + n                    # cls + prompts + patches (per layer)
    S_pad = ((S_valid + 15) // 16) * 16     # pad once; pad keys masked in attention
    # Invariant: rows >= S_valid are never attended to (key mask every layer)
    # and only the CLS row (row 0) feeds the classification head, so whatever
    # the pad rows carry through the layers is irrelevant.

    # --- patch embedding: conv(kernel=stride=P) == patch flatten + tiled matmul ---
    patches = (x.reshape(B, C, nH, P, nW, P)
                 .transpose(0, 2, 4, 1, 3, 5)              # (B, nH, nW, C, P, P)
                 .reshape(B * n, C * P * P)).astype(jnp.bfloat16)
    tok = linear(patches, params["conv_w"], params["conv_b"]).reshape(B, n, D)
    tok = tok + params["pos_emb"][:, 1:]

    cls = params["cls_token"] + params["pos_emb"][:, :1]    # (1, 1, D)

    # Persistent padded token buffer in bf16: [CLS | prompt slot | patches | pad].
    z = jnp.zeros((B, S_pad, D), jnp.bfloat16)
    z = z.at[:, 0:1].set(jnp.broadcast_to(cls, (B, 1, D)).astype(jnp.bfloat16))
    z = z.at[:, 1 + Lp:1 + Lp + n].set(tok.astype(jnp.bfloat16))

    M = B * S_pad
    for l in range(cfg["num_layers"]):
        lp = params["layers"][l]
        # deep VPT: overwrite the prompt slot with this layer's prompts
        # (previous layer's prompt outputs are dropped, as in the reference).
        pr = jnp.broadcast_to(params["prompts"][:, l], (B, Lp, D))
        z = z.at[:, 1:1 + Lp].set(pr.astype(z.dtype))

        z2 = z.reshape(M, D)                                            # bf16

        # --- self-attention block (pre-LN fused into the QKV matmul) ---
        qkv = ln_linear(z2, lp["ln1_g"], lp["ln1_b"], lp["w_qkv"], lp["b_qkv"],
                        out_dtype=jnp.bfloat16)                         # (M, 3D)
        a = attention(qkv.reshape(B, S_pad, 3 * D),
                      heads=Hh, head_dim=Dh, valid_len=S_valid)         # (B,S,D) bf16
        z2 = linear(a.reshape(M, D), lp["w_out"], lp["b_out"], res=z2,
                    out_dtype=jnp.bfloat16)                             # +residual

        # --- MLP block (pre-LN + GELU fused into fc1, residual fused into fc2) ---
        h = ln_linear(z2, lp["ln2_g"], lp["ln2_b"], lp["w_fc1"], lp["b_fc1"],
                      act="gelu", out_dtype=jnp.bfloat16)               # (M, mlp)
        z2 = linear(h, lp["w_fc2"], lp["b_fc2"], res=z2,
                    out_dtype=jnp.bfloat16)
        z = z2.reshape(B, S_pad, D)

    # final LN is row-wise, so fusing it with the head on the CLS row only is
    # exactly LN_f(seq)[:,0] -> heads[0]=Identity -> self.linear
    cls_out = z[:, 0]                                                    # (B, D)
    logits = ln_linear(cls_out, params["ln_f_g"], params["ln_f_b"],
                       params["head_w"], params["head_b"])               # (B, n_cls)
    return logits


# --------------------------------- main --------------------------------------

if __name__ == "__main__":
    # Small configuration consistent with the module (ViT-B/32 has hidden=768,
    # 12 layers, 12 heads, mlp=3072, prompt_length=10 — scaled down here).
    cfg = dict(hidden=128, heads=4, mlp=256, num_layers=2, prompt_len=4,
               patch=8, in_ch=3, n_classes=10)

    key = jax.random.PRNGKey(0)
    kx, kp = jax.random.split(key)

    B, C, HW = 2, cfg["in_ch"], 16
    cfg["n_patches"] = (HW // cfg["patch"]) ** 2

    x = jax.random.normal(kx, (B, C, HW, HW), jnp.float32)   # NCHW, as in PyTorch
    params = init_params(kp, cfg)

    fwd = jax.jit(partial(vpt_deep_forward, cfg=cfg))
    logits = fwd(params, x)
    jax.block_until_ready(logits)
    assert logits.shape == (B, cfg["n_classes"]) and logits.dtype == jnp.float32
    print("KERNEL_OK")
</pallas_src>

<mosaic_0001>
module attributes {stable_mosaic.version = 11 : i64} {
  func.func @_matmul_kernel(%arg0: i32, %arg1: i32, %arg2: i32, %arg3: memref<8x192xbf16, #tpu.memory_space<vmem>>, %arg4: memref<192x128xbf16, #tpu.memory_space<vmem>>, %arg5: memref<1x128xf32, #tpu.memory_space<vmem>>, %arg6: memref<8x128xf32, #tpu.memory_space<vmem>>, %arg7: memref<8x128xf32, #tpu.memory_space<vmem>>) attributes {dimension_semantics = [#tpu.dimension_semantics<parallel>, #tpu.dimension_semantics<parallel>, #tpu.dimension_semantics<arbitrary>], iteration_bounds = array<i64: 1, 1, 1>, scalar_prefetch = 0 : i64, scratch_operands = 1 : i64, tpu.core_type = #tpu.core_type<tc>, window_params = [{transform_indices = @transform_0, window_bounds = array<i64: 8, 192>}, {transform_indices = @transform_1, window_bounds = array<i64: 192, 128>}, {transform_indices = @transform_2, window_bounds = array<i64: 1, 128>}, {transform_indices = @transform_3, window_bounds = array<i64: 8, 128>}]} {
    %c0_i32 = arith.constant 0 : i32
    %0 = arith.cmpi eq, %arg2, %c0_i32 : i32
    %1 = arith.extui %0 : i1 to i32
    %c0_i32_0 = arith.constant 0 : i32
    %2 = arith.cmpi ne, %1, %c0_i32_0 : i32
    scf.if %2 {
      %cst_10 = arith.constant 0.000000e+00 : f32
      %12 = vector.broadcast %cst_10 : f32 to vector<8x128xf32>
      %c0_11 = arith.constant 0 : index
      %c0_12 = arith.constant 0 : index
      %13 = vector.load %arg7[%c0_11, %c0_12] : memref<8x128xf32, #tpu.memory_space<vmem>>, vector<8x128xf32>
      tpu.vector_store %arg7[%c0_11, %c0_12], %12 {strides = array<i32>} : memref<8x128xf32, #tpu.memory_space<vmem>>, vector<8x128xf32>,
    } else {
    }
    %c0 = arith.constant 0 : index
    %c0_1 = arith.constant 0 : index
    %3 = vector.load %arg7[%c0, %c0_1] : memref<8x128xf32, #tpu.memory_space<vmem>>, vector<8x128xf32>
    %c0_2 = arith.constant 0 : index
    %c0_3 = arith.constant 0 : index
    %4 = vector.load %arg3[%c0_2, %c0_3] : memref<8x192xbf16, #tpu.memory_space<vmem>>, vector<8x192xbf16>
    %c0_4 = arith.constant 0 : index
    %c0_5 = arith.constant 0 : index
    %5 = vector.load %arg4[%c0_4, %c0_5] : memref<192x128xbf16, #tpu.memory_space<vmem>>, vector<192x128xbf16>
    %cst = arith.constant dense<0.000000e+00> : vector<8x128xf32>
    %6 = tpu.matmul %4, %5, %cst {dimension_numbers = #tpu.dot_dimension_numbers<[1], [0], [0], [1], [0, 0, 1, 1], [], []>} : vector<8x192xbf16>, vector<192x128xbf16>, vector<8x128xf32> -> vector<8x128xf32>
    %7 = arith.addf %3, %6 : vector<8x128xf32>
    %c0_6 = arith.constant 0 : index
    %c0_7 = arith.constant 0 : index
    %8 = vector.load %arg7[%c0_6, %c0_7] : memref<8x128xf32, #tpu.memory_space<vmem>>, vector<8x128xf32>
    tpu.vector_store %arg7[%c0_6, %c0_7], %7 {strides = array<i32>} : memref<8x128xf32, #tpu.memory_space<vmem>>, vector<8x128xf32>,
    %c0_i32_8 = arith.constant 0 : i32
    %9 = arith.cmpi eq, %arg2, %c0_i32_8 : i32
    %10 = arith.extui %9 : i1 to i32
    %c0_i32_9 = arith.constant 0 : i32
    %11 = arith.cmpi ne, %10, %c0_i32_9 : i32
    scf.if %11 {
      %c0_10 = arith.constant 0 : index
      %c0_11 = arith.constant 0 : index
      %12 = vector.load %arg7[%c0_10, %c0_11] : memref<8x128xf32, #tpu.memory_space<vmem>>, vector<8x128xf32>
      %c0_12 = arith.constant 0 : index
      %c0_13 = arith.constant 0 : index
      %13 = vector.load %arg5[%c0_12, %c0_13] : memref<1x128xf32, #tpu.memory_space<vmem>>, vector<1x128xf32>
      %14 = vector.broadcast %13 : vector<1x128xf32> to vector<8x128xf32>
      %15 = arith.addf %12, %14 : vector<8x128xf32>
      %c0_14 = arith.constant 0 : index
      %c0_15 = arith.constant 0 : index
      %16 = vector.load %arg6[%c0_14, %c0_15] : memref<8x128xf32, #tpu.memory_space<vmem>>, vector<8x128xf32>
      tpu.vector_store %arg6[%c0_14, %c0_15], %15 {strides = array<i32>} : memref<8x128xf32, #tpu.memory_space<vmem>>, vector<8x128xf32>,
    } else {
    }
    return
  }
  func.func @transform_0(%arg0: i32, %arg1: i32, %arg2: i32) -> (i32, i32) {
    %c0_i32 = arith.constant 0 : i32
    return %arg0, %arg2 : i32, i32
  }
  func.func @transform_1(%arg0: i32, %arg1: i32, %arg2: i32) -> (i32, i32) {
    %c0_i32 = arith.constant 0 : i32
    return %arg2, %arg1 : i32, i32
  }
  func.func @transform_2(%arg0: i32, %arg1: i32, %arg2: i32) -> (i32, i32) {
    %c0_i32 = arith.constant 0 : i32
    %c0_i32_0 = arith.constant 0 : i32
    return %c0_i32, %arg1 : i32, i32
  }
  func.func @transform_3(%arg0: i32, %arg1: i32, %arg2: i32) -> (i32, i32) {
    %c0_i32 = arith.constant 0 : i32
    return %arg0, %arg1 : i32, i32
  }
}

module attributes {stable_mosaic.version = 11 : i64} {
  func.func @_ln_matmul_kernel(%arg0: i32, %arg1: i32, %arg2: memref<32x128xbf16, #tpu.memory_space<vmem>>, %arg3: memref<1x128xf32, #tpu.memory_space<vmem>>, %arg4: memref<1x128xf32, #tpu.memory_space<vmem>>, %arg5: memref<128x384xbf16, #tpu.memory_space<vmem>>, %arg6: memref<1x384xf32, #tpu.memory_space<vmem>>, %arg7: memref<32x384xbf16, #tpu.memory_space<vmem>>, %arg8: memref<32x128xbf16, #tpu.memory_space<vmem>>) attributes {dimension_semantics = [#tpu.dimension_semantics<parallel>, #tpu.dimension_semantics<arbitrary>], iteration_bounds = array<i64: 1, 1>, scalar_prefetch = 0 : i64, scratch_operands = 1 : i64, tpu.core_type = #tpu.core_type<tc>, window_params = [{transform_indices = @transform_0, window_bounds = array<i64: 32, 128>}, {pipeline_mode = #tpu.pipeline_mode<synchronous>, transform_indices = @transform_1, window_bounds = array<i64: 1, 128>}, {pipeline_mode = #tpu.pipeline_mode<synchronous>, transform_indices = @transform_2, window_bounds = array<i64: 1, 128>}, {transform_indices = @transform_3, window_bounds = array<i64: 128, 384>}, {transform_indices = @transform_4, window_bounds = array<i64: 1, 384>}, {transform_indices = @transform_5, window_bounds = array<i64: 32, 384>}]} {
    %c0_i32 = arith.constant 0 : i32
    %0 = arith.cmpi eq, %arg1, %c0_i32 : i32
    %1 = arith.extui %0 : i1 to i32
    %c0_i32_0 = arith.constant 0 : i32
    %2 = arith.cmpi ne, %1, %c0_i32_0 : i32
    scf.if %2 {
      %c0_8 = arith.constant 0 : index
      %c0_9 = arith.constant 0 : index
      %11 = vector.load %arg2[%c0_8, %c0_9] : memref<32x128xbf16, #tpu.memory_space<vmem>>, vector<32x128xbf16>
      %12 = arith.extf %11 : vector<32x128xbf16> to vector<32x128xf32>
      %cst_10 = arith.constant dense<0.000000e+00> : vector<32xf32>
      %13 = vector.multi_reduction <add>, %12, %cst_10 [1] : vector<32x128xf32> to vector<32xf32>
      %14 = vector.shape_cast %13 : vector<32xf32> to vector<32x1xf32>
      %cst_11 = arith.constant 1.280000e+02 : f32
      %15 = vector.broadcast %cst_11 : f32 to vector<32x1xf32>
      %16 = arith.divf %14, %15 : vector<32x1xf32>
      %17 = vector.broadcast %16 : vector<32x1xf32> to vector<32x128xf32>
      %18 = arith.subf %12, %17 : vector<32x128xf32>
      %19 = arith.mulf %18, %18 : vector<32x128xf32>
      %cst_12 = arith.constant dense<0.000000e+00> : vector<32xf32>
      %20 = vector.multi_reduction <add>, %19, %cst_12 [1] : vector<32x128xf32> to vector<32xf32>
      %21 = vector.shape_cast %20 : vector<32xf32> to vector<32x1xf32>
      %cst_13 = arith.constant 1.280000e+02 : f32
      %22 = vector.broadcast %cst_13 : f32 to vector<32x1xf32>
      %23 = arith.divf %21, %22 : vector<32x1xf32>
      %24 = vector.broadcast %16 : vector<32x1xf32> to vector<32x128xf32>
      %25 = arith.subf %12, %24 : vector<32x128xf32>
      %cst_14 = arith.constant 9.99999997E-7 : f32
      %26 = vector.broadcast %cst_14 : f32 to vector<32x1xf32>
      %27 = arith.addf %23, %26 : vector<32x1xf32>
      %28 = math.rsqrt %27 : vector<32x1xf32>
      %29 = vector.broadcast %28 : vector<32x1xf32> to vector<32x128xf32>
      %30 = arith.mulf %25, %29 : vector<32x128xf32>
      %c0_15 = arith.constant 0 : index
      %c0_16 = arith.constant 0 : index
      %31 = vector.load %arg3[%c0_15, %c0_16] : memref<1x128xf32, #tpu.memory_space<vmem>>, vector<1x128xf32>
      %32 = vector.broadcast %31 : vector<1x128xf32> to vector<32x128xf32>
      %33 = arith.mulf %30, %32 : vector<32x128xf32>
      %c0_17 = arith.constant 0 : index
      %c0_18 = arith.constant 0 : index
      %34 = vector.load %arg4[%c0_17, %c0_18] : memref<1x128xf32, #tpu.memory_space<vmem>>, vector<1x128xf32>
      %35 = vector.broadcast %34 : vector<1x128xf32> to vector<32x128xf32>
      %36 = arith.addf %33, %35 : vector<32x128xf32>
      %37 = arith.truncf %36 : vector<32x128xf32> to vector<32x128xbf16>
      %c0_19 = arith.constant 0 : index
      %c0_20 = arith.constant 0 : index
      %38 = vector.load %arg8[%c0_19, %c0_20] : memref<32x128xbf16, #tpu.memory_space<vmem>>, vector<32x128xbf16>
      tpu.vector_store %arg8[%c0_19, %c0_20], %37 {strides = array<i32>} : memref<32x128xbf16, #tpu.memory_space<vmem>>, vector<32x128xbf16>,
    } else {
    }
    %c0 = arith.constant 0 : index
    %c0_1 = arith.constant 0 : index
    %3 = vector.load %arg8[%c0, %c0_1] : memref<32x128xbf16, #tpu.memory_space<vmem>>, vector<32x128xbf16>
    %c0_2 = arith.constant 0 : index
    %c0_3 = arith.constant 0 : index
    %4 = vector.load %arg5[%c0_2, %c0_3] : memref<128x384xbf16, #tpu.memory_space<vmem>>, vector<128x384xbf16>
    %cst = arith.constant dense<0.000000e+00> : vector<32x384xf32>
    %5 = tpu.matmul %3, %4, %cst {dimension_numbers = #tpu.dot_dimension_numbers<[1], [0], [0], [1], [0, 0, 1, 1], [], []>} : vector<32x128xbf16>, vector<128x384xbf16>, vector<32x384xf32> -> vector<32x384xf32>
    %c0_4 = arith.constant 0 : index
    %c0_5 = arith.constant 0 : index
    %6 = vector.load %arg6[%c0_4, %c0_5] : memref<1x384xf32, #tpu.memory_space<vmem>>, vector<1x384xf32>
    %7 = vector.broadcast %6 : vector<1x384xf32> to vector<32x384xf32>
    %8 = arith.addf %5, %7 : vector<32x384xf32>
    %9 = arith.truncf %8 : vector<32x384xf32> to vector<32x384xbf16>
    %c0_6 = arith.constant 0 : index
    %c0_7 = arith.constant 0 : index
    %10 = vector.load %arg7[%c0_6, %c0_7] : memref<32x384xbf16, #tpu.memory_space<vmem>>, vector<32x384xbf16>
    tpu.vector_store %arg7[%c0_6, %c0_7], %9 {strides = array<i32>} : memref<32x384xbf16, #tpu.memory_space<vmem>>, vector<32x384xbf16>,
    return
  }
  func.func @transform_0(%arg0: i32, %arg1: i32) -> (i32, i32) {
    %c0_i32 = arith.constant 0 : i32
    %c0_i32_0 = arith.constant 0 : i32
    return %arg0, %c0_i32 : i32, i32
  }
  func.func @transform_1(%arg0: i32, %arg1: i32) -> (i32, i32) {
    %c0_i32 = arith.constant 0 : i32
    %c0_i32_0 = arith.constant 0 : i32
    %c0_i32_1 = arith.constant 0 : i32
    return %c0_i32, %c0_i32_0 : i32, i32
  }
  func.func @transform_2(%arg0: i32, %arg1: i32) -> (i32, i32) {
    %c0_i32 = arith.constant 0 : i32
    %c0_i32_0 = arith.constant 0 : i32
    %c0_i32_1 = arith.constant 0 : i32
    return %c0_i32, %c0_i32_0 : i32, i32
  }
  func.func @transform_3(%arg0: i32, %arg1: i32) -> (i32, i32) {
    %c0_i32 = arith.constant 0 : i32
    %c0_i32_0 = arith.constant 0 : i32
    return %c0_i32, %arg1 : i32, i32
  }
  func.func @transform_4(%arg0: i32, %arg1: i32) -> (i32, i32) {
    %c0_i32 = arith.constant 0 : i32
    %c0_i32_0 = arith.constant 0 : i32
    return %c0_i32, %arg1 : i32, i32
  }
  func.func @transform_5(%arg0: i32, %arg1: i32) -> (i32, i32) {
    %c0_i32 = arith.constant 0 : i32
    return %arg0, %arg1 : i32, i32
  }
}

module attributes {stable_mosaic.version = 11 : i64} {
  func.func @_attention_kernel(%arg0: i32, %arg1: memref<2x16x384xbf16, #tpu.memory_space<vmem>>, %arg2: memref<2x16x128xbf16, #tpu.memory_space<vmem>>) attributes {dimension_semantics = [#tpu.dimension_semantics<parallel>], iteration_bounds = array<i64: 1>, scalar_prefetch = 0 : i64, scratch_operands = 0 : i64, tpu.core_type = #tpu.core_type<tc>, window_params = [{transform_indices = @transform_0, window_bounds = array<i64: 2, 16, 384>}, {transform_indices = @transform_1, window_bounds = array<i64: 2, 16, 128>}]} {
    %c0 = arith.constant 0 : index
    %c0_0 = arith.constant 0 : index
    %c0_1 = arith.constant 0 : index
    %0 = vector.load %arg1[%c0, %c0_0, %c0_1] : memref<2x16x384xbf16, #tpu.memory_space<vmem>>, vector<2x16x128xbf16>
    %c0_2 = arith.constant 0 : index
    %c0_3 = arith.constant 0 : index
    %c128 = arith.constant 128 : index
    %1 = vector.load %arg1[%c0_2, %c0_3, %c128] : memref<2x16x384xbf16, #tpu.memory_space<vmem>>, vector<2x16x128xbf16>
    %c0_4 = arith.constant 0 : index
    %c0_5 = arith.constant 0 : index
    %c256 = arith.constant 256 : index
    %2 = vector.load %arg1[%c0_4, %c0_5, %c256] : memref<2x16x384xbf16, #tpu.memory_space<vmem>>, vector<2x16x128xbf16>
    %3 = tpu.iota {dimensions = array<i32: 2>} : vector<1x1x16xi32>
    %c9_i32 = arith.constant 9 : i32
    %4 = vector.broadcast %c9_i32 : i32 to vector<1x1x16xi32>
    %5 = arith.cmpi slt, %3, %4 : vector<1x1x16xi32>
    %6 = vector.extract_strided_slice %0 {offsets = [0, 0, 0], sizes = [2, 16, 32], strides = [1, 1, 1]} : vector<2x16x128xbf16> to vector<2x16x32xbf16>
    %7 = vector.extract_strided_slice %1 {offsets = [0, 0, 0], sizes = [2, 16, 32], strides = [1, 1, 1]} : vector<2x16x128xbf16> to vector<2x16x32xbf16>
    %8 = vector.extract_strided_slice %2 {offsets = [0, 0, 0], sizes = [2, 16, 32], strides = [1, 1, 1]} : vector<2x16x128xbf16> to vector<2x16x32xbf16>
    %cst = arith.constant dense<0.000000e+00> : vector<2x16x16xf32>
    %9 = tpu.matmul %6, %7, %cst {dimension_numbers = #tpu.dot_dimension_numbers<[2], [2], [1], [1], [0, 0, 0, 1, 1, 1], [0], [0]>} : vector<2x16x32xbf16>, vector<2x16x32xbf16>, vector<2x16x16xf32> -> vector<2x16x16xf32>
    %cst_6 = arith.constant -1.000000e+30 : f32
    %10 = vector.shape_cast %5 : vector<1x1x16xi1> to vector<1x1x16xi1>
    %11 = vector.broadcast %10 : vector<1x1x16xi1> to vector<2x16x16xi1>
    %12 = vector.broadcast %cst_6 : f32 to vector<2x16x16xf32>
    %13 = arith.select %11, %9, %12 : vector<2x16x16xi1>, vector<2x16x16xf32>
    %cst_7 = arith.constant dense<0xFF800000> : vector<2x16xf32>
    %14 = vector.multi_reduction <maximumf>, %13, %cst_7 [2] : vector<2x16x16xf32> to vector<2x16xf32>
    %15 = vector.shape_cast %14 : vector<2x16xf32> to vector<2x16x1xf32>
    %16 = vector.broadcast %15 : vector<2x16x1xf32> to vector<2x16x16xf32>
    %17 = arith.subf %13, %16 : vector<2x16x16xf32>
    %18 = math.exp %17 : vector<2x16x16xf32>
    %cst_8 = arith.constant dense<0.000000e+00> : vector<2x16xf32>
    %19 = vector.multi_reduction <add>, %18, %cst_8 [2] : vector<2x16x16xf32> to vector<2x16xf32>
    %20 = vector.shape_cast %19 : vector<2x16xf32> to vector<2x16x1xf32>
    %21 = arith.truncf %18 : vector<2x16x16xf32> to vector<2x16x16xbf16>
    %cst_9 = arith.constant dense<0.000000e+00> : vector<2x16x32xf32>
    %22 = tpu.matmul %21, %8, %cst_9 {dimension_numbers = #tpu.dot_dimension_numbers<[2], [1], [1], [2], [0, 0, 0, 1, 1, 2], [0], [0]>} : vector<2x16x16xbf16>, vector<2x16x32xbf16>, vector<2x16x32xf32> -> vector<2x16x32xf32>
    %23 = tpu.reciprocal %20 {approx = true} : vector<2x16x1xf32> -> vector<2x16x1xf32>
    %24 = vector.broadcast %23 : vector<2x16x1xf32> to vector<2x16x32xf32>
    %25 = arith.mulf %22, %24 : vector<2x16x32xf32>
    %26 = arith.truncf %25 : vector<2x16x32xf32> to vector<2x16x32xbf16>
    %c0_10 = arith.constant 0 : index
    %c0_11 = arith.constant 0 : index
    %c0_12 = arith.constant 0 : index
    %27 = vector.load %arg2[%c0_10, %c0_11, %c0_12] : memref<2x16x128xbf16, #tpu.memory_space<vmem>>, vector<2x16x32xbf16>
    tpu.vector_store %arg2[%c0_10, %c0_11, %c0_12], %26 {strides = array<i32>} : memref<2x16x128xbf16, #tpu.memory_space<vmem>>, vector<2x16x32xbf16>,
    %28 = vector.extract_strided_slice %0 {offsets = [0, 0, 32], sizes = [2, 16, 32], strides = [1, 1, 1]} : vector<2x16x128xbf16> to vector<2x16x32xbf16>
    %29 = vector.extract_strided_slice %1 {offsets = [0, 0, 32], sizes = [2, 16, 32], strides = [1, 1, 1]} : vector<2x16x128xbf16> to vector<2x16x32xbf16>
    %30 = vector.extract_strided_slice %2 {offsets = [0, 0, 32], sizes = [2, 16, 32], strides = [1, 1, 1]} : vector<2x16x128xbf16> to vector<2x16x32xbf16>
    %cst_13 = arith.constant dense<0.000000e+00> : vector<2x16x16xf32>
    %31 = tpu.matmul %28, %29, %cst_13 {dimension_numbers = #tpu.dot_dimension_numbers<[2], [2], [1], [1], [0, 0, 0, 1, 1, 1], [0], [0]>} : vector<2x16x32xbf16>, vector<2x16x32xbf16>, vector<2x16x16xf32> -> vector<2x16x16xf32>
    %cst_14 = arith.constant -1.000000e+30 : f32
    %32 = vector.shape_cast %5 : vector<1x1x16xi1> to vector<1x1x16xi1>
    %33 = vector.broadcast %32 : vector<1x1x16xi1> to vector<2x16x16xi1>
    %34 = vector.broadcast %cst_14 : f32 to vector<2x16x16xf32>
    %35 = arith.select %33, %31, %34 : vector<2x16x16xi1>, vector<2x16x16xf32>
    %cst_15 = arith.constant dense<0xFF800000> : vector<2x16xf32>
    %36 = vector.multi_reduction <maximumf>, %35, %cst_15 [2] : vector<2x16x16xf32> to vector<2x16xf32>
    %37 = vector.shape_cast %36 : vector<2x16xf32> to vector<2x16x1xf32>
    %38 = vector.broadcast %37 : vector<2x16x1xf32> to vector<2x16x16xf32>
    %39 = arith.subf %35, %38 : vector<2x16x16xf32>
    %40 = math.exp %39 : vector<2x16x16xf32>
    %cst_16 = arith.constant dense<0.000000e+00> : vector<2x16xf32>
    %41 = vector.multi_reduction <add>, %40, %cst_16 [2] : vector<2x16x16xf32> to vector<2x16xf32>
    %42 = vector.shape_cast %41 : vector<2x16xf32> to vector<2x16x1xf32>
    %43 = arith.truncf %40 : vector<2x16x16xf32> to vector<2x16x16xbf16>
    %cst_17 = arith.constant dense<0.000000e+00> : vector<2x16x32xf32>
    %44 = tpu.matmul %43, %30, %cst_17 {dimension_numbers = #tpu.dot_dimension_numbers<[2], [1], [1], [2], [0, 0, 0, 1, 1, 2], [0], [0]>} : vector<2x16x16xbf16>, vector<2x16x32xbf16>, vector<2x16x32xf32> -> vector<2x16x32xf32>
    %45 = tpu.reciprocal %42 {approx = true} : vector<2x16x1xf32> -> vector<2x16x1xf32>
    %46 = vector.broadcast %45 : vector<2x16x1xf32> to vector<2x16x32xf32>
    %47 = arith.mulf %44, %46 : vector<2x16x32xf32>
    %48 = arith.truncf %47 : vector<2x16x32xf32> to vector<2x16x32xbf16>
    %c0_18 = arith.constant 0 : index
    %c0_19 = arith.constant 0 : index
    %c32 = arith.constant 32 : index
    %49 = vector.load %arg2[%c0_18, %c0_19, %c32] : memref<2x16x128xbf16, #tpu.memory_space<vmem>>, vector<2x16x32xbf16>
    tpu.vector_store %arg2[%c0_18, %c0_19, %c32], %48 {strides = array<i32>} : memref<2x16x128xbf16, #tpu.memory_space<vmem>>, vector<2x16x32xbf16>,
    %50 = vector.extract_strided_slice %0 {offsets = [0, 0, 64], sizes = [2, 16, 32], strides = [1, 1, 1]} : vector<2x16x128xbf16> to vector<2x16x32xbf16>
    %51 = vector.extract_strided_slice %1 {offsets = [0, 0, 64], sizes = [2, 16, 32], strides = [1, 1, 1]} : vector<2x16x128xbf16> to vector<2x16x32xbf16>
    %52 = vector.extract_strided_slice %2 {offsets = [0, 0, 64], sizes = [2, 16, 32], strides = [1, 1, 1]} : vector<2x16x128xbf16> to vector<2x16x32xbf16>
    %cst_20 = arith.constant dense<0.000000e+00> : vector<2x16x16xf32>
    %53 = tpu.matmul %50, %51, %cst_20 {dimension_numbers = #tpu.dot_dimension_numbers<[2], [2], [1], [1], [0, 0, 0, 1, 1, 1], [0], [0]>} : vector<2x16x32xbf16>, vector<2x16x32xbf16>, vector<2x16x16xf32> -> vector<2x16x16xf32>
    %cst_21 = arith.constant -1.000000e+30 : f32
    %54 = vector.shape_cast %5 : vector<1x1x16xi1> to vector<1x1x16xi1>
    %55 = vector.broadcast %54 : vector<1x1x16xi1> to vector<2x16x16xi1>
    %56 = vector.broadcast %cst_21 : f32 to vector<2x16x16xf32>
    %57 = arith.select %55, %53, %56 : vector<2x16x16xi1>, vector<2x16x16xf32>
    %cst_22 = arith.constant dense<0xFF800000> : vector<2x16xf32>
    %58 = vector.multi_reduction <maximumf>, %57, %cst_22 [2] : vector<2x16x16xf32> to vector<2x16xf32>
    %59 = vector.shape_cast %58 : vector<2x16xf32> to vector<2x16x1xf32>
    %60 = vector.broadcast %59 : vector<2x16x1xf32> to vector<2x16x16xf32>
    %61 = arith.subf %57, %60 : vector<2x16x16xf32>
    %62 = math.exp %61 : vector<2x16x16xf32>
    %cst_23 = arith.constant dense<0.000000e+00> : vector<2x16xf32>
    %63 = vector.multi_reduction <add>, %62, %cst_23 [2] : vector<2x16x16xf32> to vector<2x16xf32>
    %64 = vector.shape_cast %63 : vector<2x16xf32> to vector<2x16x1xf32>
    %65 = arith.truncf %62 : vector<2x16x16xf32> to vector<2x16x16xbf16>
    %cst_24 = arith.constant dense<0.000000e+00> : vector<2x16x32xf32>
    %66 = tpu.matmul %65, %52, %cst_24 {dimension_numbers = #tpu.dot_dimension_numbers<[2], [1], [1], [2], [0, 0, 0, 1, 1, 2], [0], [0]>} : vector<2x16x16xbf16>, vector<2x16x32xbf16>, vector<2x16x32xf32> -> vector<2x16x32xf32>
    %67 = tpu.reciprocal %64 {approx = true} : vector<2x16x1xf32> -> vector<2x16x1xf32>
    %68 = vector.broadcast %67 : vector<2x16x1xf32> to vector<2x16x32xf32>
    %69 = arith.mulf %66, %68 : vector<2x16x32xf32>
    %70 = arith.truncf %69 : vector<2x16x32xf32> to vector<2x16x32xbf16>
    %c0_25 = arith.constant 0 : index
    %c0_26 = arith.constant 0 : index
    %c64 = arith.constant 64 : index
    %71 = vector.load %arg2[%c0_25, %c0_26, %c64] : memref<2x16x128xbf16, #tpu.memory_space<vmem>>, vector<2x16x32xbf16>
    tpu.vector_store %arg2[%c0_25, %c0_26, %c64], %70 {strides = array<i32>} : memref<2x16x128xbf16, #tpu.memory_space<vmem>>, vector<2x16x32xbf16>,
    %72 = vector.extract_strided_slice %0 {offsets = [0, 0, 96], sizes = [2, 16, 32], strides = [1, 1, 1]} : vector<2x16x128xbf16> to vector<2x16x32xbf16>
    %73 = vector.extract_strided_slice %1 {offsets = [0, 0, 96], sizes = [2, 16, 32], strides = [1, 1, 1]} : vector<2x16x128xbf16> to vector<2x16x32xbf16>
    %74 = vector.extract_strided_slice %2 {offsets = [0, 0, 96], sizes = [2, 16, 32], strides = [1, 1, 1]} : vector<2x16x128xbf16> to vector<2x16x32xbf16>
    %cst_27 = arith.constant dense<0.000000e+00> : vector<2x16x16xf32>
    %75 = tpu.matmul %72, %73, %cst_27 {dimension_numbers = #tpu.dot_dimension_numbers<[2], [2], [1], [1], [0, 0, 0, 1, 1, 1], [0], [0]>} : vector<2x16x32xbf16>, vector<2x16x32xbf16>, vector<2x16x16xf32> -> vector<2x16x16xf32>
    %cst_28 = arith.constant -1.000000e+30 : f32
    %76 = vector.shape_cast %5 : vector<1x1x16xi1> to vector<1x1x16xi1>
    %77 = vector.broadcast %76 : vector<1x1x16xi1> to vector<2x16x16xi1>
    %78 = vector.broadcast %cst_28 : f32 to vector<2x16x16xf32>
    %79 = arith.select %77, %75, %78 : vector<2x16x16xi1>, vector<2x16x16xf32>
    %cst_29 = arith.constant dense<0xFF800000> : vector<2x16xf32>
    %80 = vector.multi_reduction <maximumf>, %79, %cst_29 [2] : vector<2x16x16xf32> to vector<2x16xf32>
    %81 = vector.shape_cast %80 : vector<2x16xf32> to vector<2x16x1xf32>
    %82 = vector.broadcast %81 : vector<2x16x1xf32> to vector<2x16x16xf32>
    %83 = arith.subf %79, %82 : vector<2x16x16xf32>
    %84 = math.exp %83 : vector<2x16x16xf32>
    %cst_30 = arith.constant dense<0.000000e+00> : vector<2x16xf32>
    %85 = vector.multi_reduction <add>, %84, %cst_30 [2] : vector<2x16x16xf32> to vector<2x16xf32>
    %86 = vector.shape_cast %85 : vector<2x16xf32> to vector<2x16x1xf32>
    %87 = arith.truncf %84 : vector<2x16x16xf32> to vector<2x16x16xbf16>
    %cst_31 = arith.constant dense<0.000000e+00> : vector<2x16x32xf32>
    %88 = tpu.matmul %87, %74, %cst_31 {dimension_numbers = #tpu.dot_dimension_numbers<[2], [1], [1], [2], [0, 0, 0, 1, 1, 2], [0], [0]>} : vector<2x16x16xbf16>, vector<2x16x32xbf16>, vector<2x16x32xf32> -> vector<2x16x32xf32>
    %89 = tpu.reciprocal %86 {approx = true} : vector<2x16x1xf32> -> vector<2x16x1xf32>
    %90 = vector.broadcast %89 : vector<2x16x1xf32> to vector<2x16x32xf32>
    %91 = arith.mulf %88, %90 : vector<2x16x32xf32>
    %92 = arith.truncf %91 : vector<2x16x32xf32> to vector<2x16x32xbf16>
    %c0_32 = arith.constant 0 : index
    %c0_33 = arith.constant 0 : index
    %c96 = arith.constant 96 : index
    %93 = vector.load %arg2[%c0_32, %c0_33, %c96] : memref<2x16x128xbf16, #tpu.memory_space<vmem>>, vector<2x16x32xbf16>
    tpu.vector_store %arg2[%c0_32, %c0_33, %c96], %92 {strides = array<i32>} : memref<2x16x128xbf16, #tpu.memory_space<vmem>>, vector<2x16x32xbf16>,
    return
  }
  func.func @transform_0(%arg0: i32) -> (i32, i32, i32) {
    %c0_i32 = arith.constant 0 : i32
    %c0_i32_0 = arith.constant 0 : i32
    %c0_i32_1 = arith.constant 0 : i32
    return %arg0, %c0_i32, %c0_i32_0 : i32, i32, i32
  }
  func.func @transform_1(%arg0: i32) -> (i32, i32, i32) {
    %c0_i32 = arith.constant 0 : i32
    %c0_i32_0 = arith.constant 0 : i32
    %c0_i32_1 = arith.constant 0 : i32
    return %arg0, %c0_i32, %c0_i32_0 : i32, i32, i32
  }
}

module attributes {stable_mosaic.version = 11 : i64} {
  func.func @_matmul_kernel(%arg0: i32, %arg1: i32, %arg2: i32, %arg3: memref<32x128xbf16, #tpu.memory_space<vmem>>, %arg4: memref<128x128xbf16, #tpu.memory_space<vmem>>, %arg5: memref<1x128xf32, #tpu.memory_space<vmem>>, %arg6: memref<32x128xbf16, #tpu.memory_space<vmem>>, %arg7: memref<32x128xbf16, #tpu.memory_space<vmem>>, %arg8: memref<32x128xf32, #tpu.memory_space<vmem>>) attributes {dimension_semantics = [#tpu.dimension_semantics<parallel>, #tpu.dimension_semantics<parallel>, #tpu.dimension_semantics<arbitrary>], iteration_bounds = array<i64: 1, 1, 1>, scalar_prefetch = 0 : i64, scratch_operands = 1 : i64, tpu.core_type = #tpu.core_type<tc>, window_params = [{transform_indices = @transform_0, window_bounds = array<i64: 32, 128>}, {transform_indices = @transform_1, window_bounds = array<i64: 128, 128>}, {transform_indices = @transform_2, window_bounds = array<i64: 1, 128>}, {transform_indices = @transform_3, window_bounds = array<i64: 32, 128>}, {transform_indices = @transform_4, window_bounds = array<i64: 32, 128>}]} {
    %c0_i32 = arith.constant 0 : i32
    %0 = arith.cmpi eq, %arg2, %c0_i32 : i32
    %1 = arith.extui %0 : i1 to i32
    %c0_i32_0 = arith.constant 0 : i32
    %2 = arith.cmpi ne, %1, %c0_i32_0 : i32
    scf.if %2 {
      %cst_10 = arith.constant 0.000000e+00 : f32
      %12 = vector.broadcast %cst_10 : f32 to vector<32x128xf32>
      %c0_11 = arith.constant 0 : index
      %c0_12 = arith.constant 0 : index
      %13 = vector.load %arg8[%c0_11, %c0_12] : memref<32x128xf32, #tpu.memory_space<vmem>>, vector<32x128xf32>
      tpu.vector_store %arg8[%c0_11, %c0_12], %12 {strides = array<i32>} : memref<32x128xf32, #tpu.memory_space<vmem>>, vector<32x128xf32>,
    } else {
    }
    %c0 = arith.constant 0 : index
    %c0_1 = arith.constant 0 : index
    %3 = vector.load %arg8[%c0, %c0_1] : memref<32x128xf32, #tpu.memory_space<vmem>>, vector<32x128xf32>
    %c0_2 = arith.constant 0 : index
    %c0_3 = arith.constant 0 : index
    %4 = vector.load %arg3[%c0_2, %c0_3] : memref<32x128xbf16, #tpu.memory_space<vmem>>, vector<32x128xbf16>
    %c0_4 = arith.constant 0 : index
    %c0_5 = arith.constant 0 : index
    %5 = vector.load %arg4[%c0_4, %c0_5] : memref<128x128xbf16, #tpu.memory_space<vmem>>, vector<128x128xbf16>
    %cst = arith.constant dense<0.000000e+00> : vector<32x128xf32>
    %6 = tpu.matmul %4, %5, %cst {dimension_numbers = #tpu.dot_dimension_numbers<[1], [0], [0], [1], [0, 0, 1, 1], [], []>} : vector<32x128xbf16>, vector<128x128xbf16>, vector<32x128xf32> -> vector<32x128xf32>
    %7 = arith.addf %3, %6 : vector<32x128xf32>
    %c0_6 = arith.constant 0 : index
    %c0_7 = arith.constant 0 : index
    %8 = vector.load %arg8[%c0_6, %c0_7] : memref<32x128xf32, #tpu.memory_space<vmem>>, vector<32x128xf32>
    tpu.vector_store %arg8[%c0_6, %c0_7], %7 {strides = array<i32>} : memref<32x128xf32, #tpu.memory_space<vmem>>, vector<32x128xf32>,
    %c0_i32_8 = arith.constant 0 : i32
    %9 = arith.cmpi eq, %arg2, %c0_i32_8 : i32
    %10 = arith.extui %9 : i1 to i32
    %c0_i32_9 = arith.constant 0 : i32
    %11 = arith.cmpi ne, %10, %c0_i32_9 : i32
    scf.if %11 {
      %c0_10 = arith.constant 0 : index
      %c0_11 = arith.constant 0 : index
      %12 = vector.load %arg8[%c0_10, %c0_11] : memref<32x128xf32, #tpu.memory_space<vmem>>, vector<32x128xf32>
      %c0_12 = arith.constant 0 : index
      %c0_13 = arith.constant 0 : index
      %13 = vector.load %arg5[%c0_12, %c0_13] : memref<1x128xf32, #tpu.memory_space<vmem>>, vector<1x128xf32>
      %14 = vector.broadcast %13 : vector<1x128xf32> to vector<32x128xf32>
      %15 = arith.addf %12, %14 : vector<32x128xf32>
      %c0_14 = arith.constant 0 : index
      %c0_15 = arith.constant 0 : index
      %16 = vector.load %arg6[%c0_14, %c0_15] : memref<32x128xbf16, #tpu.memory_space<vmem>>, vector<32x128xbf16>
      %17 = arith.extf %16 : vector<32x128xbf16> to vector<32x128xf32>
      %18 = arith.addf %15, %17 : vector<32x128xf32>
      %19 = arith.truncf %18 : vector<32x128xf32> to vector<32x128xbf16>
      %c0_16 = arith.constant 0 : index
      %c0_17 = arith.constant 0 : index
      %20 = vector.load %arg7[%c0_16, %c0_17] : memref<32x128xbf16, #tpu.memory_space<vmem>>, vector<32x128xbf16>
      tpu.vector_store %arg7[%c0_16, %c0_17], %19 {strides = array<i32>} : memref<32x128xbf16, #tpu.memory_space<vmem>>, vector<32x128xbf16>,
    } else {
    }
    return
  }
  func.func @transform_0(%arg0: i32, %arg1: i32, %arg2: i32) -> (i32, i32) {
    %c0_i32 = arith.constant 0 : i32
    return %arg0, %arg2 : i32, i32
  }
  func.func @transform_1(%arg0: i32, %arg1: i32, %arg2: i32) -> (i32, i32) {
    %c0_i32 = arith.constant 0 : i32
    return %arg2, %arg1 : i32, i32
  }
  func.func @transform_2(%arg0: i32, %arg1: i32, %arg2: i32) -> (i32, i32) {
    %c0_i32 = arith.constant 0 : i32
    %c0_i32_0 = arith.constant 0 : i32
    return %c0_i32, %arg1 : i32, i32
  }
  func.func @transform_3(%arg0: i32, %arg1: i32, %arg2: i32) -> (i32, i32) {
    %c0_i32 = arith.constant 0 : i32
    return %arg0, %arg1 : i32, i32
  }
  func.func @transform_4(%arg0: i32, %arg1: i32, %arg2: i32) -> (i32, i32) {
    %c0_i32 = arith.constant 0 : i32
    return %arg0, %arg1 : i32, i32
  }
}

module attributes {stable_mosaic.version = 11 : i64} {
  func.func @_ln_matmul_kernel(%arg0: i32, %arg1: i32, %arg2: memref<32x128xbf16, #tpu.memory_space<vmem>>, %arg3: memref<1x128xf32, #tpu.memory_space<vmem>>, %arg4: memref<1x128xf32, #tpu.memory_space<vmem>>, %arg5: memref<128x256xbf16, #tpu.memory_space<vmem>>, %arg6: memref<1x256xf32, #tpu.memory_space<vmem>>, %arg7: memref<32x256xbf16, #tpu.memory_space<vmem>>, %arg8: memref<32x128xbf16, #tpu.memory_space<vmem>>) attributes {dimension_semantics = [#tpu.dimension_semantics<parallel>, #tpu.dimension_semantics<arbitrary>], iteration_bounds = array<i64: 1, 1>, scalar_prefetch = 0 : i64, scratch_operands = 1 : i64, tpu.core_type = #tpu.core_type<tc>, window_params = [{transform_indices = @transform_0, window_bounds = array<i64: 32, 128>}, {pipeline_mode = #tpu.pipeline_mode<synchronous>, transform_indices = @transform_1, window_bounds = array<i64: 1, 128>}, {pipeline_mode = #tpu.pipeline_mode<synchronous>, transform_indices = @transform_2, window_bounds = array<i64: 1, 128>}, {transform_indices = @transform_3, window_bounds = array<i64: 128, 256>}, {transform_indices = @transform_4, window_bounds = array<i64: 1, 256>}, {transform_indices = @transform_5, window_bounds = array<i64: 32, 256>}]} {
    %c0_i32 = arith.constant 0 : i32
    %0 = arith.cmpi eq, %arg1, %c0_i32 : i32
    %1 = arith.extui %0 : i1 to i32
    %c0_i32_0 = arith.constant 0 : i32
    %2 = arith.cmpi ne, %1, %c0_i32_0 : i32
    scf.if %2 {
      %c0_12 = arith.constant 0 : index
      %c0_13 = arith.constant 0 : index
      %24 = vector.load %arg2[%c0_12, %c0_13] : memref<32x128xbf16, #tpu.memory_space<vmem>>, vector<32x128xbf16>
      %25 = arith.extf %24 : vector<32x128xbf16> to vector<32x128xf32>
      %cst_14 = arith.constant dense<0.000000e+00> : vector<32xf32>
      %26 = vector.multi_reduction <add>, %25, %cst_14 [1] : vector<32x128xf32> to vector<32xf32>
      %27 = vector.shape_cast %26 : vector<32xf32> to vector<32x1xf32>
      %cst_15 = arith.constant 1.280000e+02 : f32
      %28 = vector.broadcast %cst_15 : f32 to vector<32x1xf32>
      %29 = arith.divf %27, %28 : vector<32x1xf32>
      %30 = vector.broadcast %29 : vector<32x1xf32> to vector<32x128xf32>
      %31 = arith.subf %25, %30 : vector<32x128xf32>
      %32 = arith.mulf %31, %31 : vector<32x128xf32>
      %cst_16 = arith.constant dense<0.000000e+00> : vector<32xf32>
      %33 = vector.multi_reduction <add>, %32, %cst_16 [1] : vector<32x128xf32> to vector<32xf32>
      %34 = vector.shape_cast %33 : vector<32xf32> to vector<32x1xf32>
      %cst_17 = arith.constant 1.280000e+02 : f32
      %35 = vector.broadcast %cst_17 : f32 to vector<32x1xf32>
      %36 = arith.divf %34, %35 : vector<32x1xf32>
      %37 = vector.broadcast %29 : vector<32x1xf32> to vector<32x128xf32>
      %38 = arith.subf %25, %37 : vector<32x128xf32>
      %cst_18 = arith.constant 9.99999997E-7 : f32
      %39 = vector.broadcast %cst_18 : f32 to vector<32x1xf32>
      %40 = arith.addf %36, %39 : vector<32x1xf32>
      %41 = math.rsqrt %40 : vector<32x1xf32>
      %42 = vector.broadcast %41 : vector<32x1xf32> to vector<32x128xf32>
      %43 = arith.mulf %38, %42 : vector<32x128xf32>
      %c0_19 = arith.constant 0 : index
      %c0_20 = arith.constant 0 : index
      %44 = vector.load %arg3[%c0_19, %c0_20] : memref<1x128xf32, #tpu.memory_space<vmem>>, vector<1x128xf32>
      %45 = vector.broadcast %44 : vector<1x128xf32> to vector<32x128xf32>
      %46 = arith.mulf %43, %45 : vector<32x128xf32>
      %c0_21 = arith.constant 0 : index
      %c0_22 = arith.constant 0 : index
      %47 = vector.load %arg4[%c0_21, %c0_22] : memref<1x128xf32, #tpu.memory_space<vmem>>, vector<1x128xf32>
      %48 = vector.broadcast %47 : vector<1x128xf32> to vector<32x128xf32>
      %49 = arith.addf %46, %48 : vector<32x128xf32>
      %50 = arith.truncf %49 : vector<32x128xf32> to vector<32x128xbf16>
      %c0_23 = arith.constant 0 : index
      %c0_24 = arith.constant 0 : index
      %51 = vector.load %arg8[%c0_23, %c0_24] : memref<32x128xbf16, #tpu.memory_space<vmem>>, vector<32x128xbf16>
      tpu.vector_store %arg8[%c0_23, %c0_24], %50 {strides = array<i32>} : memref<32x128xbf16, #tpu.memory_space<vmem>>, vector<32x128xbf16>,
    } else {
    }
    %c0 = arith.constant 0 : index
    %c0_1 = arith.constant 0 : index
    %3 = vector.load %arg8[%c0, %c0_1] : memref<32x128xbf16, #tpu.memory_space<vmem>>, vector<32x128xbf16>
    %c0_2 = arith.constant 0 : index
    %c0_3 = arith.constant 0 : index
    %4 = vector.load %arg5[%c0_2, %c0_3] : memref<128x256xbf16, #tpu.memory_space<vmem>>, vector<128x256xbf16>
    %cst = arith.constant dense<0.000000e+00> : vector<32x256xf32>
    %5 = tpu.matmul %3, %4, %cst {dimension_numbers = #tpu.dot_dimension_numbers<[1], [0], [0], [1], [0, 0, 1, 1], [], []>} : vector<32x128xbf16>, vector<128x256xbf16>, vector<32x256xf32> -> vector<32x256xf32>
    %c0_4 = arith.constant 0 : index
    %c0_5 = arith.constant 0 : index
    %6 = vector.load %arg6[%c0_4, %c0_5] : memref<1x256xf32, #tpu.memory_space<vmem>>, vector<1x256xf32>
    %7 = vector.broadcast %6 : vector<1x256xf32> to vector<32x256xf32>
    %8 = arith.addf %5, %7 : vector<32x256xf32>
    %cst_6 = arith.constant 5.000000e-01 : f32
    %9 = vector.broadcast %cst_6 : f32 to vector<32x256xf32>
    %10 = arith.mulf %9, %8 : vector<32x256xf32>
    %cst_7 = arith.constant 4.471500e-02 : f32
    %11 = vector.broadcast %cst_7 : f32 to vector<32x256xf32>
    %12 = arith.mulf %11, %8 : vector<32x256xf32>
    %13 = arith.mulf %12, %8 : vector<32x256xf32>
    %14 = arith.mulf %13, %8 : vector<32x256xf32>
    %15 = arith.addf %8, %14 : vector<32x256xf32>
    %cst_8 = arith.constant 0.797884583 : f32
    %16 = vector.broadcast %cst_8 : f32 to vector<32x256xf32>
    %17 = arith.mulf %16, %15 : vector<32x256xf32>
    %18 = math.tanh %17 : vector<32x256xf32>
    %cst_9 = arith.constant 1.000000e+00 : f32
    %19 = vector.broadcast %cst_9 : f32 to vector<32x256xf32>
    %20 = arith.addf %19, %18 : vector<32x256xf32>
    %21 = arith.mulf %10, %20 : vector<32x256xf32>
    %22 = arith.truncf %21 : vector<32x256xf32> to vector<32x256xbf16>
    %c0_10 = arith.constant 0 : index
    %c0_11 = arith.constant 0 : index
    %23 = vector.load %arg7[%c0_10, %c0_11] : memref<32x256xbf16, #tpu.memory_space<vmem>>, vector<32x256xbf16>
    tpu.vector_store %arg7[%c0_10, %c0_11], %22 {strides = array<i32>} : memref<32x256xbf16, #tpu.memory_space<vmem>>, vector<32x256xbf16>,
    return
  }
  func.func @transform_0(%arg0: i32, %arg1: i32) -> (i32, i32) {
    %c0_i32 = arith.constant 0 : i32
    %c0_i32_0 = arith.constant 0 : i32
    return %arg0, %c0_i32 : i32, i32
  }
  func.func @transform_1(%arg0: i32, %arg1: i32) -> (i32, i32) {
    %c0_i32 = arith.constant 0 : i32
    %c0_i32_0 = arith.constant 0 : i32
    %c0_i32_1 = arith.constant 0 : i32
    return %c0_i32, %c0_i32_0 : i32, i32
  }
  func.func @transform_2(%arg0: i32, %arg1: i32) -> (i32, i32) {
    %c0_i32 = arith.constant 0 : i32
    %c0_i32_0 = arith.constant 0 : i32
    %c0_i32_1 = arith.constant 0 : i32
    return %c0_i32, %c0_i32_0 : i32, i32
  }
  func.func @transform_3(%arg0: i32, %arg1: i32) -> (i32, i32) {
    %c0_i32 = arith.constant 0 : i32
    %c0_i32_0 = arith.constant 0 : i32
    return %c0_i32, %arg1 : i32, i32
  }
  func.func @transform_4(%arg0: i32, %arg1: i32) -> (i32, i32) {
    %c0_i32 = arith.constant 0 : i32
    %c0_i32_0 = arith.constant 0 : i32
    return %c0_i32, %arg1 : i32, i32
  }
  func.func @transform_5(%arg0: i32, %arg1: i32) -> (i32, i32) {
    %c0_i32 = arith.constant 0 : i32
    return %arg0, %arg1 : i32, i32
  }
}

module attributes {stable_mosaic.version = 11 : i64} {
  func.func @_matmul_kernel(%arg0: i32, %arg1: i32, %arg2: i32, %arg3: memref<32x256xbf16, #tpu.memory_space<vmem>>, %arg4: memref<256x128xbf16, #tpu.memory_space<vmem>>, %arg5: memref<1x128xf32, #tpu.memory_space<vmem>>, %arg6: memref<32x128xbf16, #tpu.memory_space<vmem>>, %arg7: memref<32x128xbf16, #tpu.memory_space<vmem>>, %arg8: memref<32x128xf32, #tpu.memory_space<vmem>>) attributes {dimension_semantics = [#tpu.dimension_semantics<parallel>, #tpu.dimension_semantics<parallel>, #tpu.dimension_semantics<arbitrary>], iteration_bounds = array<i64: 1, 1, 1>, scalar_prefetch = 0 : i64, scratch_operands = 1 : i64, tpu.core_type = #tpu.core_type<tc>, window_params = [{transform_indices = @transform_0, window_bounds = array<i64: 32, 256>}, {transform_indices = @transform_1, window_bounds = array<i64: 256, 128>}, {transform_indices = @transform_2, window_bounds = array<i64: 1, 128>}, {transform_indices = @transform_3, window_bounds = array<i64: 32, 128>}, {transform_indices = @transform_4, window_bounds = array<i64: 32, 128>}]} {
    %c0_i32 = arith.constant 0 : i32
    %0 = arith.cmpi eq, %arg2, %c0_i32 : i32
    %1 = arith.extui %0 : i1 to i32
    %c0_i32_0 = arith.constant 0 : i32
    %2 = arith.cmpi ne, %1, %c0_i32_0 : i32
    scf.if %2 {
      %cst_10 = arith.constant 0.000000e+00 : f32
      %12 = vector.broadcast %cst_10 : f32 to vector<32x128xf32>
      %c0_11 = arith.constant 0 : index
      %c0_12 = arith.constant 0 : index
      %13 = vector.load %arg8[%c0_11, %c0_12] : memref<32x128xf32, #tpu.memory_space<vmem>>, vector<32x128xf32>
      tpu.vector_store %arg8[%c0_11, %c0_12], %12 {strides = array<i32>} : memref<32x128xf32, #tpu.memory_space<vmem>>, vector<32x128xf32>,
    } else {
    }
    %c0 = arith.constant 0 : index
    %c0_1 = arith.constant 0 : index
    %3 = vector.load %arg8[%c0, %c0_1] : memref<32x128xf32, #tpu.memory_space<vmem>>, vector<32x128xf32>
    %c0_2 = arith.constant 0 : index
    %c0_3 = arith.constant 0 : index
    %4 = vector.load %arg3[%c0_2, %c0_3] : memref<32x256xbf16, #tpu.memory_space<vmem>>, vector<32x256xbf16>
    %c0_4 = arith.constant 0 : index
    %c0_5 = arith.constant 0 : index
    %5 = vector.load %arg4[%c0_4, %c0_5] : memref<256x128xbf16, #tpu.memory_space<vmem>>, vector<256x128xbf16>
    %cst = arith.constant dense<0.000000e+00> : vector<32x128xf32>
    %6 = tpu.matmul %4, %5, %cst {dimension_numbers = #tpu.dot_dimension_numbers<[1], [0], [0], [1], [0, 0, 1, 1], [], []>} : vector<32x256xbf16>, vector<256x128xbf16>, vector<32x128xf32> -> vector<32x128xf32>
    %7 = arith.addf %3, %6 : vector<32x128xf32>
    %c0_6 = arith.constant 0 : index
    %c0_7 = arith.constant 0 : index
    %8 = vector.load %arg8[%c0_6, %c0_7] : memref<32x128xf32, #tpu.memory_space<vmem>>, vector<32x128xf32>
    tpu.vector_store %arg8[%c0_6, %c0_7], %7 {strides = array<i32>} : memref<32x128xf32, #tpu.memory_space<vmem>>, vector<32x128xf32>,
    %c0_i32_8 = arith.constant 0 : i32
    %9 = arith.cmpi eq, %arg2, %c0_i32_8 : i32
    %10 = arith.extui %9 : i1 to i32
    %c0_i32_9 = arith.constant 0 : i32
    %11 = arith.cmpi ne, %10, %c0_i32_9 : i32
    scf.if %11 {
      %c0_10 = arith.constant 0 : index
      %c0_11 = arith.constant 0 : index
      %12 = vector.load %arg8[%c0_10, %c0_11] : memref<32x128xf32, #tpu.memory_space<vmem>>, vector<32x128xf32>
      %c0_12 = arith.constant 0 : index
      %c0_13 = arith.constant 0 : index
      %13 = vector.load %arg5[%c0_12, %c0_13] : memref<1x128xf32, #tpu.memory_space<vmem>>, vector<1x128xf32>
      %14 = vector.broadcast %13 : vector<1x128xf32> to vector<32x128xf32>
      %15 = arith.addf %12, %14 : vector<32x128xf32>
      %c0_14 = arith.constant 0 : index
      %c0_15 = arith.constant 0 : index
      %16 = vector.load %arg6[%c0_14, %c0_15] : memref<32x128xbf16, #tpu.memory_space<vmem>>, vector<32x128xbf16>
      %17 = arith.extf %16 : vector<32x128xbf16> to vector<32x128xf32>
      %18 = arith.addf %15, %17 : vector<32x128xf32>
      %19 = arith.truncf %18 : vector<32x128xf32> to vector<32x128xbf16>
      %c0_16 = arith.constant 0 : index
      %c0_17 = arith.constant 0 : index
      %20 = vector.load %arg7[%c0_16, %c0_17] : memref<32x128xbf16, #tpu.memory_space<vmem>>, vector<32x128xbf16>
      tpu.vector_store %arg7[%c0_16, %c0_17], %19 {strides = array<i32>} : memref<32x128xbf16, #tpu.memory_space<vmem>>, vector<32x128xbf16>,
    } else {
    }
    return
  }
  func.func @transform_0(%arg0: i32, %arg1: i32, %arg2: i32) -> (i32, i32) {
    %c0_i32 = arith.constant 0 : i32
    return %arg0, %arg2 : i32, i32
  }
  func.func @transform_1(%arg0: i32, %arg1: i32, %arg2: i32) -> (i32, i32) {
    %c0_i32 = arith.constant 0 : i32
    return %arg2, %arg1 : i32, i32
  }
  func.func @transform_2(%arg0: i32, %arg1: i32, %arg2: i32) -> (i32, i32) {
    %c0_i32 = arith.constant 0 : i32
    %c0_i32_0 = arith.constant 0 : i32
    return %c0_i32, %arg1 : i32, i32
  }
  func.func @transform_3(%arg0: i32, %arg1: i32, %arg2: i32) -> (i32, i32) {
    %c0_i32 = arith.constant 0 : i32
    return %arg0, %arg1 : i32, i32
  }
  func.func @transform_4(%arg0: i32, %arg1: i32, %arg2: i32) -> (i32, i32) {
    %c0_i32 = arith.constant 0 : i32
    return %arg0, %arg1 : i32, i32
  }
}

module attributes {stable_mosaic.version = 11 : i64} {
  func.func @_ln_matmul_kernel(%arg0: i32, %arg1: i32, %arg2: memref<2x128xbf16, #tpu.memory_space<vmem>>, %arg3: memref<1x128xf32, #tpu.memory_space<vmem>>, %arg4: memref<1x128xf32, #tpu.memory_space<vmem>>, %arg5: memref<128x10xbf16, #tpu.memory_space<vmem>>, %arg6: memref<1x10xf32, #tpu.memory_space<vmem>>, %arg7: memref<2x10xf32, #tpu.memory_space<vmem>>, %arg8: memref<2x128xbf16, #tpu.memory_space<vmem>>) attributes {dimension_semantics = [#tpu.dimension_semantics<parallel>, #tpu.dimension_semantics<arbitrary>], iteration_bounds = array<i64: 1, 1>, scalar_prefetch = 0 : i64, scratch_operands = 1 : i64, tpu.core_type = #tpu.core_type<tc>, window_params = [{transform_indices = @transform_0, window_bounds = array<i64: 2, 128>}, {pipeline_mode = #tpu.pipeline_mode<synchronous>, transform_indices = @transform_1, window_bounds = array<i64: 1, 128>}, {pipeline_mode = #tpu.pipeline_mode<synchronous>, transform_indices = @transform_2, window_bounds = array<i64: 1, 128>}, {transform_indices = @transform_3, window_bounds = array<i64: 128, 10>}, {transform_indices = @transform_4, window_bounds = array<i64: 1, 10>}, {transform_indices = @transform_5, window_bounds = array<i64: 2, 10>}]} {
    %c0_i32 = arith.constant 0 : i32
    %0 = arith.cmpi eq, %arg1, %c0_i32 : i32
    %1 = arith.extui %0 : i1 to i32
    %c0_i32_0 = arith.constant 0 : i32
    %2 = arith.cmpi ne, %1, %c0_i32_0 : i32
    scf.if %2 {
      %c0_8 = arith.constant 0 : index
      %c0_9 = arith.constant 0 : index
      %10 = vector.load %arg2[%c0_8, %c0_9] : memref<2x128xbf16, #tpu.memory_space<vmem>>, vector<2x128xbf16>
      %11 = arith.extf %10 : vector<2x128xbf16> to vector<2x128xf32>
      %cst_10 = arith.constant dense<0.000000e+00> : vector<2xf32>
      %12 = vector.multi_reduction <add>, %11, %cst_10 [1] : vector<2x128xf32> to vector<2xf32>
      %13 = vector.shape_cast %12 : vector<2xf32> to vector<2x1xf32>
      %cst_11 = arith.constant 1.280000e+02 : f32
      %14 = vector.broadcast %cst_11 : f32 to vector<2x1xf32>
      %15 = arith.divf %13, %14 : vector<2x1xf32>
      %16 = vector.broadcast %15 : vector<2x1xf32> to vector<2x128xf32>
      %17 = arith.subf %11, %16 : vector<2x128xf32>
      %18 = arith.mulf %17, %17 : vector<2x128xf32>
      %cst_12 = arith.constant dense<0.000000e+00> : vector<2xf32>
      %19 = vector.multi_reduction <add>, %18, %cst_12 [1] : vector<2x128xf32> to vector<2xf32>
      %20 = vector.shape_cast %19 : vector<2xf32> to vector<2x1xf32>
      %cst_13 = arith.constant 1.280000e+02 : f32
      %21 = vector.broadcast %cst_13 : f32 to vector<2x1xf32>
      %22 = arith.divf %20, %21 : vector<2x1xf32>
      %23 = vector.broadcast %15 : vector<2x1xf32> to vector<2x128xf32>
      %24 = arith.subf %11, %23 : vector<2x128xf32>
      %cst_14 = arith.constant 9.99999997E-7 : f32
      %25 = vector.broadcast %cst_14 : f32 to vector<2x1xf32>
      %26 = arith.addf %22, %25 : vector<2x1xf32>
      %27 = math.rsqrt %26 : vector<2x1xf32>
      %28 = vector.broadcast %27 : vector<2x1xf32> to vector<2x128xf32>
      %29 = arith.mulf %24, %28 : vector<2x128xf32>
      %c0_15 = arith.constant 0 : index
      %c0_16 = arith.constant 0 : index
      %30 = vector.load %arg3[%c0_15, %c0_16] : memref<1x128xf32, #tpu.memory_space<vmem>>, vector<1x128xf32>
      %31 = vector.broadcast %30 : vector<1x128xf32> to vector<2x128xf32>
      %32 = arith.mulf %29, %31 : vector<2x128xf32>
      %c0_17 = arith.constant 0 : index
      %c0_18 = arith.constant 0 : index
      %33 = vector.load %arg4[%c0_17, %c0_18] : memref<1x128xf32, #tpu.memory_space<vmem>>, vector<1x128xf32>
      %34 = vector.broadcast %33 : vector<1x128xf32> to vector<2x128xf32>
      %35 = arith.addf %32, %34 : vector<2x128xf32>
      %36 = arith.truncf %35 : vector<2x128xf32> to vector<2x128xbf16>
      %c0_19 = arith.constant 0 : index
      %c0_20 = arith.constant 0 : index
      %37 = vector.load %arg8[%c0_19, %c0_20] : memref<2x128xbf16, #tpu.memory_space<vmem>>, vector<2x128xbf16>
      tpu.vector_store %arg8[%c0_19, %c0_20], %36 {strides = array<i32>} : memref<2x128xbf16, #tpu.memory_space<vmem>>, vector<2x128xbf16>,
    } else {
    }
    %c0 = arith.constant 0 : index
    %c0_1 = arith.constant 0 : index
    %3 = vector.load %arg8[%c0, %c0_1] : memref<2x128xbf16, #tpu.memory_space<vmem>>, vector<2x128xbf16>
    %c0_2 = arith.constant 0 : index
    %c0_3 = arith.constant 0 : index
    %4 = vector.load %arg5[%c0_2, %c0_3] : memref<128x10xbf16, #tpu.memory_space<vmem>>, vector<128x10xbf16>
    %cst = arith.constant dense<0.000000e+00> : vector<2x10xf32>
    %5 = tpu.matmul %3, %4, %cst {dimension_numbers = #tpu.dot_dimension_numbers<[1], [0], [0], [1], [0, 0, 1, 1], [], []>} : vector<2x128xbf16>, vector<128x10xbf16>, vector<2x10xf32> -> vector<2x10xf32>
    %c0_4 = arith.constant 0 : index
    %c0_5 = arith.constant 0 : index
    %6 = vector.load %arg6[%c0_4, %c0_5] : memref<1x10xf32, #tpu.memory_space<vmem>>, vector<1x10xf32>
    %7 = vector.broadcast %6 : vector<1x10xf32> to vector<2x10xf32>
    %8 = arith.addf %5, %7 : vector<2x10xf32>
    %c0_6 = arith.constant 0 : index
    %c0_7 = arith.constant 0 : index
    %9 = vector.load %arg7[%c0_6, %c0_7] : memref<2x10xf32, #tpu.memory_space<vmem>>, vector<2x10xf32>
    tpu.vector_store %arg7[%c0_6, %c0_7], %8 {strides = array<i32>} : memref<2x10xf32, #tpu.memory_space<vmem>>, vector<2x10xf32>,
    return
  }
  func.func @transform_0(%arg0: i32, %arg1: i32) -> (i32, i32) {
    %c0_i32 = arith.constant 0 : i32
    %c0_i32_0 = arith.constant 0 : i32
    return %arg0, %c0_i32 : i32, i32
  }
  func.func @transform_1(%arg0: i32, %arg1: i32) -> (i32, i32) {
    %c0_i32 = arith.constant 0 : i32
    %c0_i32_0 = arith.constant 0 : i32
    %c0_i32_1 = arith.constant 0 : i32
    return %c0_i32, %c0_i32_0 : i32, i32
  }
  func.func @transform_2(%arg0: i32, %arg1: i32) -> (i32, i32) {
    %c0_i32 = arith.constant 0 : i32
    %c0_i32_0 = arith.constant 0 : i32
    %c0_i32_1 = arith.constant 0 : i32
    return %c0_i32, %c0_i32_0 : i32, i32
  }
  func.func @transform_3(%arg0: i32, %arg1: i32) -> (i32, i32) {
    %c0_i32 = arith.constant 0 : i32
    %c0_i32_0 = arith.constant 0 : i32
    return %c0_i32, %arg1 : i32, i32
  }
  func.func @transform_4(%arg0: i32, %arg1: i32) -> (i32, i32) {
    %c0_i32 = arith.constant 0 : i32
    %c0_i32_0 = arith.constant 0 : i32
    return %c0_i32, %arg1 : i32, i32
  }
  func.func @transform_5(%arg0: i32, %arg1: i32) -> (i32, i32) {
    %c0_i32 = arith.constant 0 : i32
    return %arg0, %arg1 : i32, i32
  }
}

</mosaic_0001>

<llo_original>
// kernel: vpt_deep_forward.12
$region0: #{vpt_deep_forward.12}
  #allocation0 [shape = 'u32[]', space=smem, size = 0x4, offset = 0x4, fixed_abs, tag = 'smem constant byte address 0x4 - core index']
  #allocation1 [shape = 'u32[144,128]{1,0:T(1,128)}', space=vmem, size = 0x12000, scoped, tag = 'internal scratch']
  #allocation2 [shape = 'f32[8,128]{1,0:T(8,128)}', space=vmem, size = 0x1000, scoped, tag = 'scratch operand']
  %s0 = inlined_call_operand.vmem [shape: bf16[8,192], index: 0, kind: input, shape index: {}]
  %s1 = inlined_call_operand.vmem [shape: bf16[192,128], index: 1, kind: input, shape index: {}]
  %s2 = inlined_call_operand.vmem [shape: f32[1,128], index: 2, kind: input, shape index: {}]
  %s3 = inlined_call_operand.vmem [shape: f32[8,128], index: 3, kind: output, shape index: {}]
  %s4 = sld [smem:[#allocation0]]
  $region30: #{vpt_deep_forward.12} parent=0
    _
  %s6 = ssub.s32 1, %s4
  %s7 = scalar_select 0, %s6, %s4
  // Predicated region
  $region2: #{vpt_deep_forward.12} parent=0 // pred_check
    _
  $region3: #{vpt_deep_forward.12} parent=0 // pred_check_branch
    %9 = sbr.rel (0) target = $region5
  $region4: #{vpt_deep_forward.12} parent=0 // pred_region
    _
  $region5: #{vpt_deep_forward.12} parent=0 // pred_fallthru
    _
  // Predicated region
  $region6: #{vpt_deep_forward.12} parent=0 // pred_check
    _
  $region7: #{vpt_deep_forward.12} parent=0 // pred_check_branch
    %11 = sbr.rel (0) target = $region9
  $region8: #{vpt_deep_forward.12} parent=0 // pred_region
    _
  $region9: #{vpt_deep_forward.12} parent=0 // pred_fallthru
    _
  // Predicated region
  $region10: #{vpt_deep_forward.12} parent=0 // pred_check
    _
  $region11: #{vpt_deep_forward.12} parent=0 // pred_check_branch
    %13 = sbr.rel (0) target = $region13
  $region12: #{vpt_deep_forward.12} parent=0 // pred_region
    _
  $region13: #{vpt_deep_forward.12} parent=0 // pred_fallthru
    _
  %p15 = scmp.eq.s32.totalorder 0, 0
  // Predicated region
  $region14: #{vpt_deep_forward.12} parent=0 // pred_check
    %p16 = pneg %p15
  $region15: #{vpt_deep_forward.12} parent=0 // pred_check_branch
    %18 = sbr.rel (%p16) target = $region17
  $region16: #{vpt_deep_forward.12} parent=0 // pred_region
    %19 = vst [vmem:[#allocation2] sm:$0xff] 0.0
  $region17: #{vpt_deep_forward.12} parent=0 // pred_fallthru
    _
  %v20 = vld [vmem:[#allocation2] sm:$0xff]
  %v21 = vld [vmem:[%s0] sm:$0xff]
  %v22 = vld [vmem:[%s1] sm:$0xf]
  %v23 = vld [vmem:[%s1 + $0x4] sm:$0xf]
  %v24 = vld [vmem:[%s1 + $0x8] sm:$0xf]
  %v25 = vld [vmem:[%s1 + $0xc] sm:$0xf]
  %v26 = vld [vmem:[%s1 + $0x10] sm:$0xf]
  %v27 = vld [vmem:[%s1 + $0x14] sm:$0xf]
  %v28 = vld [vmem:[%s1 + $0x18] sm:$0xf]
  %v29 = vld [vmem:[%s1 + $0x1c] sm:$0xf]
  %v30 = vld [vmem:[%s1 + $0x20] sm:$0xf]
  %v31 = vld [vmem:[%s1 + $0x24] sm:$0xf]
  %v32 = vld [vmem:[%s1 + $0x28] sm:$0xf]
  %v33 = vld [vmem:[%s1 + $0x2c] sm:$0xf]
  %v34 = vld [vmem:[%s1 + $0x30] sm:$0xf]
  %v35 = vld [vmem:[%s1 + $0x34] sm:$0xf]
  %v36 = vld [vmem:[%s1 + $0x38] sm:$0xf]
  %v37 = vld [vmem:[%s1 + $0x3c] sm:$0xf]
  %v38 = vld [vmem:[%s1 + $0x40] sm:$0xf]
  %v39 = vld [vmem:[%s1 + $0x44] sm:$0xf]
  %v40 = vld [vmem:[%s1 + $0x48] sm:$0xf]
  %v41 = vld [vmem:[%s1 + $0x4c] sm:$0xf]
  %v42 = vld [vmem:[%s1 + $0x50] sm:$0xf]
  %v43 = vld [vmem:[%s1 + $0x54] sm:$0xf]
  %v44 = vld [vmem:[%s1 + $0x58] sm:$0xf]
  %v45 = vld [vmem:[%s1 + $0x5c] sm:$0xf]
  %v47 = vunpack.c.l.b16 %v21
  %v48 = vunpack.c.h.b16 %v21
  %v49 = vpack.c.b16 %v47, %v47
  %v50 = vpack.c.b16 %v48, %v48
  %v76 = vunpack.c.l.b16 %v22
  %v77 = vunpack.c.l.b16 %v23
  %v78 = vunpack.c.l.b16 %v24
  %v79 = vunpack.c.l.b16 %v25
  %v80 = vunpack.c.l.b16 %v26
  %v81 = vunpack.c.l.b16 %v27
  %v82 = vunpack.c.l.b16 %v28
  %v83 = vunpack.c.l.b16 %v29
  %v84 = vunpack.c.l.b16 %v30
  %v85 = vunpack.c.l.b16 %v31
  %v86 = vunpack.c.l.b16 %v32
  %v87 = vunpack.c.l.b16 %v33
  %v88 = vunpack.c.l.b16 %v34
  %v89 = vunpack.c.l.b16 %v35
  %v90 = vunpack.c.l.b16 %v36
  %v91 = vunpack.c.l.b16 %v37
  %v92 = vunpack.c.l.b16 %v38
  %v93 = vunpack.c.l.b16 %v39
  %v94 = vunpack.c.l.b16 %v40
  %v95 = vunpack.c.l.b16 %v41
  %v96 = vunpack.c.l.b16 %v42
  %v97 = vunpack.c.l.b16 %v43
  %v98 = vunpack.c.l.b16 %v44
  %v99 = vunpack.c.l.b16 %v45
  %v100 = vpack.c.b16 %v77, %v76
  %v101 = vpack.c.b16 %v79, %v78
  %v102 = vpack.c.b16 %v81, %v80
  %v103 = vpack.c.b16 %v83, %v82
  %v104 = vpack.c.b16 %v85, %v84
  %v105 = vpack.c.b16 %v87, %v86
  %v106 = vpack.c.b16 %v89, %v88
  %v107 = vpack.c.b16 %v91, %v90
  %v108 = vpack.c.b16 %v93, %v92
  %v109 = vpack.c.b16 %v95, %v94
  %v110 = vpack.c.b16 %v97, %v96
  %v111 = vpack.c.b16 %v99, %v98
  %vm124 = vcmask 523264
  %v126 = vsel %vm124, %v50, 0
  %128 = vmatprep.subr.bf16.mxu0 0
  %129 = vmatpush1.bf16.msra.mxu0 %v107
  %130 = vmatprep.subr.bf16.mxu0 0
  %131 = vmatpush1.bf16.msra.mxu0 %v106
  %132 = vmatprep.subr.bf16.mxu0 0
  %133 = vmatpush1.bf16.msra.mxu0 %v105
  %134 = vmatprep.subr.bf16.mxu0 0
  %135 = vmatpush1.bf16.msra.mxu0 %v104
  %136 = vmatprep.subr.bf16.mxu0 0
  %137 = vmatpush1.bf16.msra.mxu0 %v103
  %138 = vmatprep.subr.bf16.mxu0 0
  %139 = vmatpush1.bf16.msra.mxu0 %v102
  %140 = vmatprep.subr.bf16.mxu0 0
  %141 = vmatpush1.bf16.msra.mxu0 %v101
  %142 = vmatprep.subr.bf16.mxu0 0
  %143 = vmatpush1.bf16.msra.mxu0 %v100
  %144 = vmatprep.subr.bf16.mxu0 0
  %145 = vmatpush2.bf16.msra.mxu0 0
  %146 = vmatprep.subr.bf16.mxu0 0
  %147 = vmatpush2.bf16.msra.mxu0 0
  %148 = vmatprep.subr.bf16.mxu0 0
  %149 = vmatpush2.bf16.msra.mxu0 0
  %150 = vmatprep.subr.bf16.mxu0 0
  %151 = vmatpush2.bf16.msra.mxu0 0
  %152 = vmatprep.subr.bf16.mxu0 0
  %153 = vmatpush2.bf16.msra.mxu0 %v111
  %154 = vmatprep.subr.bf16.mxu0 0
  %155 = vmatpush2.bf16.msra.mxu0 %v110
  %156 = vmatprep.subr.bf16.mxu0 0
  %157 = vmatpush2.bf16.msra.mxu0 %v109
  %158 = vmatprep.subr.bf16.mxu0 0
  %159 = vmatpush2.bf16.msra.mxu0 %v108
  %160 = vmatprep.mubr.bf16.mxu0 %v126
  %161 = vmatmul.mubr.bf16.gmra.mxu0 %v49
  %v162 = vpop.f32.mrf.mxu0
  %v163 = vadd.f32 0.0, %v162
  %v164 = vpop.f32.mrf.mxu0
  %v165 = vpop.f32.mrf.mxu0
  %v166 = vpop.f32.mrf.mxu0
  %167 = vdwg.mxu0
  %v168 = vadd.f32 %v20, %v163
  %169 = vst [vmem:[#allocation2] sm:$0xff] %v168
  // Predicated region
  $region18: #{vpt_deep_forward.12} parent=0 // pred_check
    %p170 = pneg %p15
  $region19: #{vpt_deep_forward.12} parent=0 // pred_check_branch
    %172 = sbr.rel (%p170) target = $region21
  $region20: #{vpt_deep_forward.12} parent=0 // pred_region
    %v173 = vld [vmem:[#allocation2] sm:$0xff]
    %v174 = vld [vmem:[%s2] sm:$0x1]
    %v176 = vlaneseq
    %v177 = vshrl.u32 %v176, 7
    %v178 = vsub.s32 0, %v177
    %v179 = vrot.slane %v174, %v178
    %v181 = vadd.f32 %v173, %v179
    %182 = vst [vmem:[%s3] sm:$0xff] %v181
  $region21: #{vpt_deep_forward.12} parent=0 // pred_fallthru
    _
  // Predicated region
  $region22: #{vpt_deep_forward.12} parent=0 // pred_check
    _
  $region23: #{vpt_deep_forward.12} parent=0 // pred_check_branch
    %184 = sbr.rel (0) target = $region25
  $region24: #{vpt_deep_forward.12} parent=0 // pred_region
    _
  $region25: #{vpt_deep_forward.12} parent=0 // pred_fallthru
    _
  // Predicated region
  $region26: #{vpt_deep_forward.12} parent=0 // pred_check
    _
  $region27: #{vpt_deep_forward.12} parent=0 // pred_check_branch
    %186 = sbr.rel (0) target = $region29
  $region28: #{vpt_deep_forward.12} parent=0 // pred_region
    _
  $region29: #{vpt_deep_forward.12} parent=0 // pred_fallthru
    _

// kernel: vpt_deep_forward.15
$region0: #{vpt_deep_forward.15}
  #allocation0 [shape = 'u32[]', space=smem, size = 0x4, offset = 0x4, fixed_abs, tag = 'smem constant byte address 0x4 - core index']
  #allocation1 [shape = 'u32[144,128]{1,0:T(1,128)}', space=vmem, size = 0x12000, scoped, tag = 'internal scratch']
  #allocation2 [shape = 'f32[32,128]{1,0:T(8,128)}', space=vmem, size = 0x4000, scoped, tag = 'scratch operand']
  %s0 = inlined_call_operand.vmem [shape: bf16[32,128], index: 0, kind: input, shape index: {}]
  %s1 = inlined_call_operand.vmem [shape: bf16[128,128], index: 1, kind: input, shape index: {}]
  %s2 = inlined_call_operand.vmem [shape: f32[1,128], index: 2, kind: input, shape index: {}]
  %s3 = inlined_call_operand.vmem [shape: bf16[32,128], index: 3, kind: input, shape index: {}]
  %s4 = inlined_call_operand.vmem [shape: bf16[32,128], index: 4, kind: output, shape index: {}]
  %s5 = sld [smem:[#allocation0]]
  $region34: #{vpt_deep_forward.15} parent=0
    _
  %s7 = ssub.s32 1, %s5
  %s8 = scalar_select 0, %s7, %s5
  // Predicated region
  $region2: #{vpt_deep_forward.15} parent=0 // pred_check
    _
  $region3: #{vpt_deep_forward.15} parent=0 // pred_check_branch
    %10 = sbr.rel (0) target = $region5
  $region4: #{vpt_deep_forward.15} parent=0 // pred_region
    _
  $region5: #{vpt_deep_forward.15} parent=0 // pred_fallthru
    _
  // Predicated region
  $region6: #{vpt_deep_forward.15} parent=0 // pred_check
    _
  $region7: #{vpt_deep_forward.15} parent=0 // pred_check_branch
    %12 = sbr.rel (0) target = $region9
  $region8: #{vpt_deep_forward.15} parent=0 // pred_region
    _
  $region9: #{vpt_deep_forward.15} parent=0 // pred_fallthru
    _
  // Predicated region
  $region10: #{vpt_deep_forward.15} parent=0 // pred_check
    _
  $region11: #{vpt_deep_forward.15} parent=0 // pred_check_branch
    %14 = sbr.rel (0) target = $region13
  $region12: #{vpt_deep_forward.15} parent=0 // pred_region
    _
  $region13: #{vpt_deep_forward.15} parent=0 // pred_fallthru
    _
  // Predicated region
  $region14: #{vpt_deep_forward.15} parent=0 // pred_check
    _
  $region15: #{vpt_deep_forward.15} parent=0 // pred_check_branch
    %16 = sbr.rel (0) target = $region17
  $region16: #{vpt_deep_forward.15} parent=0 // pred_region
    _
  $region17: #{vpt_deep_forward.15} parent=0 // pred_fallthru
    _
  %p18 = scmp.eq.s32.totalorder 0, 0
  // Predicated region
  $region18: #{vpt_deep_forward.15} parent=0 // pred_check
    %p19 = pneg %p18
  $region19: #{vpt_deep_forward.15} parent=0 // pred_check_branch
    %21 = sbr.rel (%p19) target = $region21
  $region20: #{vpt_deep_forward.15} parent=0 // pred_region
    %22 = vst [vmem:[#allocation2] sm:$0xff] 0.0
    %23 = vst [vmem:[#allocation2 + $0x8] sm:$0xff] 0.0
    %24 = vst [vmem:[#allocation2 + $0x10] sm:$0xff] 0.0
    %25 = vst [vmem:[#allocation2 + $0x18] sm:$0xff] 0.0
  $region21: #{vpt_deep_forward.15} parent=0 // pred_fallthru
    _
  %v26 = vld [vmem:[#allocation2] sm:$0xff]
  %v27 = vld [vmem:[#allocation2 + $0x8] sm:$0xff]
  %v28 = vld [vmem:[#allocation2 + $0x10] sm:$0xff]
  %v29 = vld [vmem:[#allocation2 + $0x18] sm:$0xff]
  %v30 = vld [vmem:[%s0] sm:$0xf]
  %v31 = vld [vmem:[%s0 + $0x4] sm:$0xf]
  %v32 = vld [vmem:[%s0 + $0x8] sm:$0xf]
  %v33 = vld [vmem:[%s0 + $0xc] sm:$0xf]
  %v34 = vld [vmem:[%s1] sm:$0xf]
  %v35 = vld [vmem:[%s1 + $0x4] sm:$0xf]
  %v36 = vld [vmem:[%s1 + $0x8] sm:$0xf]
  %v37 = vld [vmem:[%s1 + $0xc] sm:$0xf]
  %v38 = vld [vmem:[%s1 + $0x10] sm:$0xf]
  %v39 = vld [vmem:[%s1 + $0x14] sm:$0xf]
  %v40 = vld [vmem:[%s1 + $0x18] sm:$0xf]
  %v41 = vld [vmem:[%s1 + $0x1c] sm:$0xf]
  %v42 = vld [vmem:[%s1 + $0x20] sm:$0xf]
  %v43 = vld [vmem:[%s1 + $0x24] sm:$0xf]
  %v44 = vld [vmem:[%s1 + $0x28] sm:$0xf]
  %v45 = vld [vmem:[%s1 + $0x2c] sm:$0xf]
  %v46 = vld [vmem:[%s1 + $0x30] sm:$0xf]
  %v47 = vld [vmem:[%s1 + $0x34] sm:$0xf]
  %v48 = vld [vmem:[%s1 + $0x38] sm:$0xf]
  %v49 = vld [vmem:[%s1 + $0x3c] sm:$0xf]
  %v54 = vunpack.c.l.b16 %v30
  %v55 = vunpack.c.l.b16 %v31
  %v56 = vunpack.c.l.b16 %v32
  %v57 = vunpack.c.l.b16 %v33
  %v58 = vpack.c.b16 %v55, %v54
  %v59 = vpack.c.b16 %v57, %v56
  %v78 = vunpack.c.l.b16 %v34
  %v79 = vunpack.c.l.b16 %v35
  %v80 = vunpack.c.l.b16 %v36
  %v81 = vunpack.c.l.b16 %v37
  %v82 = vunpack.c.l.b16 %v38
  %v83 = vunpack.c.l.b16 %v39
  %v84 = vunpack.c.l.b16 %v40
  %v85 = vunpack.c.l.b16 %v41
  %v86 = vunpack.c.l.b16 %v42
  %v87 = vunpack.c.l.b16 %v43
  %v88 = vunpack.c.l.b16 %v44
  %v89 = vunpack.c.l.b16 %v45
  %v90 = vunpack.c.l.b16 %v46
  %v91 = vunpack.c.l.b16 %v47
  %v92 = vunpack.c.l.b16 %v48
  %v93 = vunpack.c.l.b16 %v49
  %v94 = vpack.c.b16 %v79, %v78
  %v95 = vpack.c.b16 %v81, %v80
  %v96 = vpack.c.b16 %v83, %v82
  %v97 = vpack.c.b16 %v85, %v84
  %v98 = vpack.c.b16 %v87, %v86
  %v99 = vpack.c.b16 %v89, %v88
  %v100 = vpack.c.b16 %v91, %v90
  %v101 = vpack.c.b16 %v93, %v92
  %110 = vmatprep.subr.bf16.mxu0 0
  %111 = vmatpush1.bf16.msra.mxu0 %v101
  %112 = vmatprep.subr.bf16.mxu0 0
  %113 = vmatpush1.bf16.msra.mxu0 %v100
  %114 = vmatprep.subr.bf16.mxu0 0
  %115 = vmatpush1.bf16.msra.mxu0 %v99
  %116 = vmatprep.subr.bf16.mxu0 0
  %117 = vmatpush1.bf16.msra.mxu0 %v98
  %118 = vmatprep.subr.bf16.mxu0 0
  %119 = vmatpush1.bf16.msra.mxu0 %v97
  %120 = vmatprep.subr.bf16.mxu0 0
  %121 = vmatpush1.bf16.msra.mxu0 %v96
  %122 = vmatprep.subr.bf16.mxu0 0
  %123 = vmatpush1.bf16.msra.mxu0 %v95
  %124 = vmatprep.subr.bf16.mxu0 0
  %125 = vmatpush1.bf16.msra.mxu0 %v94
  %126 = vmatprep.subr.bf16.mxu0 0
  %127 = vmatpush2.bf16.msra.mxu0 0
  %128 = vmatprep.subr.bf16.mxu0 0
  %129 = vmatpush2.bf16.msra.mxu0 0
  %130 = vmatprep.subr.bf16.mxu0 0
  %131 = vmatpush2.bf16.msra.mxu0 0
  %132 = vmatprep.subr.bf16.mxu0 0
  %133 = vmatpush2.bf16.msra.mxu0 0
  %134 = vmatprep.subr.bf16.mxu0 0
  %135 = vmatpush2.bf16.msra.mxu0 0
  %136 = vmatprep.subr.bf16.mxu0 0
  %137 = vmatpush2.bf16.msra.mxu0 0
  %138 = vmatprep.subr.bf16.mxu0 0
  %139 = vmatpush2.bf16.msra.mxu0 0
  %140 = vmatprep.subr.bf16.mxu0 0
  %141 = vmatpush2.bf16.msra.mxu0 0
  %142 = vmatprep.mubr.bf16.mxu0 0
  %143 = vmatmul.mubr.bf16.gmra.mxu0 %v58
  %v144 = vpop.f32.mrf.mxu0
  %v145 = vadd.f32 0.0, %v144
  %v146 = vpop.f32.mrf.mxu0
  %v147 = vpop.f32.mrf.mxu0
  %v148 = vadd.f32 0.0, %v147
  %v149 = vpop.f32.mrf.mxu0
  %150 = vmatprep.mubr.bf16.mxu0 0
  %151 = vmatmul.mubr.bf16.gmra.mxu0 %v59
  %v152 = vpop.f32.mrf.mxu0
  %v153 = vadd.f32 0.0, %v152
  %v154 = vpop.f32.mrf.mxu0
  %v155 = vpop.f32.mrf.mxu0
  %v156 = vadd.f32 0.0, %v155
  %v157 = vpop.f32.mrf.mxu0
  %158 = vdwg.mxu0
  %v159 = vadd.f32 %v26, %v145
  %v160 = vadd.f32 %v27, %v148
  %v161 = vadd.f32 %v28, %v153
  %v162 = vadd.f32 %v29, %v156
  %163 = vst [vmem:[#allocation2] sm:$0xff] %v159
  %164 = vst [vmem:[#allocation2 + $0x8] sm:$0xff] %v160
  %165 = vst [vmem:[#allocation2 + $0x10] sm:$0xff] %v161
  %166 = vst [vmem:[#allocation2 + $0x18] sm:$0xff] %v162
  // Predicated region
  $region22: #{vpt_deep_forward.15} parent=0 // pred_check
    %p167 = pneg %p18
  $region23: #{vpt_deep_forward.15} parent=0 // pred_check_branch
    %169 = sbr.rel (%p167) target = $region25
  $region24: #{vpt_deep_forward.15} parent=0 // pred_region
    %v170 = vld [vmem:[#allocation2] sm:$0xff]
    %v171 = vld [vmem:[#allocation2 + $0x8] sm:$0xff]
    %v172 = vld [vmem:[#allocation2 + $0x10] sm:$0xff]
    %v173 = vld [vmem:[#allocation2 + $0x18] sm:$0xff]
    %v174 = vld [vmem:[%s2] sm:$0x1]
    %v176 = vlaneseq
    %v177 = vshrl.u32 %v176, 7
    %v178 = vsub.s32 0, %v177
    %v179 = vrot.slane %v174, %v178
    %v181 = vadd.f32 %v170, %v179
    %v182 = vadd.f32 %v171, %v179
    %v183 = vadd.f32 %v172, %v179
    %v184 = vadd.f32 %v173, %v179
    %v185 = vld [vmem:[%s3] sm:$0xf]
    %v186 = vld [vmem:[%s3 + $0x4] sm:$0xf]
    %v187 = vld [vmem:[%s3 + $0x8] sm:$0xf]
    %v188 = vld [vmem:[%s3 + $0xc] sm:$0xf]
    %v189 = vunpack.c.l.bf16 %v185
    %v190 = vunpack.c.l.bf16 %v186
    %v191 = vunpack.c.l.bf16 %v187
    %v192 = vunpack.c.l.bf16 %v188
    %v193 = vadd.f32 %v181, %v189
    %v194 = vadd.f32 %v182, %v190
    %v195 = vadd.f32 %v183, %v191
    %v196 = vadd.f32 %v184, %v192
    %v197 = vpack.c.bf16 %v194, %v193
    %v198 = vpack.c.bf16 %v196, %v195
    %v201 = vunpack.c.l.b16 %v197
    %v202 = vunpack.c.h.b16 %v197
    %v203 = vunpack.c.l.b16 %v198
    %v204 = vunpack.c.h.b16 %v198
    %v205 = vpack.c.b16 %v201, %v201
    %v206 = vpack.c.b16 %v202, %v202
    %v207 = vpack.c.b16 %v203, %v203
    %v208 = vpack.c.b16 %v204, %v204
    %213 = vst [vmem:[%s4] sm:$0xf] %v205
    %214 = vst [vmem:[%s4 + $0x4] sm:$0xf] %v206
    %215 = vst [vmem:[%s4 + $0x8] sm:$0xf] %v207
    %216 = vst [vmem:[%s4 + $0xc] sm:$0xf] %v208
  $region25: #{vpt_deep_forward.15} parent=0 // pred_fallthru
    _
  // Predicated region
  $region26: #{vpt_deep_forward.15} parent=0 // pred_check
    _
  $region27: #{vpt_deep_forward.15} parent=0 // pred_check_branch
    %218 = sbr.rel (0) target = $region29
  $region28: #{vpt_deep_forward.15} parent=0 // pred_region
    _
  $region29: #{vpt_deep_forward.15} parent=0 // pred_fallthru
    _
  // Predicated region
  $region30: #{vpt_deep_forward.15} parent=0 // pred_check
    _
  $region31: #{vpt_deep_forward.15} parent=0 // pred_check_branch
    %220 = sbr.rel (0) target = $region33
  $region32: #{vpt_deep_forward.15} parent=0 // pred_region
    _
  $region33: #{vpt_deep_forward.15} parent=0 // pred_fallthru
    _

// kernel: vpt_deep_forward.13
$region0: #{vpt_deep_forward.13}
  #allocation0 [shape = 'u32[]', space=smem, size = 0x4, offset = 0x4, fixed_abs, tag = 'smem constant byte address 0x4 - core index']
  #allocation1 [shape = 'u32[144,128]{1,0:T(1,128)}', space=vmem, size = 0x12000, scoped, tag = 'internal scratch']
  #allocation2 [shape = 'bf16[32,128]{1,0:T(8,128)(2,1)}', space=vmem, size = 0x2000, scoped, tag = 'scratch operand']
  %s0 = inlined_call_operand.vmem [shape: bf16[32,128], index: 0, kind: input, shape index: {}]
  %s1 = inlined_call_operand.vmem [shape: f32[1,128], index: 1, kind: input, shape index: {}]
  %s2 = inlined_call_operand.vmem [shape: f32[1,128], index: 2, kind: input, shape index: {}]
  %s3 = inlined_call_operand.vmem [shape: bf16[128,384], index: 3, kind: input, shape index: {}]
  %s4 = inlined_call_operand.vmem [shape: f32[1,384], index: 4, kind: input, shape index: {}]
  %s5 = inlined_call_operand.vmem [shape: bf16[32,384], index: 5, kind: output, shape index: {}]
  %s6 = sld [smem:[#allocation0]]
  $region34: #{vpt_deep_forward.13} parent=0
    _
  %s8 = ssub.s32 1, %s6
  %s9 = scalar_select 0, %s8, %s6
  // Predicated region
  $region2: #{vpt_deep_forward.13} parent=0 // pred_check
    _
  $region3: #{vpt_deep_forward.13} parent=0 // pred_check_branch
    %11 = sbr.rel (0) target = $region5
  $region4: #{vpt_deep_forward.13} parent=0 // pred_region
    _
  $region5: #{vpt_deep_forward.13} parent=0 // pred_fallthru
    _
  // Predicated region
  $region6: #{vpt_deep_forward.13} parent=0 // pred_check
    _
  $region7: #{vpt_deep_forward.13} parent=0 // pred_check_branch
    %13 = sbr.rel (0) target = $region9
  $region8: #{vpt_deep_forward.13} parent=0 // pred_region
    _
  $region9: #{vpt_deep_forward.13} parent=0 // pred_fallthru
    _
  // Predicated region
  $region10: #{vpt_deep_forward.13} parent=0 // pred_check
    _
  $region11: #{vpt_deep_forward.13} parent=0 // pred_check_branch
    %15 = sbr.rel (0) target = $region13
  $region12: #{vpt_deep_forward.13} parent=0 // pred_region
    _
  $region13: #{vpt_deep_forward.13} parent=0 // pred_fallthru
    _
  // Predicated region
  $region14: #{vpt_deep_forward.13} parent=0 // pred_check
    _
  $region15: #{vpt_deep_forward.13} parent=0 // pred_check_branch
    %17 = sbr.rel (0) target = $region17
  $region16: #{vpt_deep_forward.13} parent=0 // pred_region
    _
  $region17: #{vpt_deep_forward.13} parent=0 // pred_fallthru
    _
  // Predicated region
  $region18: #{vpt_deep_forward.13} parent=0 // pred_check
    _
  $region19: #{vpt_deep_forward.13} parent=0 // pred_check_branch
    %19 = sbr.rel (0) target = $region21
  $region20: #{vpt_deep_forward.13} parent=0 // pred_region
    _
  $region21: #{vpt_deep_forward.13} parent=0 // pred_fallthru
    _
  %p21 = scmp.eq.s32.totalorder 0, 0
  // Predicated region
  $region22: #{vpt_deep_forward.13} parent=0 // pred_check
    %p22 = pneg %p21
  $region23: #{vpt_deep_forward.13} parent=0 // pred_check_branch
    %24 = sbr.rel (%p22) target = $region25
  $region24: #{vpt_deep_forward.13} parent=0 // pred_region
    %v25 = vld [vmem:[%s0] sm:$0xf]
    %v26 = vld [vmem:[%s0 + $0x4] sm:$0xf]
    %v27 = vld [vmem:[%s0 + $0x8] sm:$0xf]
    %v28 = vld [vmem:[%s0 + $0xc] sm:$0xf]
    %v29 = vunpack.c.l.bf16 %v25
    %v30 = vunpack.c.l.bf16 %v26
    %v31 = vunpack.c.l.bf16 %v27
    %v32 = vunpack.c.l.bf16 %v28
    %33 = vadd.xlane.f32.xlu0 %v29
    %v34 = vpop.xlane.xlu0 %33
    %35 = vadd.xlane.f32.xlu0 %v30
    %v36 = vpop.xlane.xlu0 %35
    %37 = vadd.xlane.f32.xlu0 %v31
    %v38 = vpop.xlane.xlu0 %37
    %39 = vadd.xlane.f32.xlu0 %v32
    %v40 = vpop.xlane.xlu0 %39
    %v41 = vrcp.pop 128.0
    %v42 = vmul.f32 %v34, %v41
    %v43 = vmul.f32 %v36, %v41
    %v44 = vmul.f32 %v38, %v41
    %v45 = vmul.f32 %v40, %v41
    %v46 = vsub.f32 %v29, %v42
    %v47 = vsub.f32 %v30, %v43
    %v48 = vsub.f32 %v31, %v44
    %v49 = vsub.f32 %v32, %v45
    %v50 = vmul.f32 %v46, %v46
    %v51 = vmul.f32 %v47, %v47
    %v52 = vmul.f32 %v48, %v48
    %v53 = vmul.f32 %v49, %v49
    %54 = vadd.xlane.f32.xlu0 %v50
    %v55 = vpop.xlane.xlu0 %54
    %56 = vadd.xlane.f32.xlu0 %v51
    %v57 = vpop.xlane.xlu0 %56
    %58 = vadd.xlane.f32.xlu0 %v52
    %v59 = vpop.xlane.xlu0 %58
    %60 = vadd.xlane.f32.xlu0 %v53
    %v61 = vpop.xlane.xlu0 %60
    %v62 = vmul.f32 %v55, %v41
    %v63 = vmul.f32 %v57, %v41
    %v64 = vmul.f32 %v59, %v41
    %v65 = vmul.f32 %v61, %v41
    %v66 = vadd.f32 %v62, 1e-06
    %v67 = vadd.f32 %v63, 1e-06
    %v68 = vadd.f32 %v64, 1e-06
    %v69 = vadd.f32 %v65, 1e-06
    %v70 = vrsqrt.pop %v66
    %v71 = vrsqrt.pop %v67
    %v72 = vrsqrt.pop %v68
    %v73 = vrsqrt.pop %v69
    %v74 = vmul.f32 %v46, %v70
    %v75 = vmul.f32 %v47, %v71
    %v76 = vmul.f32 %v48, %v72
    %v77 = vmul.f32 %v49, %v73
    %v78 = vld [vmem:[%s1] sm:$0x1]
    %v80 = vlaneseq
    %v81 = vshrl.u32 %v80, 7
    %v82 = vsub.s32 0, %v81
    %v83 = vrot.slane %v78, %v82
    %v85 = vmul.f32 %v74, %v83
    %v86 = vmul.f32 %v75, %v83
    %v87 = vmul.f32 %v76, %v83
    %v88 = vmul.f32 %v77, %v83
    %v89 = vld [vmem:[%s2] sm:$0x1]
    %v91 = vlaneseq
    %v92 = vshrl.u32 %v91, 7
    %v93 = vsub.s32 0, %v92
    %v94 = vrot.slane %v89, %v93
    %v96 = vadd.f32 %v85, %v94
    %v97 = vadd.f32 %v86, %v94
    %v98 = vadd.f32 %v87, %v94
    %v99 = vadd.f32 %v88, %v94
    %v100 = vpack.c.bf16 %v97, %v96
    %v101 = vpack.c.bf16 %v99, %v98
    %v104 = vunpack.c.l.b16 %v100
    %v105 = vunpack.c.h.b16 %v100
    %v106 = vunpack.c.l.b16 %v101
    %v107 = vunpack.c.h.b16 %v101
    %v108 = vpack.c.b16 %v104, %v104
    %v109 = vpack.c.b16 %v105, %v105
    %v110 = vpack.c.b16 %v106, %v106
    %v111 = vpack.c.b16 %v107, %v107
    %116 = vst [vmem:[#allocation2] sm:$0xf] %v108
    %117 = vst [vmem:[#allocation2 + $0x4] sm:$0xf] %v109
    %118 = vst [vmem:[#allocation2 + $0x8] sm:$0xf] %v110
    %119 = vst [vmem:[#allocation2 + $0xc] sm:$0xf] %v111
  $region25: #{vpt_deep_forward.13} parent=0 // pred_fallthru
    _
  %v120 = vld [vmem:[#allocation2] sm:$0xf]
  %v121 = vld [vmem:[#allocation2 + $0x4] sm:$0xf]
  %v122 = vld [vmem:[#allocation2 + $0x8] sm:$0xf]
  %v123 = vld [vmem:[#allocation2 + $0xc] sm:$0xf]
  %v124 = vld [vmem:[%s3] sm:$0xff]
  %v125 = vld [vmem:[%s3 + $0x8] sm:$0xf]
  %v126 = vld [vmem:[%s3 + $0xc] sm:$0xff]
  %v127 = vld [vmem:[%s3 + $0x14] sm:$0xf]
  %v128 = vld [vmem:[%s3 + $0x18] sm:$0xff]
  %v129 = vld [vmem:[%s3 + $0x20] sm:$0xf]
  %v130 = vld [vmem:[%s3 + $0x24] sm:$0xff]
  %v131 = vld [vmem:[%s3 + $0x2c] sm:$0xf]
  %v132 = vld [vmem:[%s3 + $0x30] sm:$0xff]
  %v133 = vld [vmem:[%s3 + $0x38] sm:$0xf]
  %v134 = vld [vmem:[%s3 + $0x3c] sm:$0xff]
  %v135 = vld [vmem:[%s3 + $0x44] sm:$0xf]
  %v136 = vld [vmem:[%s3 + $0x48] sm:$0xff]
  %v137 = vld [vmem:[%s3 + $0x50] sm:$0xf]
  %v138 = vld [vmem:[%s3 + $0x54] sm:$0xff]
  %v139 = vld [vmem:[%s3 + $0x5c] sm:$0xf]
  %v140 = vld [vmem:[%s3 + $0x60] sm:$0xff]
  %v141 = vld [vmem:[%s3 + $0x68] sm:$0xf]
  %v142 = vld [vmem:[%s3 + $0x6c] sm:$0xff]
  %v143 = vld [vmem:[%s3 + $0x74] sm:$0xf]
  %v144 = vld [vmem:[%s3 + $0x78] sm:$0xff]
  %v145 = vld [vmem:[%s3 + $0x80] sm:$0xf]
  %v146 = vld [vmem:[%s3 + $0x84] sm:$0xff]
  %v147 = vld [vmem:[%s3 + $0x8c] sm:$0xf]
  %v148 = vld [vmem:[%s3 + $0x90] sm:$0xff]
  %v149 = vld [vmem:[%s3 + $0x98] sm:$0xf]
  %v150 = vld [vmem:[%s3 + $0x9c] sm:$0xff]
  %v151 = vld [vmem:[%s3 + $0xa4] sm:$0xf]
  %v152 = vld [vmem:[%s3 + $0xa8] sm:$0xff]
  %v153 = vld [vmem:[%s3 + $0xb0] sm:$0xf]
  %v154 = vld [vmem:[%s3 + $0xb4] sm:$0xff]
  %v155 = vld [vmem:[%s3 + $0xbc] sm:$0xf]
  %v156 = vld [vmem:[%s4] sm:$0x7]
  %v158 = vlaneseq
  %v159 = vshrl.u32 %v158, 7
  %v160 = vsub.s32 0, %v159
  %v161 = vrot.slane %v156, %v160
  %v162 = vlaneseq
  %v163 = vshrl.u32 %v162, 7
  %v164 = vsub.s32 1, %v163
  %v165 = vrot.slane %v156, %v164
  %v166 = vlaneseq
  %v167 = vshrl.u32 %v166, 7
  %v168 = vsub.s32 2, %v167
  %v169 = vrot.slane %v156, %v168
  %v177 = vunpack.c.l.b16 %v120
  %v178 = vunpack.c.l.b16 %v121
  %v179 = vunpack.c.l.b16 %v122
  %v180 = vunpack.c.l.b16 %v123
  %v181 = vpack.c.b16 %v178, %v177
  %v182 = vpack.c.b16 %v180, %v179
  %v217 = vunpack.c.l.b16 %v124
  %v218 = vunpack.c.h.b16 %v124
  %v219 = vunpack.c.l.b16 %v125
  %v220 = vunpack.c.l.b16 %v126
  %v221 = vunpack.c.h.b16 %v126
  %v222 = vunpack.c.l.b16 %v127
  %v223 = vunpack.c.l.b16 %v128
  %v224 = vunpack.c.h.b16 %v128
  %v225 = vunpack.c.l.b16 %v129
  %v226 = vunpack.c.l.b16 %v130
  %v227 = vunpack.c.h.b16 %v130
  %v228 = vunpack.c.l.b16 %v131
  %v229 = vunpack.c.l.b16 %v132
  %v230 = vunpack.c.h.b16 %v132
  %v231 = vunpack.c.l.b16 %v133
  %v232 = vunpack.c.l.b16 %v134
  %v233 = vunpack.c.h.b16 %v134
  %v234 = vunpack.c.l.b16 %v135
  %v235 = vunpack.c.l.b16 %v136
  %v236 = vunpack.c.h.b16 %v136
  %v237 = vunpack.c.l.b16 %v137
  %v238 = vunpack.c.l.b16 %v138
  %v239 = vunpack.c.h.b16 %v138
  %v240 = vunpack.c.l.b16 %v139
  %v241 = vunpack.c.l.b16 %v140
  %v242 = vunpack.c.h.b16 %v140
  %v243 = vunpack.c.l.b16 %v141
  %v244 = vunpack.c.l.b16 %v142
  %v245 = vunpack.c.h.b16 %v142
  %v246 = vunpack.c.l.b16 %v143
  %v247 = vunpack.c.l.b16 %v144
  %v248 = vunpack.c.h.b16 %v144
  %v249 = vunpack.c.l.b16 %v145
  %v250 = vunpack.c.l.b16 %v146
  %v251 = vunpack.c.h.b16 %v146
  %v252 = vunpack.c.l.b16 %v147
  %v253 = vunpack.c.l.b16 %v148
  %v254 = vunpack.c.h.b16 %v148
  %v255 = vunpack.c.l.b16 %v149
  %v256 = vunpack.c.l.b16 %v150
  %v257 = vunpack.c.h.b16 %v150
  %v258 = vunpack.c.l.b16 %v151
  %v259 = vunpack.c.l.b16 %v152
  %v260 = vunpack.c.h.b16 %v152
  %v261 = vunpack.c.l.b16 %v153
  %v262 = vunpack.c.l.b16 %v154
  %v263 = vunpack.c.h.b16 %v154
  %v264 = vunpack.c.l.b16 %v155
  %v265 = vpack.c.b16 %v220, %v217
  %v266 = vpack.c.b16 %v221, %v218
  %v267 = vpack.c.b16 %v222, %v219
  %v268 = vpack.c.b16 %v226, %v223
  %v269 = vpack.c.b16 %v227, %v224
  %v270 = vpack.c.b16 %v228, %v225
  %v271 = vpack.c.b16 %v232, %v229
  %v272 = vpack.c.b16 %v233, %v230
  %v273 = vpack.c.b16 %v234, %v231
  %v274 = vpack.c.b16 %v238, %v235
  %v275 = vpack.c.b16 %v239, %v236
  %v276 = vpack.c.b16 %v240, %v237
  %v277 = vpack.c.b16 %v244, %v241
  %v278 = vpack.c.b16 %v245, %v242
  %v279 = vpack.c.b16 %v246, %v243
  %v280 = vpack.c.b16 %v250, %v247
  %v281 = vpack.c.b16 %v251, %v248
  %v282 = vpack.c.b16 %v252, %v249
  %v283 = vpack.c.b16 %v256, %v253
  %v284 = vpack.c.b16 %v257, %v254
  %v285 = vpack.c.b16 %v258, %v255
  %v286 = vpack.c.b16 %v262, %v259
  %v287 = vpack.c.b16 %v263, %v260
  %v288 = vpack.c.b16 %v264, %v261
  %313 = vmatprep.subr.bf16.mxu0 %v287
  %314 = vmatpush1.bf16.msra.mxu0 %v286
  %315 = vmatprep.subr.bf16.mxu0 %v284
  %316 = vmatpush1.bf16.msra.mxu0 %v283
  %317 = vmatprep.subr.bf16.mxu0 %v281
  %318 = vmatpush1.bf16.msra.mxu0 %v280
  %319 = vmatprep.subr.bf16.mxu0 %v278
  %320 = vmatpush1.bf16.msra.mxu0 %v277
  %321 = vmatprep.subr.bf16.mxu0 %v275
  %322 = vmatpush1.bf16.msra.mxu0 %v274
  %323 = vmatprep.subr.bf16.mxu0 %v272
  %324 = vmatpush1.bf16.msra.mxu0 %v271
  %325 = vmatprep.subr.bf16.mxu0 %v269
  %326 = vmatpush1.bf16.msra.mxu0 %v268
  %327 = vmatprep.subr.bf16.mxu0 %v266
  %328 = vmatpush1.bf16.msra.mxu0 %v265
  %329 = vmatprep.subr.bf16.mxu0 0
  %330 = vmatpush2.bf16.msra.mxu0 0
  %331 = vmatprep.subr.bf16.mxu0 0
  %332 = vmatpush2.bf16.msra.mxu0 0
  %333 = vmatprep.subr.bf16.mxu0 0
  %334 = vmatpush2.bf16.msra.mxu0 0
  %335 = vmatprep.subr.bf16.mxu0 0
  %336 = vmatpush2.bf16.msra.mxu0 0
  %337 = vmatprep.subr.bf16.mxu0 0
  %338 = vmatpush2.bf16.msra.mxu0 0
  %339 = vmatprep.subr.bf16.mxu0 0
  %340 = vmatpush2.bf16.msra.mxu0 0
  %341 = vmatprep.subr.bf16.mxu0 0
  %342 = vmatpush2.bf16.msra.mxu0 0
  %343 = vmatprep.subr.bf16.mxu0 0
  %344 = vmatpush2.bf16.msra.mxu0 0
  %345 = vmatprep.mubr.bf16.mxu0 0
  %346 = vmatmul.mubr.bf16.gmra.mxu0 %v181
  %v347 = vpop.f32.mrf.mxu0
  %v348 = vadd.f32 %v161, %v347
  %v349 = vpop.f32.mrf.mxu0
  %v350 = vadd.f32 %v165, %v349
  %v351 = vpop.f32.mrf.mxu0
  %v352 = vadd.f32 %v161, %v351
  %v353 = vpop.f32.mrf.mxu0
  %v354 = vadd.f32 %v165, %v353
  %355 = vmatprep.mubr.bf16.mxu0 0
  %356 = vmatmul.mubr.bf16.gmra.mxu0 %v182
  %v357 = vpop.f32.mrf.mxu0
  %v358 = vadd.f32 %v161, %v357
  %v359 = vpop.f32.mrf.mxu0
  %v360 = vadd.f32 %v165, %v359
  %v361 = vpop.f32.mrf.mxu0
  %v362 = vadd.f32 %v161, %v361
  %v363 = vpop.f32.mrf.mxu0
  %v364 = vadd.f32 %v165, %v363
  %365 = vdwg.mxu0
  %366 = vmatprep.subr.bf16.mxu0 0
  %367 = vmatpush1.bf16.msra.mxu0 %v288
  %368 = vmatprep.subr.bf16.mxu0 0
  %369 = vmatpush1.bf16.msra.mxu0 %v285
  %370 = vmatprep.subr.bf16.mxu0 0
  %371 = vmatpush1.bf16.msra.mxu0 %v282
  %372 = vmatprep.subr.bf16.mxu0 0
  %373 = vmatpush1.bf16.msra.mxu0 %v279
  %374 = vmatprep.subr.bf16.mxu0 0
  %375 = vmatpush1.bf16.msra.mxu0 %v276
  %376 = vmatprep.subr.bf16.mxu0 0
  %377 = vmatpush1.bf16.msra.mxu0 %v273
  %378 = vmatprep.subr.bf16.mxu0 0
  %379 = vmatpush1.bf16.msra.mxu0 %v270
  %380 = vmatprep.subr.bf16.mxu0 0
  %381 = vmatpush1.bf16.msra.mxu0 %v267
  %382 = vmatprep.subr.bf16.mxu0 0
  %383 = vmatpush2.bf16.msra.mxu0 0
  %384 = vmatprep.subr.bf16.mxu0 0
  %385 = vmatpush2.bf16.msra.mxu0 0
  %386 = vmatprep.subr.bf16.mxu0 0
  %387 = vmatpush2.bf16.msra.mxu0 0
  %388 = vmatprep.subr.bf16.mxu0 0
  %389 = vmatpush2.bf16.msra.mxu0 0
  %390 = vmatprep.subr.bf16.mxu0 0
  %391 = vmatpush2.bf16.msra.mxu0 0
  %392 = vmatprep.subr.bf16.mxu0 0
  %393 = vmatpush2.bf16.msra.mxu0 0
  %394 = vmatprep.subr.bf16.mxu0 0
  %395 = vmatpush2.bf16.msra.mxu0 0
  %396 = vmatprep.subr.bf16.mxu0 0
  %397 = vmatpush2.bf16.msra.mxu0 0
  %398 = vmatprep.mubr.bf16.mxu0 0
  %399 = vmatmul.mubr.bf16.gmra.mxu0 %v181
  %v400 = vpop.f32.mrf.mxu0
  %v401 = vadd.f32 %v169, %v400
  %v402 = vpop.f32.mrf.mxu0
  %v403 = vpop.f32.mrf.mxu0
  %v404 = vadd.f32 %v169, %v403
  %v405 = vpop.f32.mrf.mxu0
  %406 = vmatprep.mubr.bf16.mxu0 0
  %407 = vmatmul.mubr.bf16.gmra.mxu0 %v182
  %v408 = vpop.f32.mrf.mxu0
  %v409 = vadd.f32 %v169, %v408
  %v410 = vpop.f32.mrf.mxu0
  %v411 = vpop.f32.mrf.mxu0
  %v412 = vadd.f32 %v169, %v411
  %v413 = vpop.f32.mrf.mxu0
  %414 = vdwg.mxu0
  %v415 = vpack.c.bf16 %v352, %v348
  %v416 = vpack.c.bf16 %v354, %v350
  %v417 = vpack.c.bf16 %v404, %v401
  %v418 = vpack.c.bf16 %v362, %v358
  %v419 = vpack.c.bf16 %v364, %v360
  %v420 = vpack.c.bf16 %v412, %v409
  %v427 = vunpack.c.l.b16 %v415
  %v428 = vunpack.c.l.b16 %v416
  %v429 = vunpack.c.l.b16 %v417
  %v430 = vunpack.c.h.b16 %v415
  %v431 = vunpack.c.h.b16 %v416
  %v432 = vunpack.c.h.b16 %v417
  %v433 = vunpack.c.l.b16 %v418
  %v434 = vunpack.c.l.b16 %v419
  %v435 = vunpack.c.l.b16 %v420
  %v436 = vunpack.c.h.b16 %v418
  %v437 = vunpack.c.h.b16 %v419
  %v438 = vunpack.c.h.b16 %v420
  %v439 = vpack.c.b16 %v428, %v427
  %v440 = vpack.c.b16 %v429, %v429
  %v441 = vpack.c.b16 %v431, %v430
  %v442 = vpack.c.b16 %v432, %v432
  %v443 = vpack.c.b16 %v434, %v433
  %v444 = vpack.c.b16 %v435, %v435
  %v445 = vpack.c.b16 %v437, %v436
  %v446 = vpack.c.b16 %v438, %v438
  %455 = vst [vmem:[%s5] sm:$0xff] %v439
  %456 = vst [vmem:[%s5 + $0x8] sm:$0xf] %v440
  %457 = vst [vmem:[%s5 + $0xc] sm:$0xff] %v441
  %458 = vst [vmem:[%s5 + $0x14] sm:$0xf] %v442
  %459 = vst [vmem:[%s5 + $0x18] sm:$0xff] %v443
  %460 = vst [vmem:[%s5 + $0x20] sm:$0xf] %v444
  %461 = vst [vmem:[%s5 + $0x24] sm:$0xff] %v445
  %462 = vst [vmem:[%s5 + $0x2c] sm:$0xf] %v446
  // Predicated region
  $region26: #{vpt_deep_forward.13} parent=0 // pred_check
    _
  $region27: #{vpt_deep_forward.13} parent=0 // pred_check_branch
    %464 = sbr.rel (0) target = $region29
  $region28: #{vpt_deep_forward.13} parent=0 // pred_region
    _
  $region29: #{vpt_deep_forward.13} parent=0 // pred_fallthru
    _
  // Predicated region
  $region30: #{vpt_deep_forward.13} parent=0 // pred_check
    _
  $region31: #{vpt_deep_forward.13} parent=0 // pred_check_branch
    %466 = sbr.rel (0) target = $region33
  $region32: #{vpt_deep_forward.13} parent=0 // pred_region
    _
  $region33: #{vpt_deep_forward.13} parent=0 // pred_fallthru
    _

// kernel: vpt_deep_forward.14
$region0: #{vpt_deep_forward.14}
  #allocation0 [shape = 'u32[]', space=smem, size = 0x4, offset = 0x4, fixed_abs, tag = 'smem constant byte address 0x4 - core index']
  #allocation1 [shape = 'u32[144,128]{1,0:T(1,128)}', space=vmem, size = 0x12000, scoped, tag = 'internal scratch']
  %s0 = inlined_call_operand.vmem [shape: bf16[2,16,384], index: 0, kind: input, shape index: {}]
  %s1 = inlined_call_operand.vmem [shape: bf16[2,16,128], index: 1, kind: output, shape index: {}]
  %s2 = sld [smem:[#allocation0]]
  $region14: #{vpt_deep_forward.14} parent=0
    _
  %s4 = ssub.s32 1, %s2
  %s5 = scalar_select 0, %s4, %s2
  // Predicated region
  $region2: #{vpt_deep_forward.14} parent=0 // pred_check
    _
  $region3: #{vpt_deep_forward.14} parent=0 // pred_check_branch
    %7 = sbr.rel (0) target = $region5
  $region4: #{vpt_deep_forward.14} parent=0 // pred_region
    _
  $region5: #{vpt_deep_forward.14} parent=0 // pred_fallthru
    _
  %v9 = vld [vmem:[%s0] sm:$0xf]
  %v10 = vld [vmem:[%s0 + $0xc] sm:$0xf]
  %v11 = vld [vmem:[%s0 + $0x18] sm:$0xf]
  %v12 = vld [vmem:[%s0 + $0x24] sm:$0xf]
  %v13 = vld [vmem:[%s0 + $0x4] sm:$0xf]
  %v14 = vld [vmem:[%s0 + $0x10] sm:$0xf]
  %v15 = vld [vmem:[%s0 + $0x1c] sm:$0xf]
  %v16 = vld [vmem:[%s0 + $0x28] sm:$0xf]
  %v17 = vld [vmem:[%s0 + $0x8] sm:$0xf]
  %v18 = vld [vmem:[%s0 + $0x14] sm:$0xf]
  %v19 = vld [vmem:[%s0 + $0x20] sm:$0xf]
  %v20 = vld [vmem:[%s0 + $0x2c] sm:$0xf]
  %v21 = vlaneseq
  %v22 = vand.u32 %v21, 127
  %vm23 = vcmp.lt.s32.totalorder %v22, 9
  %v26 = vunpack.c.l.b16 %v9
  %v27 = vunpack.c.l.b16 %v10
  %v28 = vpack.c.b16 %v27, %v26
  %v31 = vunpack.c.l.b16 %v13
  %v32 = vunpack.c.l.b16 %v14
  %v33 = vpack.c.b16 %v32, %v31
  %vm34 = vcmask 261120
  %v36 = vsel %vm34, %v28, 0
  %v39 = vsel %vm34, %v33, 0
  %41 = vmatprep.subr.bf16.mxu0 0
  %42 = vmatpush1.bf16.xpose.msra.mxu0 0
  %43 = vmatprep.subr.bf16.mxu0 0
  %44 = vmatpush1.bf16.xpose.msra.mxu0 0
  %45 = vmatprep.subr.bf16.mxu0 0
  %46 = vmatpush1.bf16.xpose.msra.mxu0 0
  %47 = vmatprep.subr.bf16.mxu0 0
  %48 = vmatpush1.bf16.xpose.msra.mxu0 0
  %49 = vmatprep.subr.bf16.mxu0 0
  %50 = vmatpush1.bf16.xpose.msra.mxu0 0
  %51 = vmatprep.subr.bf16.mxu0 0
  %52 = vmatpush1.bf16.xpose.msra.mxu0 0
  %53 = vmatprep.subr.bf16.mxu0 0
  %54 = vmatpush1.bf16.xpose.msra.mxu0 0
  %55 = vmatprep.subr.bf16.mxu0 0
  %56 = vmatpush1.bf16.xpose.msra.mxu0 %v39
  %57 = vmatprep.subr.bf16.mxu0 0
  %58 = vmatpush2.bf16.xpose.msra.mxu0 0
  %59 = vmatprep.subr.bf16.mxu0 0
  %60 = vmatpush2.bf16.xpose.msra.mxu0 0
  %61 = vmatprep.subr.bf16.mxu0 0
  %62 = vmatpush2.bf16.xpose.msra.mxu0 0
  %63 = vmatprep.subr.bf16.mxu0 0
  %64 = vmatpush2.bf16.xpose.msra.mxu0 0
  %65 = vmatprep.subr.bf16.mxu0 0
  %66 = vmatpush2.bf16.xpose.msra.mxu0 0
  %67 = vmatprep.subr.bf16.mxu0 0
  %68 = vmatpush2.bf16.xpose.msra.mxu0 0
  %69 = vmatprep.subr.bf16.mxu0 0
  %70 = vmatpush2.bf16.xpose.msra.mxu0 0
  %71 = vmatprep.subr.bf16.mxu0 0
  %72 = vmatpush2.bf16.xpose.msra.mxu0 0
  %73 = vmatprep.mubr.bf16.mxu0 0
  %74 = vmatmul.mubr.bf16.gmra.mxu0 %v36
  %v75 = vpop.f32.mrf.mxu0
  %v76 = vadd.f32 0.0, %v75
  %v77 = vpop.f32.mrf.mxu0
  %v78 = vpop.f32.mrf.mxu0
  %v79 = vadd.f32 0.0, %v78
  %v80 = vpop.f32.mrf.mxu0
  %81 = vdwg.mxu0
  %v84 = vunpack.c.l.b16 %v11
  %v85 = vunpack.c.l.b16 %v12
  %v86 = vpack.c.b16 %v85, %v84
  %v89 = vunpack.c.l.b16 %v15
  %v90 = vunpack.c.l.b16 %v16
  %v91 = vpack.c.b16 %v90, %v89
  %v93 = vsel %vm34, %v86, 0
  %v96 = vsel %vm34, %v91, 0
  %98 = vmatprep.subr.bf16.mxu0 0
  %99 = vmatpush1.bf16.xpose.msra.mxu0 0
  %100 = vmatprep.subr.bf16.mxu0 0
  %101 = vmatpush1.bf16.xpose.msra.mxu0 0
  %102 = vmatprep.subr.bf16.mxu0 0
  %103 = vmatpush1.bf16.xpose.msra.mxu0 0
  %104 = vmatprep.subr.bf16.mxu0 0
  %105 = vmatpush1.bf16.xpose.msra.mxu0 0
  %106 = vmatprep.subr.bf16.mxu0 0
  %107 = vmatpush1.bf16.xpose.msra.mxu0 0
  %108 = vmatprep.subr.bf16.mxu0 0
  %109 = vmatpush1.bf16.xpose.msra.mxu0 0
  %110 = vmatprep.subr.bf16.mxu0 0
  %111 = vmatpush1.bf16.xpose.msra.mxu0 0
  %112 = vmatprep.subr.bf16.mxu0 0
  %113 = vmatpush1.bf16.xpose.msra.mxu0 %v96
  %114 = vmatprep.subr.bf16.mxu0 0
  %115 = vmatpush2.bf16.xpose.msra.mxu0 0
  %116 = vmatprep.subr.bf16.mxu0 0
  %117 = vmatpush2.bf16.xpose.msra.mxu0 0
  %118 = vmatprep.subr.bf16.mxu0 0
  %119 = vmatpush2.bf16.xpose.msra.mxu0 0
  %120 = vmatprep.subr.bf16.mxu0 0
  %121 = vmatpush2.bf16.xpose.msra.mxu0 0
  %122 = vmatprep.subr.bf16.mxu0 0
  %123 = vmatpush2.bf16.xpose.msra.mxu0 0
  %124 = vmatprep.subr.bf16.mxu0 0
  %125 = vmatpush2.bf16.xpose.msra.mxu0 0
  %126 = vmatprep.subr.bf16.mxu0 0
  %127 = vmatpush2.bf16.xpose.msra.mxu0 0
  %128 = vmatprep.subr.bf16.mxu0 0
  %129 = vmatpush2.bf16.xpose.msra.mxu0 0
  %130 = vmatprep.mubr.bf16.mxu0 0
  %131 = vmatmul.mubr.bf16.gmra.mxu0 %v93
  %v132 = vpop.f32.mrf.mxu0
  %v133 = vadd.f32 0.0, %v132
  %v134 = vpop.f32.mrf.mxu0
  %v135 = vpop.f32.mrf.mxu0
  %v136 = vadd.f32 0.0, %v135
  %v137 = vpop.f32.mrf.mxu0
  %138 = vdwg.mxu0
  %v139 = vsel %vm23, 1, 0
  %vm140 = vcmp.eq.s32.totalorder %v139, 1
  %v141 = vsel %vm140, %v76, -1e+30
  %v142 = vsel %vm140, %v79, -1e+30
  %v143 = vsel %vm140, %v133, -1e+30
  %v144 = vsel %vm140, %v136, -1e+30
  %vm145 = vcmask 130048
  %v146 = vsel %vm145, %v141, -inf
  %147 = vmax.xlane.f32.xlu0 %v146
  %v148 = vpop.xlane.xlu0 %147
  %v149 = vsel %vm145, %v142, -inf
  %150 = vmax.xlane.f32.xlu0 %v149
  %v151 = vpop.xlane.xlu0 %150
  %v152 = vsel %vm145, %v143, -inf
  %153 = vmax.xlane.f32.xlu0 %v152
  %v154 = vpop.xlane.xlu0 %153
  %v155 = vsel %vm145, %v144, -inf
  %156 = vmax.xlane.f32.xlu0 %v155
  %v157 = vpop.xlane.xlu0 %156
  %v158 = vsub.f32 %v141, %v148
  %v159 = vsub.f32 %v142, %v151
  %v160 = vsub.f32 %v143, %v154
  %v161 = vsub.f32 %v144, %v157
  %v162 = vmul.f32 %v158, 1.442695
  %v163 = vpow.pop %v162
  %v164 = vmul.f32 %v159, 1.442695
  %v165 = vpow.pop %v164
  %v166 = vmul.f32 %v160, 1.442695
  %v167 = vpow.pop %v166
  %v168 = vmul.f32 %v161, 1.442695
  %v169 = vpow.pop %v168
  %v170 = vsel %vm145, %v163, 0.0
  %171 = vadd.xlane.f32.xlu0 %v170
  %v172 = vpop.xlane.xlu0 %171
  %v173 = vsel %vm145, %v165, 0.0
  %174 = vadd.xlane.f32.xlu0 %v173
  %v175 = vpop.xlane.xlu0 %174
  %v176 = vsel %vm145, %v167, 0.0
  %177 = vadd.xlane.f32.xlu0 %v176
  %v178 = vpop.xlane.xlu0 %177
  %v179 = vsel %vm145, %v169, 0.0
  %180 = vadd.xlane.f32.xlu0 %v179
  %v181 = vpop.xlane.xlu0 %180
  %v182 = vpack.c.bf16 %v165, %v163
  %v183 = vpack.c.bf16 %v169, %v167
  %v186 = vunpack.c.l.b16 %v17
  %v187 = vunpack.c.l.b16 %v18
  %v188 = vpack.c.b16 %v187, %v186
  %v191 = vsel %vm145, %v182, 0
  %193 = vmatprep.subr.bf16.mxu0 0
  %194 = vmatpush1.bf16.msra.mxu0 0
  %195 = vmatprep.subr.bf16.mxu0 0
  %196 = vmatpush1.bf16.msra.mxu0 0
  %197 = vmatprep.subr.bf16.mxu0 0
  %198 = vmatpush1.bf16.msra.mxu0 0
  %199 = vmatprep.subr.bf16.mxu0 0
  %200 = vmatpush1.bf16.msra.mxu0 0
  %201 = vmatprep.subr.bf16.mxu0 0
  %202 = vmatpush1.bf16.msra.mxu0 0
  %203 = vmatprep.subr.bf16.mxu0 0
  %204 = vmatpush1.bf16.msra.mxu0 0
  %205 = vmatprep.subr.bf16.mxu0 0
  %206 = vmatpush1.bf16.msra.mxu0 0
  %207 = vmatprep.subr.bf16.mxu0 0
  %208 = vmatpush1.bf16.msra.mxu0 %v188
  %209 = vmatprep.subr.bf16.mxu0 0
  %210 = vmatpush2.bf16.msra.mxu0 0
  %211 = vmatprep.subr.bf16.mxu0 0
  %212 = vmatpush2.bf16.msra.mxu0 0
  %213 = vmatprep.subr.bf16.mxu0 0
  %214 = vmatpush2.bf16.msra.mxu0 0
  %215 = vmatprep.subr.bf16.mxu0 0
  %216 = vmatpush2.bf16.msra.mxu0 0
  %217 = vmatprep.subr.bf16.mxu0 0
  %218 = vmatpush2.bf16.msra.mxu0 0
  %219 = vmatprep.subr.bf16.mxu0 0
  %220 = vmatpush2.bf16.msra.mxu0 0
  %221 = vmatprep.subr.bf16.mxu0 0
  %222 = vmatpush2.bf16.msra.mxu0 0
  %223 = vmatprep.subr.bf16.mxu0 0
  %224 = vmatpush2.bf16.msra.mxu0 0
  %225 = vmatprep.mubr.bf16.mxu0 0
  %226 = vmatmul.mubr.bf16.gmra.mxu0 %v191
  %v227 = vpop.f32.mrf.mxu0
  %v228 = vadd.f32 0.0, %v227
  %v229 = vpop.f32.mrf.mxu0
  %v230 = vpop.f32.mrf.mxu0
  %v231 = vadd.f32 0.0, %v230
  %v232 = vpop.f32.mrf.mxu0
  %233 = vdwg.mxu0
  %v236 = vunpack.c.l.b16 %v19
  %v237 = vunpack.c.l.b16 %v20
  %v238 = vpack.c.b16 %v237, %v236
  %v241 = vsel %vm145, %v183, 0
  %243 = vmatprep.subr.bf16.mxu0 0
  %244 = vmatpush1.bf16.msra.mxu0 0
  %245 = vmatprep.subr.bf16.mxu0 0
  %246 = vmatpush1.bf16.msra.mxu0 0
  %247 = vmatprep.subr.bf16.mxu0 0
  %248 = vmatpush1.bf16.msra.mxu0 0
  %249 = vmatprep.subr.bf16.mxu0 0
  %250 = vmatpush1.bf16.msra.mxu0 0
  %251 = vmatprep.subr.bf16.mxu0 0
  %252 = vmatpush1.bf16.msra.mxu0 0
  %253 = vmatprep.subr.bf16.mxu0 0
  %254 = vmatpush1.bf16.msra.mxu0 0
  %255 = vmatprep.subr.bf16.mxu0 0
  %256 = vmatpush1.bf16.msra.mxu0 0
  %257 = vmatprep.subr.bf16.mxu0 0
  %258 = vmatpush1.bf16.msra.mxu0 %v238
  %259 = vmatprep.subr.bf16.mxu0 0
  %260 = vmatpush2.bf16.msra.mxu0 0
  %261 = vmatprep.subr.bf16.mxu0 0
  %262 = vmatpush2.bf16.msra.mxu0 0
  %263 = vmatprep.subr.bf16.mxu0 0
  %264 = vmatpush2.bf16.msra.mxu0 0
  %265 = vmatprep.subr.bf16.mxu0 0
  %266 = vmatpush2.bf16.msra.mxu0 0
  %267 = vmatprep.subr.bf16.mxu0 0
  %268 = vmatpush2.bf16.msra.mxu0 0
  %269 = vmatprep.subr.bf16.mxu0 0
  %270 = vmatpush2.bf16.msra.mxu0 0
  %271 = vmatprep.subr.bf16.mxu0 0
  %272 = vmatpush2.bf16.msra.mxu0 0
  %273 = vmatprep.subr.bf16.mxu0 0
  %274 = vmatpush2.bf16.msra.mxu0 0
  %275 = vmatprep.mubr.bf16.mxu0 0
  %276 = vmatmul.mubr.bf16.gmra.mxu0 %v241
  %v277 = vpop.f32.mrf.mxu0
  %v278 = vadd.f32 0.0, %v277
  %v279 = vpop.f32.mrf.mxu0
  %v280 = vpop.f32.mrf.mxu0
  %v281 = vadd.f32 0.0, %v280
  %v282 = vpop.f32.mrf.mxu0
  %283 = vdwg.mxu0
  %v284 = vrcp.pop %v172
  %v285 = vrcp.pop %v175
  %v286 = vrcp.pop %v178
  %v287 = vrcp.pop %v181
  %v288 = vmul.f32 %v228, %v284
  %v289 = vmul.f32 %v231, %v285
  %v290 = vmul.f32 %v278, %v286
  %v291 = vmul.f32 %v281, %v287
  %v292 = vpack.c.bf16 %v289, %v288
  %v293 = vpack.c.bf16 %v291, %v290
  %v296 = vunpack.c.l.b16 %v292
  %v297 = vunpack.c.h.b16 %v292
  %v298 = vunpack.c.l.b16 %v293
  %v299 = vunpack.c.h.b16 %v293
  %v300 = vpack.c.b16 %v296, %v296
  %v301 = vpack.c.b16 %v297, %v297
  %v302 = vpack.c.b16 %v298, %v298
  %v303 = vpack.c.b16 %v299, %v299
  %vm308 = vcmask 257024
  %309 = vst.msk [vmem:[%s1] sm:$0xf] %vm308, %v300
  %310 = vst.msk [vmem:[%s1 + $0x4] sm:$0xf] %vm308, %v301
  %311 = vst.msk [vmem:[%s1 + $0x8] sm:$0xf] %vm308, %v302
  %312 = vst.msk [vmem:[%s1 + $0xc] sm:$0xf] %vm308, %v303
  %313 = vrot.lane.b32.xlu0 %v28, 96
  %v314 = vpop.permute.xlu0 %313
  %315 = vrot.lane.b32.xlu0 %v33, 96
  %v316 = vpop.permute.xlu0 %315
  %v318 = vsel %vm34, %v314, 0
  %v321 = vsel %vm34, %v316, 0
  %323 = vmatprep.subr.bf16.mxu0 0
  %324 = vmatpush1.bf16.xpose.msra.mxu0 0
  %325 = vmatprep.subr.bf16.mxu0 0
  %326 = vmatpush1.bf16.xpose.msra.mxu0 0
  %327 = vmatprep.subr.bf16.mxu0 0
  %328 = vmatpush1.bf16.xpose.msra.mxu0 0
  %329 = vmatprep.subr.bf16.mxu0 0
  %330 = vmatpush1.bf16.xpose.msra.mxu0 0
  %331 = vmatprep.subr.bf16.mxu0 0
  %332 = vmatpush1.bf16.xpose.msra.mxu0 0
  %333 = vmatprep.subr.bf16.mxu0 0
  %334 = vmatpush1.bf16.xpose.msra.mxu0 0
  %335 = vmatprep.subr.bf16.mxu0 0
  %336 = vmatpush1.bf16.xpose.msra.mxu0 0
  %337 = vmatprep.subr.bf16.mxu0 0
  %338 = vmatpush1.bf16.xpose.msra.mxu0 %v321
  %339 = vmatprep.subr.bf16.mxu0 0
  %340 = vmatpush2.bf16.xpose.msra.mxu0 0
  %341 = vmatprep.subr.bf16.mxu0 0
  %342 = vmatpush2.bf16.xpose.msra.mxu0 0
  %343 = vmatprep.subr.bf16.mxu0 0
  %344 = vmatpush2.bf16.xpose.msra.mxu0 0
  %345 = vmatprep.subr.bf16.mxu0 0
  %346 = vmatpush2.bf16.xpose.msra.mxu0 0
  %347 = vmatprep.subr.bf16.mxu0 0
  %348 = vmatpush2.bf16.xpose.msra.mxu0 0
  %349 = vmatprep.subr.bf16.mxu0 0
  %350 = vmatpush2.bf16.xpose.msra.mxu0 0
  %351 = vmatprep.subr.bf16.mxu0 0
  %352 = vmatpush2.bf16.xpose.msra.mxu0 0
  %353 = vmatprep.subr.bf16.mxu0 0
  %354 = vmatpush2.bf16.xpose.msra.mxu0 0
  %355 = vmatprep.mubr.bf16.mxu0 0
  %356 = vmatmul.mubr.bf16.gmra.mxu0 %v318
  %v357 = vpop.f32.mrf.mxu0
  %v358 = vadd.f32 0.0, %v357
  %v359 = vpop.f32.mrf.mxu0
  %v360 = vpop.f32.mrf.mxu0
  %v361 = vadd.f32 0.0, %v360
  %v362 = vpop.f32.mrf.mxu0
  %363 = vdwg.mxu0
  %364 = vrot.lane.b32.xlu0 %v86, 96
  %v365 = vpop.permute.xlu0 %364
  %366 = vrot.lane.b32.xlu0 %v91, 96
  %v367 = vpop.permute.xlu0 %366
  %v369 = vsel %vm34, %v365, 0
  %v372 = vsel %vm34, %v367, 0
  %374 = vmatprep.subr.bf16.mxu0 0
  %375 = vmatpush1.bf16.xpose.msra.mxu0 0
  %376 = vmatprep.subr.bf16.mxu0 0
  %377 = vmatpush1.bf16.xpose.msra.mxu0 0
  %378 = vmatprep.subr.bf16.mxu0 0
  %379 = vmatpush1.bf16.xpose.msra.mxu0 0
  %380 = vmatprep.subr.bf16.mxu0 0
  %381 = vmatpush1.bf16.xpose.msra.mxu0 0
  %382 = vmatprep.subr.bf16.mxu0 0
  %383 = vmatpush1.bf16.xpose.msra.mxu0 0
  %384 = vmatprep.subr.bf16.mxu0 0
  %385 = vmatpush1.bf16.xpose.msra.mxu0 0
  %386 = vmatprep.subr.bf16.mxu0 0
  %387 = vmatpush1.bf16.xpose.msra.mxu0 0
  %388 = vmatprep.subr.bf16.mxu0 0
  %389 = vmatpush1.bf16.xpose.msra.mxu0 %v372
  %390 = vmatprep.subr.bf16.mxu0 0
  %391 = vmatpush2.bf16.xpose.msra.mxu0 0
  %392 = vmatprep.subr.bf16.mxu0 0
  %393 = vmatpush2.bf16.xpose.msra.mxu0 0
  %394 = vmatprep.subr.bf16.mxu0 0
  %395 = vmatpush2.bf16.xpose.msra.mxu0 0
  %396 = vmatprep.subr.bf16.mxu0 0
  %397 = vmatpush2.bf16.xpose.msra.mxu0 0
  %398 = vmatprep.subr.bf16.mxu0 0
  %399 = vmatpush2.bf16.xpose.msra.mxu0 0
  %400 = vmatprep.subr.bf16.mxu0 0
  %401 = vmatpush2.bf16.xpose.msra.mxu0 0
  %402 = vmatprep.subr.bf16.mxu0 0
  %403 = vmatpush2.bf16.xpose.msra.mxu0 0
  %404 = vmatprep.subr.bf16.mxu0 0
  %405 = vmatpush2.bf16.xpose.msra.mxu0 0
  %406 = vmatprep.mubr.bf16.mxu0 0
  %407 = vmatmul.mubr.bf16.gmra.mxu0 %v369
  %v408 = vpop.f32.mrf.mxu0
  %v409 = vadd.f32 0.0, %v408
  %v410 = vpop.f32.mrf.mxu0
  %v411 = vpop.f32.mrf.mxu0
  %v412 = vadd.f32 0.0, %v411
  %v413 = vpop.f32.mrf.mxu0
  %414 = vdwg.mxu0
  %v415 = vsel %vm140, %v358, -1e+30
  %v416 = vsel %vm140, %v361, -1e+30
  %v417 = vsel %vm140, %v409, -1e+30
  %v418 = vsel %vm140, %v412, -1e+30
  %v419 = vsel %vm145, %v415, -inf
  %420 = vmax.xlane.f32.xlu0 %v419
  %v421 = vpop.xlane.xlu0 %420
  %v422 = vsel %vm145, %v416, -inf
  %423 = vmax.xlane.f32.xlu0 %v422
  %v424 = vpop.xlane.xlu0 %423
  %v425 = vsel %vm145, %v417, -inf
  %426 = vmax.xlane.f32.xlu0 %v425
  %v427 = vpop.xlane.xlu0 %426
  %v428 = vsel %vm145, %v418, -inf
  %429 = vmax.xlane.f32.xlu0 %v428
  %v430 = vpop.xlane.xlu0 %429
  %v431 = vsub.f32 %v415, %v421
  %v432 = vsub.f32 %v416, %v424
  %v433 = vsub.f32 %v417, %v427
  %v434 = vsub.f32 %v418, %v430
  %v435 = vmul.f32 %v431, 1.442695
  %v436 = vpow.pop %v435
  %v437 = vmul.f32 %v432, 1.442695
  %v438 = vpow.pop %v437
  %v439 = vmul.f32 %v433, 1.442695
  %v440 = vpow.pop %v439
  %v441 = vmul.f32 %v434, 1.442695
  %v442 = vpow.pop %v441
  %v443 = vsel %vm145, %v436, 0.0
  %444 = vadd.xlane.f32.xlu0 %v443
  %v445 = vpop.xlane.xlu0 %444
  %v446 = vsel %vm145, %v438, 0.0
  %447 = vadd.xlane.f32.xlu0 %v446
  %v448 = vpop.xlane.xlu0 %447
  %v449 = vsel %vm145, %v440, 0.0
  %450 = vadd.xlane.f32.xlu0 %v449
  %v451 = vpop.xlane.xlu0 %450
  %v452 = vsel %vm145, %v442, 0.0
  %453 = vadd.xlane.f32.xlu0 %v452
  %v454 = vpop.xlane.xlu0 %453
  %v455 = vpack.c.bf16 %v438, %v436
  %v456 = vpack.c.bf16 %v442, %v440
  %457 = vrot.lane.b32.xlu0 %v188, 96
  %v458 = vpop.permute.xlu0 %457
  %v461 = vsel %vm145, %v455, 0
  %463 = vmatprep.subr.bf16.mxu0 0
  %464 = vmatpush1.bf16.msra.mxu0 0
  %465 = vmatprep.subr.bf16.mxu0 0
  %466 = vmatpush1.bf16.msra.mxu0 0
  %467 = vmatprep.subr.bf16.mxu0 0
  %468 = vmatpush1.bf16.msra.mxu0 0
  %469 = vmatprep.subr.bf16.mxu0 0
  %470 = vmatpush1.bf16.msra.mxu0 0
  %471 = vmatprep.subr.bf16.mxu0 0
  %472 = vmatpush1.bf16.msra.mxu0 0
  %473 = vmatprep.subr.bf16.mxu0 0
  %474 = vmatpush1.bf16.msra.mxu0 0
  %475 = vmatprep.subr.bf16.mxu0 0
  %476 = vmatpush1.bf16.msra.mxu0 0
  %477 = vmatprep.subr.bf16.mxu0 0
  %478 = vmatpush1.bf16.msra.mxu0 %v458
  %479 = vmatprep.subr.bf16.mxu0 0
  %480 = vmatpush2.bf16.msra.mxu0 0
  %481 = vmatprep.subr.bf16.mxu0 0
  %482 = vmatpush2.bf16.msra.mxu0 0
  %483 = vmatprep.subr.bf16.mxu0 0
  %484 = vmatpush2.bf16.msra.mxu0 0
  %485 = vmatprep.subr.bf16.mxu0 0
  %486 = vmatpush2.bf16.msra.mxu0 0
  %487 = vmatprep.subr.bf16.mxu0 0
  %488 = vmatpush2.bf16.msra.mxu0 0
  %489 = vmatprep.subr.bf16.mxu0 0
  %490 = vmatpush2.bf16.msra.mxu0 0
  %491 = vmatprep.subr.bf16.mxu0 0
  %492 = vmatpush2.bf16.msra.mxu0 0
  %493 = vmatprep.subr.bf16.mxu0 0
  %494 = vmatpush2.bf16.msra.mxu0 0
  %495 = vmatprep.mubr.bf16.mxu0 0
  %496 = vmatmul.mubr.bf16.gmra.mxu0 %v461
  %v497 = vpop.f32.mrf.mxu0
  %v498 = vadd.f32 0.0, %v497
  %v499 = vpop.f32.mrf.mxu0
  %v500 = vpop.f32.mrf.mxu0
  %v501 = vadd.f32 0.0, %v500
  %v502 = vpop.f32.mrf.mxu0
  %503 = vdwg.mxu0
  %504 = vrot.lane.b32.xlu0 %v238, 96
  %v505 = vpop.permute.xlu0 %504
  %v508 = vsel %vm145, %v456, 0
  %510 = vmatprep.subr.bf16.mxu0 0
  %511 = vmatpush1.bf16.msra.mxu0 0
  %512 = vmatprep.subr.bf16.mxu0 0
  %513 = vmatpush1.bf16.msra.mxu0 0
  %514 = vmatprep.subr.bf16.mxu0 0
  %515 = vmatpush1.bf16.msra.mxu0 0
  %516 = vmatprep.subr.bf16.mxu0 0
  %517 = vmatpush1.bf16.msra.mxu0 0
  %518 = vmatprep.subr.bf16.mxu0 0
  %519 = vmatpush1.bf16.msra.mxu0 0
  %520 = vmatprep.subr.bf16.mxu0 0
  %521 = vmatpush1.bf16.msra.mxu0 0
  %522 = vmatprep.subr.bf16.mxu0 0
  %523 = vmatpush1.bf16.msra.mxu0 0
  %524 = vmatprep.subr.bf16.mxu0 0
  %525 = vmatpush1.bf16.msra.mxu0 %v505
  %526 = vmatprep.subr.bf16.mxu0 0
  %527 = vmatpush2.bf16.msra.mxu0 0
  %528 = vmatprep.subr.bf16.mxu0 0
  %529 = vmatpush2.bf16.msra.mxu0 0
  %530 = vmatprep.subr.bf16.mxu0 0
  %531 = vmatpush2.bf16.msra.mxu0 0
  %532 = vmatprep.subr.bf16.mxu0 0
  %533 = vmatpush2.bf16.msra.mxu0 0
  %534 = vmatprep.subr.bf16.mxu0 0
  %535 = vmatpush2.bf16.msra.mxu0 0
  %536 = vmatprep.subr.bf16.mxu0 0
  %537 = vmatpush2.bf16.msra.mxu0 0
  %538 = vmatprep.subr.bf16.mxu0 0
  %539 = vmatpush2.bf16.msra.mxu0 0
  %540 = vmatprep.subr.bf16.mxu0 0
  %541 = vmatpush2.bf16.msra.mxu0 0
  %542 = vmatprep.mubr.bf16.mxu0 0
  %543 = vmatmul.mubr.bf16.gmra.mxu0 %v508
  %v544 = vpop.f32.mrf.mxu0
  %v545 = vadd.f32 0.0, %v544
  %v546 = vpop.f32.mrf.mxu0
  %v547 = vpop.f32.mrf.mxu0
  %v548 = vadd.f32 0.0, %v547
  %v549 = vpop.f32.mrf.mxu0
  %550 = vdwg.mxu0
  %v551 = vrcp.pop %v445
  %v552 = vrcp.pop %v448
  %v553 = vrcp.pop %v451
  %v554 = vrcp.pop %v454
  %v555 = vmul.f32 %v498, %v551
  %v556 = vmul.f32 %v501, %v552
  %v557 = vmul.f32 %v545, %v553
  %v558 = vmul.f32 %v548, %v554
  %v559 = vpack.c.bf16 %v556, %v555
  %v560 = vpack.c.bf16 %v558, %v557
  %v563 = vunpack.c.l.b16 %v559
  %v564 = vunpack.c.h.b16 %v559
  %v565 = vunpack.c.l.b16 %v560
  %v566 = vunpack.c.h.b16 %v560
  %v567 = vpack.c.b16 %v563, %v563
  %v568 = vpack.c.b16 %v564, %v564
  %v569 = vpack.c.b16 %v565, %v565
  %v570 = vpack.c.b16 %v566, %v566
  %571 = vrot.lane.b32.xlu0 %v567, 32
  %v572 = vpop.permute.xlu0 %571
  %573 = vrot.lane.b32.xlu0 %v568, 32
  %v574 = vpop.permute.xlu0 %573
  %575 = vrot.lane.b32.xlu0 %v569, 32
  %v576 = vpop.permute.xlu0 %575
  %577 = vrot.lane.b32.xlu0 %v570, 32
  %v578 = vpop.permute.xlu0 %577
  %vm583 = vcmask 519424
  %584 = vst.msk [vmem:[%s1] sm:$0xf] %vm583, %v572
  %585 = vst.msk [vmem:[%s1 + $0x4] sm:$0xf] %vm583, %v574
  %586 = vst.msk [vmem:[%s1 + $0x8] sm:$0xf] %vm583, %v576
  %587 = vst.msk [vmem:[%s1 + $0xc] sm:$0xf] %vm583, %v578
  %588 = vrot.lane.b32.xlu0 %v28, 64
  %v589 = vpop.permute.xlu0 %588
  %590 = vrot.lane.b32.xlu0 %v33, 64
  %v591 = vpop.permute.xlu0 %590
  %v593 = vsel %vm34, %v589, 0
  %v596 = vsel %vm34, %v591, 0
  %598 = vmatprep.subr.bf16.mxu0 0
  %599 = vmatpush1.bf16.xpose.msra.mxu0 0
  %600 = vmatprep.subr.bf16.mxu0 0
  %601 = vmatpush1.bf16.xpose.msra.mxu0 0
  %602 = vmatprep.subr.bf16.mxu0 0
  %603 = vmatpush1.bf16.xpose.msra.mxu0 0
  %604 = vmatprep.subr.bf16.mxu0 0
  %605 = vmatpush1.bf16.xpose.msra.mxu0 0
  %606 = vmatprep.subr.bf16.mxu0 0
  %607 = vmatpush1.bf16.xpose.msra.mxu0 0
  %608 = vmatprep.subr.bf16.mxu0 0
  %609 = vmatpush1.bf16.xpose.msra.mxu0 0
  %610 = vmatprep.subr.bf16.mxu0 0
  %611 = vmatpush1.bf16.xpose.msra.mxu0 0
  %612 = vmatprep.subr.bf16.mxu0 0
  %613 = vmatpush1.bf16.xpose.msra.mxu0 %v596
  %614 = vmatprep.subr.bf16.mxu0 0
  %615 = vmatpush2.bf16.xpose.msra.mxu0 0
  %616 = vmatprep.subr.bf16.mxu0 0
  %617 = vmatpush2.bf16.xpose.msra.mxu0 0
  %618 = vmatprep.subr.bf16.mxu0 0
  %619 = vmatpush2.bf16.xpose.msra.mxu0 0
  %620 = vmatprep.subr.bf16.mxu0 0
  %621 = vmatpush2.bf16.xpose.msra.mxu0 0
  %622 = vmatprep.subr.bf16.mxu0 0
  %623 = vmatpush2.bf16.xpose.msra.mxu0 0
  %624 = vmatprep.subr.bf16.mxu0 0
  %625 = vmatpush2.bf16.xpose.msra.mxu0 0
  %626 = vmatprep.subr.bf16.mxu0 0
  %627 = vmatpush2.bf16.xpose.msra.mxu0 0
  %628 = vmatprep.subr.bf16.mxu0 0
  %629 = vmatpush2.bf16.xpose.msra.mxu0 0
  %630 = vmatprep.mubr.bf16.mxu0 0
  %631 = vmatmul.mubr.bf16.gmra.mxu0 %v593
  %v632 = vpop.f32.mrf.mxu0
  %v633 = vadd.f32 0.0, %v632
  %v634 = vpop.f32.mrf.mxu0
  %v635 = vpop.f32.mrf.mxu0
  %v636 = vadd.f32 0.0, %v635
  %v637 = vpop.f32.mrf.mxu0
  %638 = vdwg.mxu0
  %639 = vrot.lane.b32.xlu0 %v86, 64
  %v640 = vpop.permute.xlu0 %639
  %641 = vrot.lane.b32.xlu0 %v91, 64
  %v642 = vpop.permute.xlu0 %641
  %v644 = vsel %vm34, %v640, 0
  %v647 = vsel %vm34, %v642, 0
  %649 = vmatprep.subr.bf16.mxu0 0
  %650 = vmatpush1.bf16.xpose.msra.mxu0 0
  %651 = vmatprep.subr.bf16.mxu0 0
  %652 = vmatpush1.bf16.xpose.msra.mxu0 0
  %653 = vmatprep.subr.bf16.mxu0 0
  %654 = vmatpush1.bf16.xpose.msra.mxu0 0
  %655 = vmatprep.subr.bf16.mxu0 0
  %656 = vmatpush1.bf16.xpose.msra.mxu0 0
  %657 = vmatprep.subr.bf16.mxu0 0
  %658 = vmatpush1.bf16.xpose.msra.mxu0 0
  %659 = vmatprep.subr.bf16.mxu0 0
  %660 = vmatpush1.bf16.xpose.msra.mxu0 0
  %661 = vmatprep.subr.bf16.mxu0 0
  %662 = vmatpush1.bf16.xpose.msra.mxu0 0
  %663 = vmatprep.subr.bf16.mxu0 0
  %664 = vmatpush1.bf16.xpose.msra.mxu0 %v647
  %665 = vmatprep.subr.bf16.mxu0 0
  %666 = vmatpush2.bf16.xpose.msra.mxu0 0
  %667 = vmatprep.subr.bf16.mxu0 0
  %668 = vmatpush2.bf16.xpose.msra.mxu0 0
  %669 = vmatprep.subr.bf16.mxu0 0
  %670 = vmatpush2.bf16.xpose.msra.mxu0 0
  %671 = vmatprep.subr.bf16.mxu0 0
  %672 = vmatpush2.bf16.xpose.msra.mxu0 0
  %673 = vmatprep.subr.bf16.mxu0 0
  %674 = vmatpush2.bf16.xpose.msra.mxu0 0
  %675 = vmatprep.subr.bf16.mxu0 0
  %676 = vmatpush2.bf16.xpose.msra.mxu0 0
  %677 = vmatprep.subr.bf16.mxu0 0
  %678 = vmatpush2.bf16.xpose.msra.mxu0 0
  %679 = vmatprep.subr.bf16.mxu0 0
  %680 = vmatpush2.bf16.xpose.msra.mxu0 0
  %681 = vmatprep.mubr.bf16.mxu0 0
  %682 = vmatmul.mubr.bf16.gmra.mxu0 %v644
  %v683 = vpop.f32.mrf.mxu0
  %v684 = vadd.f32 0.0, %v683
  %v685 = vpop.f32.mrf.mxu0
  %v686 = vpop.f32.mrf.mxu0
  %v687 = vadd.f32 0.0, %v686
  %v688 = vpop.f32.mrf.mxu0
  %689 = vdwg.mxu0
  %v690 = vsel %vm140, %v633, -1e+30
  %v691 = vsel %vm140, %v636, -1e+30
  %v692 = vsel %vm140, %v684, -1e+30
  %v693 = vsel %vm140, %v687, -1e+30
  %v694 = vsel %vm145, %v690, -inf
  %695 = vmax.xlane.f32.xlu0 %v694
  %v696 = vpop.xlane.xlu0 %695
  %v697 = vsel %vm145, %v691, -inf
  %698 = vmax.xlane.f32.xlu0 %v697
  %v699 = vpop.xlane.xlu0 %698
  %v700 = vsel %vm145, %v692, -inf
  %701 = vmax.xlane.f32.xlu0 %v700
  %v702 = vpop.xlane.xlu0 %701
  %v703 = vsel %vm145, %v693, -inf
  %704 = vmax.xlane.f32.xlu0 %v703
  %v705 = vpop.xlane.xlu0 %704
  %v706 = vsub.f32 %v690, %v696
  %v707 = vsub.f32 %v691, %v699
  %v708 = vsub.f32 %v692, %v702
  %v709 = vsub.f32 %v693, %v705
  %v710 = vmul.f32 %v706, 1.442695
  %v711 = vpow.pop %v710
  %v712 = vmul.f32 %v707, 1.442695
  %v713 = vpow.pop %v712
  %v714 = vmul.f32 %v708, 1.442695
  %v715 = vpow.pop %v714
  %v716 = vmul.f32 %v709, 1.442695
  %v717 = vpow.pop %v716
  %v718 = vsel %vm145, %v711, 0.0
  %719 = vadd.xlane.f32.xlu0 %v718
  %v720 = vpop.xlane.xlu0 %719
  %v721 = vsel %vm145, %v713, 0.0
  %722 = vadd.xlane.f32.xlu0 %v721
  %v723 = vpop.xlane.xlu0 %722
  %v724 = vsel %vm145, %v715, 0.0
  %725 = vadd.xlane.f32.xlu0 %v724
  %v726 = vpop.xlane.xlu0 %725
  %v727 = vsel %vm145, %v717, 0.0
  %728 = vadd.xlane.f32.xlu0 %v727
  %v729 = vpop.xlane.xlu0 %728
  %v730 = vpack.c.bf16 %v713, %v711
  %v731 = vpack.c.bf16 %v717, %v715
  %732 = vrot.lane.b32.xlu0 %v188, 64
  %v733 = vpop.permute.xlu0 %732
  %v736 = vsel %vm145, %v730, 0
  %738 = vmatprep.subr.bf16.mxu0 0
  %739 = vmatpush1.bf16.msra.mxu0 0
  %740 = vmatprep.subr.bf16.mxu0 0
  %741 = vmatpush1.bf16.msra.mxu0 0
  %742 = vmatprep.subr.bf16.mxu0 0
  %743 = vmatpush1.bf16.msra.mxu0 0
  %744 = vmatprep.subr.bf16.mxu0 0
  %745 = vmatpush1.bf16.msra.mxu0 0
  %746 = vmatprep.subr.bf16.mxu0 0
  %747 = vmatpush1.bf16.msra.mxu0 0
  %748 = vmatprep.subr.bf16.mxu0 0
  %749 = vmatpush1.bf16.msra.mxu0 0
  %750 = vmatprep.subr.bf16.mxu0 0
  %751 = vmatpush1.bf16.msra.mxu0 0
  %752 = vmatprep.subr.bf16.mxu0 0
  %753 = vmatpush1.bf16.msra.mxu0 %v733
  %754 = vmatprep.subr.bf16.mxu0 0
  %755 = vmatpush2.bf16.msra.mxu0 0
  %756 = vmatprep.subr.bf16.mxu0 0
  %757 = vmatpush2.bf16.msra.mxu0 0
  %758 = vmatprep.subr.bf16.mxu0 0
  %759 = vmatpush2.bf16.msra.mxu0 0
  %760 = vmatprep.subr.bf16.mxu0 0
  %761 = vmatpush2.bf16.msra.mxu0 0
  %762 = vmatprep.subr.bf16.mxu0 0
  %763 = vmatpush2.bf16.msra.mxu0 0
  %764 = vmatprep.subr.bf16.mxu0 0
  %765 = vmatpush2.bf16.msra.mxu0 0
  %766 = vmatprep.subr.bf16.mxu0 0
  %767 = vmatpush2.bf16.msra.mxu0 0
  %768 = vmatprep.subr.bf16.mxu0 0
  %769 = vmatpush2.bf16.msra.mxu0 0
  %770 = vmatprep.mubr.bf16.mxu0 0
  %771 = vmatmul.mubr.bf16.gmra.mxu0 %v736
  %v772 = vpop.f32.mrf.mxu0
  %v773 = vadd.f32 0.0, %v772
  %v774 = vpop.f32.mrf.mxu0
  %v775 = vpop.f32.mrf.mxu0
  %v776 = vadd.f32 0.0, %v775
  %v777 = vpop.f32.mrf.mxu0
  %778 = vdwg.mxu0
  %779 = vrot.lane.b32.xlu0 %v238, 64
  %v780 = vpop.permute.xlu0 %779
  %v783 = vsel %vm145, %v731, 0
  %785 = vmatprep.subr.bf16.mxu0 0
  %786 = vmatpush1.bf16.msra.mxu0 0
  %787 = vmatprep.subr.bf16.mxu0 0
  %788 = vmatpush1.bf16.msra.mxu0 0
  %789 = vmatprep.subr.bf16.mxu0 0
  %790 = vmatpush1.bf16.msra.mxu0 0
  %791 = vmatprep.subr.bf16.mxu0 0
  %792 = vmatpush1.bf16.msra.mxu0 0
  %793 = vmatprep.subr.bf16.mxu0 0
  %794 = vmatpush1.bf16.msra.mxu0 0
  %795 = vmatprep.subr.bf16.mxu0 0
  %796 = vmatpush1.bf16.msra.mxu0 0
  %797 = vmatprep.subr.bf16.mxu0 0
  %798 = vmatpush1.bf16.msra.mxu0 0
  %799 = vmatprep.subr.bf16.mxu0 0
  %800 = vmatpush1.bf16.msra.mxu0 %v780
  %801 = vmatprep.subr.bf16.mxu0 0
  %802 = vmatpush2.bf16.msra.mxu0 0
  %803 = vmatprep.subr.bf16.mxu0 0
  %804 = vmatpush2.bf16.msra.mxu0 0
  %805 = vmatprep.subr.bf16.mxu0 0
  %806 = vmatpush2.bf16.msra.mxu0 0
  %807 = vmatprep.subr.bf16.mxu0 0
  %808 = vmatpush2.bf16.msra.mxu0 0
  %809 = vmatprep.subr.bf16.mxu0 0
  %810 = vmatpush2.bf16.msra.mxu0 0
  %811 = vmatprep.subr.bf16.mxu0 0
  %812 = vmatpush2.bf16.msra.mxu0 0
  %813 = vmatprep.subr.bf16.mxu0 0
  %814 = vmatpush2.bf16.msra.mxu0 0
  %815 = vmatprep.subr.bf16.mxu0 0
  %816 = vmatpush2.bf16.msra.mxu0 0
  %817 = vmatprep.mubr.bf16.mxu0 0
  %818 = vmatmul.mubr.bf16.gmra.mxu0 %v783
  %v819 = vpop.f32.mrf.mxu0
  %v820 = vadd.f32 0.0, %v819
  %v821 = vpop.f32.mrf.mxu0
  %v822 = vpop.f32.mrf.mxu0
  %v823 = vadd.f32 0.0, %v822
  %v824 = vpop.f32.mrf.mxu0
  %825 = vdwg.mxu0
  %v826 = vrcp.pop %v720
  %v827 = vrcp.pop %v723
  %v828 = vrcp.pop %v726
  %v829 = vrcp.pop %v729
  %v830 = vmul.f32 %v773, %v826
  %v831 = vmul.f32 %v776, %v827
  %v832 = vmul.f32 %v820, %v828
  %v833 = vmul.f32 %v823, %v829
  %v834 = vpack.c.bf16 %v831, %v830
  %v835 = vpack.c.bf16 %v833, %v832
  %v838 = vunpack.c.l.b16 %v834
  %v839 = vunpack.c.h.b16 %v834
  %v840 = vunpack.c.l.b16 %v835
  %v841 = vunpack.c.h.b16 %v835
  %v842 = vpack.c.b16 %v838, %v838
  %v843 = vpack.c.b16 %v839, %v839
  %v844 = vpack.c.b16 %v840, %v840
  %v845 = vpack.c.b16 %v841, %v841
  %846 = vrot.lane.b32.xlu0 %v842, 64
  %v847 = vpop.permute.xlu0 %846
  %848 = vrot.lane.b32.xlu0 %v843, 64
  %v849 = vpop.permute.xlu0 %848
  %850 = vrot.lane.b32.xlu0 %v844, 64
  %v851 = vpop.permute.xlu0 %850
  %852 = vrot.lane.b32.xlu0 %v845, 64
  %v853 = vpop.permute.xlu0 %852
  %vm858 = vcmask 781824
  %859 = vst.msk [vmem:[%s1] sm:$0xf] %vm858, %v847
  %860 = vst.msk [vmem:[%s1 + $0x4] sm:$0xf] %vm858, %v849
  %861 = vst.msk [vmem:[%s1 + $0x8] sm:$0xf] %vm858, %v851
  %862 = vst.msk [vmem:[%s1 + $0xc] sm:$0xf] %vm858, %v853
  %863 = vrot.lane.b32.xlu0 %v28, 32
  %v864 = vpop.permute.xlu0 %863
  %865 = vrot.lane.b32.xlu0 %v33, 32
  %v866 = vpop.permute.xlu0 %865
  %v868 = vsel %vm34, %v864, 0
  %v871 = vsel %vm34, %v866, 0
  %873 = vmatprep.subr.bf16.mxu0 0
  %874 = vmatpush1.bf16.xpose.msra.mxu0 0
  %875 = vmatprep.subr.bf16.mxu0 0
  %876 = vmatpush1.bf16.xpose.msra.mxu0 0
  %877 = vmatprep.subr.bf16.mxu0 0
  %878 = vmatpush1.bf16.xpose.msra.mxu0 0
  %879 = vmatprep.subr.bf16.mxu0 0
  %880 = vmatpush1.bf16.xpose.msra.mxu0 0
  %881 = vmatprep.subr.bf16.mxu0 0
  %882 = vmatpush1.bf16.xpose.msra.mxu0 0
  %883 = vmatprep.subr.bf16.mxu0 0
  %884 = vmatpush1.bf16.xpose.msra.mxu0 0
  %885 = vmatprep.subr.bf16.mxu0 0
  %886 = vmatpush1.bf16.xpose.msra.mxu0 0
  %887 = vmatprep.subr.bf16.mxu0 0
  %888 = vmatpush1.bf16.xpose.msra.mxu0 %v871
  %889 = vmatprep.subr.bf16.mxu0 0
  %890 = vmatpush2.bf16.xpose.msra.mxu0 0
  %891 = vmatprep.subr.bf16.mxu0 0
  %892 = vmatpush2.bf16.xpose.msra.mxu0 0
  %893 = vmatprep.subr.bf16.mxu0 0
  %894 = vmatpush2.bf16.xpose.msra.mxu0 0
  %895 = vmatprep.subr.bf16.mxu0 0
  %896 = vmatpush2.bf16.xpose.msra.mxu0 0
  %897 = vmatprep.subr.bf16.mxu0 0
  %898 = vmatpush2.bf16.xpose.msra.mxu0 0
  %899 = vmatprep.subr.bf16.mxu0 0
  %900 = vmatpush2.bf16.xpose.msra.mxu0 0
  %901 = vmatprep.subr.bf16.mxu0 0
  %902 = vmatpush2.bf16.xpose.msra.mxu0 0
  %903 = vmatprep.subr.bf16.mxu0 0
  %904 = vmatpush2.bf16.xpose.msra.mxu0 0
  %905 = vmatprep.mubr.bf16.mxu0 0
  %906 = vmatmul.mubr.bf16.gmra.mxu0 %v868
  %v907 = vpop.f32.mrf.mxu0
  %v908 = vadd.f32 0.0, %v907
  %v909 = vpop.f32.mrf.mxu0
  %v910 = vpop.f32.mrf.mxu0
  %v911 = vadd.f32 0.0, %v910
  %v912 = vpop.f32.mrf.mxu0
  %913 = vdwg.mxu0
  %914 = vrot.lane.b32.xlu0 %v86, 32
  %v915 = vpop.permute.xlu0 %914
  %916 = vrot.lane.b32.xlu0 %v91, 32
  %v917 = vpop.permute.xlu0 %916
  %v919 = vsel %vm34, %v915, 0
  %v922 = vsel %vm34, %v917, 0
  %924 = vmatprep.subr.bf16.mxu0 0
  %925 = vmatpush1.bf16.xpose.msra.mxu0 0
  %926 = vmatprep.subr.bf16.mxu0 0
  %927 = vmatpush1.bf16.xpose.msra.mxu0 0
  %928 = vmatprep.subr.bf16.mxu0 0
  %929 = vmatpush1.bf16.xpose.msra.mxu0 0
  %930 = vmatprep.subr.bf16.mxu0 0
  %931 = vmatpush1.bf16.xpose.msra.mxu0 0
  %932 = vmatprep.subr.bf16.mxu0 0
  %933 = vmatpush1.bf16.xpose.msra.mxu0 0
  %934 = vmatprep.subr.bf16.mxu0 0
  %935 = vmatpush1.bf16.xpose.msra.mxu0 0
  %936 = vmatprep.subr.bf16.mxu0 0
  %937 = vmatpush1.bf16.xpose.msra.mxu0 0
  %938 = vmatprep.subr.bf16.mxu0 0
  %939 = vmatpush1.bf16.xpose.msra.mxu0 %v922
  %940 = vmatprep.subr.bf16.mxu0 0
  %941 = vmatpush2.bf16.xpose.msra.mxu0 0
  %942 = vmatprep.subr.bf16.mxu0 0
  %943 = vmatpush2.bf16.xpose.msra.mxu0 0
  %944 = vmatprep.subr.bf16.mxu0 0
  %945 = vmatpush2.bf16.xpose.msra.mxu0 0
  %946 = vmatprep.subr.bf16.mxu0 0
  %947 = vmatpush2.bf16.xpose.msra.mxu0 0
  %948 = vmatprep.subr.bf16.mxu0 0
  %949 = vmatpush2.bf16.xpose.msra.mxu0 0
  %950 = vmatprep.subr.bf16.mxu0 0
  %951 = vmatpush2.bf16.xpose.msra.mxu0 0
  %952 = vmatprep.subr.bf16.mxu0 0
  %953 = vmatpush2.bf16.xpose.msra.mxu0 0
  %954 = vmatprep.subr.bf16.mxu0 0
  %955 = vmatpush2.bf16.xpose.msra.mxu0 0
  %956 = vmatprep.mubr.bf16.mxu0 0
  %957 = vmatmul.mubr.bf16.gmra.mxu0 %v919
  %v958 = vpop.f32.mrf.mxu0
  %v959 = vadd.f32 0.0, %v958
  %v960 = vpop.f32.mrf.mxu0
  %v961 = vpop.f32.mrf.mxu0
  %v962 = vadd.f32 0.0, %v961
  %v963 = vpop.f32.mrf.mxu0
  %964 = vdwg.mxu0
  %v965 = vsel %vm140, %v908, -1e+30
  %v966 = vsel %vm140, %v911, -1e+30
  %v967 = vsel %vm140, %v959, -1e+30
  %v968 = vsel %vm140, %v962, -1e+30
  %v969 = vsel %vm145, %v965, -inf
  %970 = vmax.xlane.f32.xlu0 %v969
  %v971 = vpop.xlane.xlu0 %970
  %v972 = vsel %vm145, %v966, -inf
  %973 = vmax.xlane.f32.xlu0 %v972
  %v974 = vpop.xlane.xlu0 %973
  %v975 = vsel %vm145, %v967, -inf
  %976 = vmax.xlane.f32.xlu0 %v975
  %v977 = vpop.xlane.xlu0 %976
  %v978 = vsel %vm145, %v968, -inf
  %979 = vmax.xlane.f32.xlu0 %v978
  %v980 = vpop.xlane.xlu0 %979
  %v981 = vsub.f32 %v965, %v971
  %v982 = vsub.f32 %v966, %v974
  %v983 = vsub.f32 %v967, %v977
  %v984 = vsub.f32 %v968, %v980
  %v985 = vmul.f32 %v981, 1.442695
  %v986 = vpow.pop %v985
  %v987 = vmul.f32 %v982, 1.442695
  %v988 = vpow.pop %v987
  %v989 = vmul.f32 %v983, 1.442695
  %v990 = vpow.pop %v989
  %v991 = vmul.f32 %v984, 1.442695
  %v992 = vpow.pop %v991
  %v993 = vsel %vm145, %v986, 0.0
  %994 = vadd.xlane.f32.xlu0 %v993
  %v995 = vpop.xlane.xlu0 %994
  %v996 = vsel %vm145, %v988, 0.0
  %997 = vadd.xlane.f32.xlu0 %v996
  %v998 = vpop.xlane.xlu0 %997
  %v999 = vsel %vm145, %v990, 0.0
  %1000 = vadd.xlane.f32.xlu0 %v999
  %v1001 = vpop.xlane.xlu0 %1000
  %v1002 = vsel %vm145, %v992, 0.0
  %1003 = vadd.xlane.f32.xlu0 %v1002
  %v1004 = vpop.xlane.xlu0 %1003
  %v1005 = vpack.c.bf16 %v988, %v986
  %v1006 = vpack.c.bf16 %v992, %v990
  %1007 = vrot.lane.b32.xlu0 %v188, 32
  %v1008 = vpop.permute.xlu0 %1007
  %v1011 = vsel %vm145, %v1005, 0
  %1013 = vmatprep.subr.bf16.mxu0 0
  %1014 = vmatpush1.bf16.msra.mxu0 0
  %1015 = vmatprep.subr.bf16.mxu0 0
  %1016 = vmatpush1.bf16.msra.mxu0 0
  %1017 = vmatprep.subr.bf16.mxu0 0
  %1018 = vmatpush1.bf16.msra.mxu0 0
  %1019 = vmatprep.subr.bf16.mxu0 0
  %1020 = vmatpush1.bf16.msra.mxu0 0
  %1021 = vmatprep.subr.bf16.mxu0 0
  %1022 = vmatpush1.bf16.msra.mxu0 0
  %1023 = vmatprep.subr.bf16.mxu0 0
  %1024 = vmatpush1.bf16.msra.mxu0 0
  %1025 = vmatprep.subr.bf16.mxu0 0
  %1026 = vmatpush1.bf16.msra.mxu0 0
  %1027 = vmatprep.subr.bf16.mxu0 0
  %1028 = vmatpush1.bf16.msra.mxu0 %v1008
  %1029 = vmatprep.subr.bf16.mxu0 0
  %1030 = vmatpush2.bf16.msra.mxu0 0
  %1031 = vmatprep.subr.bf16.mxu0 0
  %1032 = vmatpush2.bf16.msra.mxu0 0
  %1033 = vmatprep.subr.bf16.mxu0 0
  %1034 = vmatpush2.bf16.msra.mxu0 0
  %1035 = vmatprep.subr.bf16.mxu0 0
  %1036 = vmatpush2.bf16.msra.mxu0 0
  %1037 = vmatprep.subr.bf16.mxu0 0
  %1038 = vmatpush2.bf16.msra.mxu0 0
  %1039 = vmatprep.subr.bf16.mxu0 0
  %1040 = vmatpush2.bf16.msra.mxu0 0
  %1041 = vmatprep.subr.bf16.mxu0 0
  %1042 = vmatpush2.bf16.msra.mxu0 0
  %1043 = vmatprep.subr.bf16.mxu0 0
  %1044 = vmatpush2.bf16.msra.mxu0 0
  %1045 = vmatprep.mubr.bf16.mxu0 0
  %1046 = vmatmul.mubr.bf16.gmra.mxu0 %v1011
  %v1047 = vpop.f32.mrf.mxu0
  %v1048 = vadd.f32 0.0, %v1047
  %v1049 = vpop.f32.mrf.mxu0
  %v1050 = vpop.f32.mrf.mxu0
  %v1051 = vadd.f32 0.0, %v1050
  %v1052 = vpop.f32.mrf.mxu0
  %1053 = vdwg.mxu0
  %1054 = vrot.lane.b32.xlu0 %v238, 32
  %v1055 = vpop.permute.xlu0 %1054
  %v1058 = vsel %vm145, %v1006, 0
  %1060 = vmatprep.subr.bf16.mxu0 0
  %1061 = vmatpush1.bf16.msra.mxu0 0
  %1062 = vmatprep.subr.bf16.mxu0 0
  %1063 = vmatpush1.bf16.msra.mxu0 0
  %1064 = vmatprep.subr.bf16.mxu0 0
  %1065 = vmatpush1.bf16.msra.mxu0 0
  %1066 = vmatprep.subr.bf16.mxu0 0
  %1067 = vmatpush1.bf16.msra.mxu0 0
  %1068 = vmatprep.subr.bf16.mxu0 0
  %1069 = vmatpush1.bf16.msra.mxu0 0
  %1070 = vmatprep.subr.bf16.mxu0 0
  %1071 = vmatpush1.bf16.msra.mxu0 0
  %1072 = vmatprep.subr.bf16.mxu0 0
  %1073 = vmatpush1.bf16.msra.mxu0 0
  %1074 = vmatprep.subr.bf16.mxu0 0
  %1075 = vmatpush1.bf16.msra.mxu0 %v1055
  %1076 = vmatprep.subr.bf16.mxu0 0
  %1077 = vmatpush2.bf16.msra.mxu0 0
  %1078 = vmatprep.subr.bf16.mxu0 0
  %1079 = vmatpush2.bf16.msra.mxu0 0
  %1080 = vmatprep.subr.bf16.mxu0 0
  %1081 = vmatpush2.bf16.msra.mxu0 0
  %1082 = vmatprep.subr.bf16.mxu0 0
  %1083 = vmatpush2.bf16.msra.mxu0 0
  %1084 = vmatprep.subr.bf16.mxu0 0
  %1085 = vmatpush2.bf16.msra.mxu0 0
  %1086 = vmatprep.subr.bf16.mxu0 0
  %1087 = vmatpush2.bf16.msra.mxu0 0
  %1088 = vmatprep.subr.bf16.mxu0 0
  %1089 = vmatpush2.bf16.msra.mxu0 0
  %1090 = vmatprep.subr.bf16.mxu0 0
  %1091 = vmatpush2.bf16.msra.mxu0 0
  %1092 = vmatprep.mubr.bf16.mxu0 0
  %1093 = vmatmul.mubr.bf16.gmra.mxu0 %v1058
  %v1094 = vpop.f32.mrf.mxu0
  %v1095 = vadd.f32 0.0, %v1094
  %v1096 = vpop.f32.mrf.mxu0
  %v1097 = vpop.f32.mrf.mxu0
  %v1098 = vadd.f32 0.0, %v1097
  %v1099 = vpop.f32.mrf.mxu0
  %1100 = vdwg.mxu0
  %v1101 = vrcp.pop %v995
  %v1102 = vrcp.pop %v998
  %v1103 = vrcp.pop %v1001
  %v1104 = vrcp.pop %v1004
  %v1105 = vmul.f32 %v1048, %v1101
  %v1106 = vmul.f32 %v1051, %v1102
  %v1107 = vmul.f32 %v1095, %v1103
  %v1108 = vmul.f32 %v1098, %v1104
  %v1109 = vpack.c.bf16 %v1106, %v1105
  %v1110 = vpack.c.bf16 %v1108, %v1107
  %v1113 = vunpack.c.l.b16 %v1109
  %v1114 = vunpack.c.h.b16 %v1109
  %v1115 = vunpack.c.l.b16 %v1110
  %v1116 = vunpack.c.h.b16 %v1110
  %v1117 = vpack.c.b16 %v1113, %v1113
  %v1118 = vpack.c.b16 %v1114, %v1114
  %v1119 = vpack.c.b16 %v1115, %v1115
  %v1120 = vpack.c.b16 %v1116, %v1116
  %1121 = vrot.lane.b32.xlu0 %v1117, 96
  %v1122 = vpop.permute.xlu0 %1121
  %1123 = vrot.lane.b32.xlu0 %v1118, 96
  %v1124 = vpop.permute.xlu0 %1123
  %1125 = vrot.lane.b32.xlu0 %v1119, 96
  %v1126 = vpop.permute.xlu0 %1125
  %1127 = vrot.lane.b32.xlu0 %v1120, 96
  %v1128 = vpop.permute.xlu0 %1127
  %vm1133 = vcmask 1044224
  %1134 = vst.msk [vmem:[%s1] sm:$0xf] %vm1133, %v1122
  %1135 = vst.msk [vmem:[%s1 + $0x4] sm:$0xf] %vm1133, %v1124
  %1136 = vst.msk [vmem:[%s1 + $0x8] sm:$0xf] %vm1133, %v1126
  %1137 = vst.msk [vmem:[%s1 + $0xc] sm:$0xf] %vm1133, %v1128
  // Predicated region
  $region6: #{vpt_deep_forward.14} parent=0 // pred_check
    _
  $region7: #{vpt_deep_forward.14} parent=0 // pred_check_branch
    %1139 = sbr.rel (0) target = $region9
  $region8: #{vpt_deep_forward.14} parent=0 // pred_region
    _
  $region9: #{vpt_deep_forward.14} parent=0 // pred_fallthru
    _
  // Predicated region
  $region10: #{vpt_deep_forward.14} parent=0 // pred_check
    _
  $region11: #{vpt_deep_forward.14} parent=0 // pred_check_branch
    %1141 = sbr.rel (0) target = $region13
  $region12: #{vpt_deep_forward.14} parent=0 // pred_region
    _
  $region13: #{vpt_deep_forward.14} parent=0 // pred_fallthru
    _

// kernel: vpt_deep_forward.16
$region0: #{vpt_deep_forward.16}
  #allocation0 [shape = 'u32[]', space=smem, size = 0x4, offset = 0x4, fixed_abs, tag = 'smem constant byte address 0x4 - core index']
  #allocation1 [shape = 'u32[144,128]{1,0:T(1,128)}', space=vmem, size = 0x12000, scoped, tag = 'internal scratch']
  #allocation2 [shape = 'bf16[32,128]{1,0:T(8,128)(2,1)}', space=vmem, size = 0x2000, scoped, tag = 'scratch operand']
  %s0 = inlined_call_operand.vmem [shape: bf16[32,128], index: 0, kind: input, shape index: {}]
  %s1 = inlined_call_operand.vmem [shape: f32[1,128], index: 1, kind: input, shape index: {}]
  %s2 = inlined_call_operand.vmem [shape: f32[1,128], index: 2, kind: input, shape index: {}]
  %s3 = inlined_call_operand.vmem [shape: bf16[128,256], index: 3, kind: input, shape index: {}]
  %s4 = inlined_call_operand.vmem [shape: f32[1,256], index: 4, kind: input, shape index: {}]
  %s5 = inlined_call_operand.vmem [shape: bf16[32,256], index: 5, kind: output, shape index: {}]
  %s6 = sld [smem:[#allocation0]]
  $region34: #{vpt_deep_forward.16} parent=0
    _
  %s8 = ssub.s32 1, %s6
  %s9 = scalar_select 0, %s8, %s6
  // Predicated region
  $region2: #{vpt_deep_forward.16} parent=0 // pred_check
    _
  $region3: #{vpt_deep_forward.16} parent=0 // pred_check_branch
    %11 = sbr.rel (0) target = $region5
  $region4: #{vpt_deep_forward.16} parent=0 // pred_region
    _
  $region5: #{vpt_deep_forward.16} parent=0 // pred_fallthru
    _
  // Predicated region
  $region6: #{vpt_deep_forward.16} parent=0 // pred_check
    _
  $region7: #{vpt_deep_forward.16} parent=0 // pred_check_branch
    %13 = sbr.rel (0) target = $region9
  $region8: #{vpt_deep_forward.16} parent=0 // pred_region
    _
  $region9: #{vpt_deep_forward.16} parent=0 // pred_fallthru
    _
  // Predicated region
  $region10: #{vpt_deep_forward.16} parent=0 // pred_check
    _
  $region11: #{vpt_deep_forward.16} parent=0 // pred_check_branch
    %15 = sbr.rel (0) target = $region13
  $region12: #{vpt_deep_forward.16} parent=0 // pred_region
    _
  $region13: #{vpt_deep_forward.16} parent=0 // pred_fallthru
    _
  // Predicated region
  $region14: #{vpt_deep_forward.16} parent=0 // pred_check
    _
  $region15: #{vpt_deep_forward.16} parent=0 // pred_check_branch
    %17 = sbr.rel (0) target = $region17
  $region16: #{vpt_deep_forward.16} parent=0 // pred_region
    _
  $region17: #{vpt_deep_forward.16} parent=0 // pred_fallthru
    _
  // Predicated region
  $region18: #{vpt_deep_forward.16} parent=0 // pred_check
    _
  $region19: #{vpt_deep_forward.16} parent=0 // pred_check_branch
    %19 = sbr.rel (0) target = $region21
  $region20: #{vpt_deep_forward.16} parent=0 // pred_region
    _
  $region21: #{vpt_deep_forward.16} parent=0 // pred_fallthru
    _
  %p21 = scmp.eq.s32.totalorder 0, 0
  // Predicated region
  $region22: #{vpt_deep_forward.16} parent=0 // pred_check
    %p22 = pneg %p21
  $region23: #{vpt_deep_forward.16} parent=0 // pred_check_branch
    %24 = sbr.rel (%p22) target = $region25
  $region24: #{vpt_deep_forward.16} parent=0 // pred_region
    %v25 = vld [vmem:[%s0] sm:$0xf]
    %v26 = vld [vmem:[%s0 + $0x4] sm:$0xf]
    %v27 = vld [vmem:[%s0 + $0x8] sm:$0xf]
    %v28 = vld [vmem:[%s0 + $0xc] sm:$0xf]
    %v29 = vunpack.c.l.bf16 %v25
    %v30 = vunpack.c.l.bf16 %v26
    %v31 = vunpack.c.l.bf16 %v27
    %v32 = vunpack.c.l.bf16 %v28
    %33 = vadd.xlane.f32.xlu0 %v29
    %v34 = vpop.xlane.xlu0 %33
    %35 = vadd.xlane.f32.xlu0 %v30
    %v36 = vpop.xlane.xlu0 %35
    %37 = vadd.xlane.f32.xlu0 %v31
    %v38 = vpop.xlane.xlu0 %37
    %39 = vadd.xlane.f32.xlu0 %v32
    %v40 = vpop.xlane.xlu0 %39
    %v41 = vrcp.pop 128.0
    %v42 = vmul.f32 %v34, %v41
    %v43 = vmul.f32 %v36, %v41
    %v44 = vmul.f32 %v38, %v41
    %v45 = vmul.f32 %v40, %v41
    %v46 = vsub.f32 %v29, %v42
    %v47 = vsub.f32 %v30, %v43
    %v48 = vsub.f32 %v31, %v44
    %v49 = vsub.f32 %v32, %v45
    %v50 = vmul.f32 %v46, %v46
    %v51 = vmul.f32 %v47, %v47
    %v52 = vmul.f32 %v48, %v48
    %v53 = vmul.f32 %v49, %v49
    %54 = vadd.xlane.f32.xlu0 %v50
    %v55 = vpop.xlane.xlu0 %54
    %56 = vadd.xlane.f32.xlu0 %v51
    %v57 = vpop.xlane.xlu0 %56
    %58 = vadd.xlane.f32.xlu0 %v52
    %v59 = vpop.xlane.xlu0 %58
    %60 = vadd.xlane.f32.xlu0 %v53
    %v61 = vpop.xlane.xlu0 %60
    %v62 = vmul.f32 %v55, %v41
    %v63 = vmul.f32 %v57, %v41
    %v64 = vmul.f32 %v59, %v41
    %v65 = vmul.f32 %v61, %v41
    %v66 = vadd.f32 %v62, 1e-06
    %v67 = vadd.f32 %v63, 1e-06
    %v68 = vadd.f32 %v64, 1e-06
    %v69 = vadd.f32 %v65, 1e-06
    %v70 = vrsqrt.pop %v66
    %v71 = vrsqrt.pop %v67
    %v72 = vrsqrt.pop %v68
    %v73 = vrsqrt.pop %v69
    %v74 = vmul.f32 %v46, %v70
    %v75 = vmul.f32 %v47, %v71
    %v76 = vmul.f32 %v48, %v72
    %v77 = vmul.f32 %v49, %v73
    %v78 = vld [vmem:[%s1] sm:$0x1]
    %v80 = vlaneseq
    %v81 = vshrl.u32 %v80, 7
    %v82 = vsub.s32 0, %v81
    %v83 = vrot.slane %v78, %v82
    %v85 = vmul.f32 %v74, %v83
    %v86 = vmul.f32 %v75, %v83
    %v87 = vmul.f32 %v76, %v83
    %v88 = vmul.f32 %v77, %v83
    %v89 = vld [vmem:[%s2] sm:$0x1]
    %v91 = vlaneseq
    %v92 = vshrl.u32 %v91, 7
    %v93 = vsub.s32 0, %v92
    %v94 = vrot.slane %v89, %v93
    %v96 = vadd.f32 %v85, %v94
    %v97 = vadd.f32 %v86, %v94
    %v98 = vadd.f32 %v87, %v94
    %v99 = vadd.f32 %v88, %v94
    %v100 = vpack.c.bf16 %v97, %v96
    %v101 = vpack.c.bf16 %v99, %v98
    %v104 = vunpack.c.l.b16 %v100
    %v105 = vunpack.c.h.b16 %v100
    %v106 = vunpack.c.l.b16 %v101
    %v107 = vunpack.c.h.b16 %v101
    %v108 = vpack.c.b16 %v104, %v104
    %v109 = vpack.c.b16 %v105, %v105
    %v110 = vpack.c.b16 %v106, %v106
    %v111 = vpack.c.b16 %v107, %v107
    %116 = vst [vmem:[#allocation2] sm:$0xf] %v108
    %117 = vst [vmem:[#allocation2 + $0x4] sm:$0xf] %v109
    %118 = vst [vmem:[#allocation2 + $0x8] sm:$0xf] %v110
    %119 = vst [vmem:[#allocation2 + $0xc] sm:$0xf] %v111
  $region25: #{vpt_deep_forward.16} parent=0 // pred_fallthru
    _
  %v120 = vld [vmem:[#allocation2] sm:$0xf]
  %v121 = vld [vmem:[#allocation2 + $0x4] sm:$0xf]
  %v122 = vld [vmem:[#allocation2 + $0x8] sm:$0xf]
  %v123 = vld [vmem:[#allocation2 + $0xc] sm:$0xf]
  %v124 = vld [vmem:[%s3] sm:$0xff]
  %v125 = vld [vmem:[%s3 + $0x8] sm:$0xff]
  %v126 = vld [vmem:[%s3 + $0x10] sm:$0xff]
  %v127 = vld [vmem:[%s3 + $0x18] sm:$0xff]
  %v128 = vld [vmem:[%s3 + $0x20] sm:$0xff]
  %v129 = vld [vmem:[%s3 + $0x28] sm:$0xff]
  %v130 = vld [vmem:[%s3 + $0x30] sm:$0xff]
  %v131 = vld [vmem:[%s3 + $0x38] sm:$0xff]
  %v132 = vld [vmem:[%s3 + $0x40] sm:$0xff]
  %v133 = vld [vmem:[%s3 + $0x48] sm:$0xff]
  %v134 = vld [vmem:[%s3 + $0x50] sm:$0xff]
  %v135 = vld [vmem:[%s3 + $0x58] sm:$0xff]
  %v136 = vld [vmem:[%s3 + $0x60] sm:$0xff]
  %v137 = vld [vmem:[%s3 + $0x68] sm:$0xff]
  %v138 = vld [vmem:[%s3 + $0x70] sm:$0xff]
  %v139 = vld [vmem:[%s3 + $0x78] sm:$0xff]
  %v140 = vld [vmem:[%s4] sm:$0x3]
  %v142 = vlaneseq
  %v143 = vshrl.u32 %v142, 7
  %v144 = vsub.s32 0, %v143
  %v145 = vrot.slane %v140, %v144
  %v146 = vlaneseq
  %v147 = vshrl.u32 %v146, 7
  %v148 = vsub.s32 1, %v147
  %v149 = vrot.slane %v140, %v148
  %v156 = vunpack.c.l.b16 %v120
  %v157 = vunpack.c.l.b16 %v121
  %v158 = vunpack.c.l.b16 %v122
  %v159 = vunpack.c.l.b16 %v123
  %v160 = vpack.c.b16 %v157, %v156
  %v161 = vpack.c.b16 %v159, %v158
  %v180 = vunpack.c.l.b16 %v124
  %v181 = vunpack.c.h.b16 %v124
  %v182 = vunpack.c.l.b16 %v125
  %v183 = vunpack.c.h.b16 %v125
  %v184 = vunpack.c.l.b16 %v126
  %v185 = vunpack.c.h.b16 %v126
  %v186 = vunpack.c.l.b16 %v127
  %v187 = vunpack.c.h.b16 %v127
  %v188 = vunpack.c.l.b16 %v128
  %v189 = vunpack.c.h.b16 %v128
  %v190 = vunpack.c.l.b16 %v129
  %v191 = vunpack.c.h.b16 %v129
  %v192 = vunpack.c.l.b16 %v130
  %v193 = vunpack.c.h.b16 %v130
  %v194 = vunpack.c.l.b16 %v131
  %v195 = vunpack.c.h.b16 %v131
  %v196 = vunpack.c.l.b16 %v132
  %v197 = vunpack.c.h.b16 %v132
  %v198 = vunpack.c.l.b16 %v133
  %v199 = vunpack.c.h.b16 %v133
  %v200 = vunpack.c.l.b16 %v134
  %v201 = vunpack.c.h.b16 %v134
  %v202 = vunpack.c.l.b16 %v135
  %v203 = vunpack.c.h.b16 %v135
  %v204 = vunpack.c.l.b16 %v136
  %v205 = vunpack.c.h.b16 %v136
  %v206 = vunpack.c.l.b16 %v137
  %v207 = vunpack.c.h.b16 %v137
  %v208 = vunpack.c.l.b16 %v138
  %v209 = vunpack.c.h.b16 %v138
  %v210 = vunpack.c.l.b16 %v139
  %v211 = vunpack.c.h.b16 %v139
  %v212 = vpack.c.b16 %v182, %v180
  %v213 = vpack.c.b16 %v183, %v181
  %v214 = vpack.c.b16 %v186, %v184
  %v215 = vpack.c.b16 %v187, %v185
  %v216 = vpack.c.b16 %v190, %v188
  %v217 = vpack.c.b16 %v191, %v189
  %v218 = vpack.c.b16 %v194, %v192
  %v219 = vpack.c.b16 %v195, %v193
  %v220 = vpack.c.b16 %v198, %v196
  %v221 = vpack.c.b16 %v199, %v197
  %v222 = vpack.c.b16 %v202, %v200
  %v223 = vpack.c.b16 %v203, %v201
  %v224 = vpack.c.b16 %v206, %v204
  %v225 = vpack.c.b16 %v207, %v205
  %v226 = vpack.c.b16 %v210, %v208
  %v227 = vpack.c.b16 %v211, %v209
  %244 = vmatprep.subr.bf16.mxu0 %v227
  %245 = vmatpush1.bf16.msra.mxu0 %v226
  %246 = vmatprep.subr.bf16.mxu0 %v225
  %247 = vmatpush1.bf16.msra.mxu0 %v224
  %248 = vmatprep.subr.bf16.mxu0 %v223
  %249 = vmatpush1.bf16.msra.mxu0 %v222
  %250 = vmatprep.subr.bf16.mxu0 %v221
  %251 = vmatpush1.bf16.msra.mxu0 %v220
  %252 = vmatprep.subr.bf16.mxu0 %v219
  %253 = vmatpush1.bf16.msra.mxu0 %v218
  %254 = vmatprep.subr.bf16.mxu0 %v217
  %255 = vmatpush1.bf16.msra.mxu0 %v216
  %256 = vmatprep.subr.bf16.mxu0 %v215
  %257 = vmatpush1.bf16.msra.mxu0 %v214
  %258 = vmatprep.subr.bf16.mxu0 %v213
  %259 = vmatpush1.bf16.msra.mxu0 %v212
  %260 = vmatprep.subr.bf16.mxu0 0
  %261 = vmatpush2.bf16.msra.mxu0 0
  %262 = vmatprep.subr.bf16.mxu0 0
  %263 = vmatpush2.bf16.msra.mxu0 0
  %264 = vmatprep.subr.bf16.mxu0 0
  %265 = vmatpush2.bf16.msra.mxu0 0
  %266 = vmatprep.subr.bf16.mxu0 0
  %267 = vmatpush2.bf16.msra.mxu0 0
  %268 = vmatprep.subr.bf16.mxu0 0
  %269 = vmatpush2.bf16.msra.mxu0 0
  %270 = vmatprep.subr.bf16.mxu0 0
  %271 = vmatpush2.bf16.msra.mxu0 0
  %272 = vmatprep.subr.bf16.mxu0 0
  %273 = vmatpush2.bf16.msra.mxu0 0
  %274 = vmatprep.subr.bf16.mxu0 0
  %275 = vmatpush2.bf16.msra.mxu0 0
  %276 = vmatprep.mubr.bf16.mxu0 0
  %277 = vmatmul.mubr.bf16.gmra.mxu0 %v160
  %v278 = vpop.f32.mrf.mxu0
  %v279 = vadd.f32 %v145, %v278
  %v280 = vpop.f32.mrf.mxu0
  %v281 = vadd.f32 %v149, %v280
  %v282 = vpop.f32.mrf.mxu0
  %v283 = vadd.f32 %v145, %v282
  %v284 = vpop.f32.mrf.mxu0
  %v285 = vadd.f32 %v149, %v284
  %286 = vmatprep.mubr.bf16.mxu0 0
  %287 = vmatmul.mubr.bf16.gmra.mxu0 %v161
  %v288 = vpop.f32.mrf.mxu0
  %v289 = vadd.f32 %v145, %v288
  %v290 = vpop.f32.mrf.mxu0
  %v291 = vadd.f32 %v149, %v290
  %v292 = vpop.f32.mrf.mxu0
  %v293 = vadd.f32 %v145, %v292
  %v294 = vpop.f32.mrf.mxu0
  %v295 = vadd.f32 %v149, %v294
  %296 = vdwg.mxu0
  %v297 = vmul.f32 %v279, 0.5
  %v298 = vmul.f32 %v281, 0.5
  %v299 = vmul.f32 %v283, 0.5
  %v300 = vmul.f32 %v285, 0.5
  %v301 = vmul.f32 %v289, 0.5
  %v302 = vmul.f32 %v291, 0.5
  %v303 = vmul.f32 %v293, 0.5
  %v304 = vmul.f32 %v295, 0.5
  %v305 = vmul.f32 %v279, 0.044715
  %v306 = vmul.f32 %v281, 0.044715
  %v307 = vmul.f32 %v283, 0.044715
  %v308 = vmul.f32 %v285, 0.044715
  %v309 = vmul.f32 %v289, 0.044715
  %v310 = vmul.f32 %v291, 0.044715
  %v311 = vmul.f32 %v293, 0.044715
  %v312 = vmul.f32 %v295, 0.044715
  %v313 = vmul.f32 %v305, %v279
  %v314 = vmul.f32 %v306, %v281
  %v315 = vmul.f32 %v307, %v283
  %v316 = vmul.f32 %v308, %v285
  %v317 = vmul.f32 %v309, %v289
  %v318 = vmul.f32 %v310, %v291
  %v319 = vmul.f32 %v311, %v293
  %v320 = vmul.f32 %v312, %v295
  %v321 = vmul.f32 %v313, %v279
  %v322 = vmul.f32 %v314, %v281
  %v323 = vmul.f32 %v315, %v283
  %v324 = vmul.f32 %v316, %v285
  %v325 = vmul.f32 %v317, %v289
  %v326 = vmul.f32 %v318, %v291
  %v327 = vmul.f32 %v319, %v293
  %v328 = vmul.f32 %v320, %v295
  %v329 = vadd.f32 %v279, %v321
  %v330 = vadd.f32 %v281, %v322
  %v331 = vadd.f32 %v283, %v323
  %v332 = vadd.f32 %v285, %v324
  %v333 = vadd.f32 %v289, %v325
  %v334 = vadd.f32 %v291, %v326
  %v335 = vadd.f32 %v293, %v327
  %v336 = vadd.f32 %v295, %v328
  %v337 = vmul.f32 %v329, 0.7978846
  %v338 = vmul.f32 %v330, 0.7978846
  %v339 = vmul.f32 %v331, 0.7978846
  %v340 = vmul.f32 %v332, 0.7978846
  %v341 = vmul.f32 %v333, 0.7978846
  %v342 = vmul.f32 %v334, 0.7978846
  %v343 = vmul.f32 %v335, 0.7978846
  %v344 = vmul.f32 %v336, 0.7978846
  %v345 = vtanh.pop %v337
  %v346 = vtanh.pop %v338
  %v347 = vtanh.pop %v339
  %v348 = vtanh.pop %v340
  %v349 = vtanh.pop %v341
  %v350 = vtanh.pop %v342
  %v351 = vtanh.pop %v343
  %v352 = vtanh.pop %v344
  %v353 = vadd.f32 %v345, 1.0
  %v354 = vadd.f32 %v346, 1.0
  %v355 = vadd.f32 %v347, 1.0
  %v356 = vadd.f32 %v348, 1.0
  %v357 = vadd.f32 %v349, 1.0
  %v358 = vadd.f32 %v350, 1.0
  %v359 = vadd.f32 %v351, 1.0
  %v360 = vadd.f32 %v352, 1.0
  %v361 = vmul.f32 %v297, %v353
  %v362 = vmul.f32 %v298, %v354
  %v363 = vmul.f32 %v299, %v355
  %v364 = vmul.f32 %v300, %v356
  %v365 = vmul.f32 %v301, %v357
  %v366 = vmul.f32 %v302, %v358
  %v367 = vmul.f32 %v303, %v359
  %v368 = vmul.f32 %v304, %v360
  %v369 = vpack.c.bf16 %v363, %v361
  %v370 = vpack.c.bf16 %v364, %v362
  %v371 = vpack.c.bf16 %v367, %v365
  %v372 = vpack.c.bf16 %v368, %v366
  %v377 = vunpack.c.l.b16 %v369
  %v378 = vunpack.c.l.b16 %v370
  %v379 = vunpack.c.h.b16 %v369
  %v380 = vunpack.c.h.b16 %v370
  %v381 = vunpack.c.l.b16 %v371
  %v382 = vunpack.c.l.b16 %v372
  %v383 = vunpack.c.h.b16 %v371
  %v384 = vunpack.c.h.b16 %v372
  %v385 = vpack.c.b16 %v378, %v377
  %v386 = vpack.c.b16 %v380, %v379
  %v387 = vpack.c.b16 %v382, %v381
  %v388 = vpack.c.b16 %v384, %v383
  %393 = vst [vmem:[%s5] sm:$0xff] %v385
  %394 = vst [vmem:[%s5 + $0x8] sm:$0xff] %v386
  %395 = vst [vmem:[%s5 + $0x10] sm:$0xff] %v387
  %396 = vst [vmem:[%s5 + $0x18] sm:$0xff] %v388
  // Predicated region
  $region26: #{vpt_deep_forward.16} parent=0 // pred_check
    _
  $region27: #{vpt_deep_forward.16} parent=0 // pred_check_branch
    %398 = sbr.rel (0) target = $region29
  $region28: #{vpt_deep_forward.16} parent=0 // pred_region
    _
  $region29: #{vpt_deep_forward.16} parent=0 // pred_fallthru
    _
  // Predicated region
  $region30: #{vpt_deep_forward.16} parent=0 // pred_check
    _
  $region31: #{vpt_deep_forward.16} parent=0 // pred_check_branch
    %400 = sbr.rel (0) target = $region33
  $region32: #{vpt_deep_forward.16} parent=0 // pred_region
    _
  $region33: #{vpt_deep_forward.16} parent=0 // pred_fallthru
    _

// kernel: vpt_deep_forward.17
$region0: #{vpt_deep_forward.17}
  #allocation0 [shape = 'u32[]', space=smem, size = 0x4, offset = 0x4, fixed_abs, tag = 'smem constant byte address 0x4 - core index']
  #allocation1 [shape = 'u32[144,128]{1,0:T(1,128)}', space=vmem, size = 0x12000, scoped, tag = 'internal scratch']
  #allocation2 [shape = 'f32[32,128]{1,0:T(8,128)}', space=vmem, size = 0x4000, scoped, tag = 'scratch operand']
  %s0 = inlined_call_operand.vmem [shape: bf16[32,256], index: 0, kind: input, shape index: {}]
  %s1 = inlined_call_operand.vmem [shape: bf16[256,128], index: 1, kind: input, shape index: {}]
  %s2 = inlined_call_operand.vmem [shape: f32[1,128], index: 2, kind: input, shape index: {}]
  %s3 = inlined_call_operand.vmem [shape: bf16[32,128], index: 3, kind: input, shape index: {}]
  %s4 = inlined_call_operand.vmem [shape: bf16[32,128], index: 4, kind: output, shape index: {}]
  %s5 = sld [smem:[#allocation0]]
  $region34: #{vpt_deep_forward.17} parent=0
    _
  %s7 = ssub.s32 1, %s5
  %s8 = scalar_select 0, %s7, %s5
  // Predicated region
  $region2: #{vpt_deep_forward.17} parent=0 // pred_check
    _
  $region3: #{vpt_deep_forward.17} parent=0 // pred_check_branch
    %10 = sbr.rel (0) target = $region5
  $region4: #{vpt_deep_forward.17} parent=0 // pred_region
    _
  $region5: #{vpt_deep_forward.17} parent=0 // pred_fallthru
    _
  // Predicated region
  $region6: #{vpt_deep_forward.17} parent=0 // pred_check
    _
  $region7: #{vpt_deep_forward.17} parent=0 // pred_check_branch
    %12 = sbr.rel (0) target = $region9
  $region8: #{vpt_deep_forward.17} parent=0 // pred_region
    _
  $region9: #{vpt_deep_forward.17} parent=0 // pred_fallthru
    _
  // Predicated region
  $region10: #{vpt_deep_forward.17} parent=0 // pred_check
    _
  $region11: #{vpt_deep_forward.17} parent=0 // pred_check_branch
    %14 = sbr.rel (0) target = $region13
  $region12: #{vpt_deep_forward.17} parent=0 // pred_region
    _
  $region13: #{vpt_deep_forward.17} parent=0 // pred_fallthru
    _
  // Predicated region
  $region14: #{vpt_deep_forward.17} parent=0 // pred_check
    _
  $region15: #{vpt_deep_forward.17} parent=0 // pred_check_branch
    %16 = sbr.rel (0) target = $region17
  $region16: #{vpt_deep_forward.17} parent=0 // pred_region
    _
  $region17: #{vpt_deep_forward.17} parent=0 // pred_fallthru
    _
  %p18 = scmp.eq.s32.totalorder 0, 0
  // Predicated region
  $region18: #{vpt_deep_forward.17} parent=0 // pred_check
    %p19 = pneg %p18
  $region19: #{vpt_deep_forward.17} parent=0 // pred_check_branch
    %21 = sbr.rel (%p19) target = $region21
  $region20: #{vpt_deep_forward.17} parent=0 // pred_region
    %22 = vst [vmem:[#allocation2] sm:$0xff] 0.0
    %23 = vst [vmem:[#allocation2 + $0x8] sm:$0xff] 0.0
    %24 = vst [vmem:[#allocation2 + $0x10] sm:$0xff] 0.0
    %25 = vst [vmem:[#allocation2 + $0x18] sm:$0xff] 0.0
  $region21: #{vpt_deep_forward.17} parent=0 // pred_fallthru
    _
  %v26 = vld [vmem:[#allocation2] sm:$0xff]
  %v27 = vld [vmem:[#allocation2 + $0x8] sm:$0xff]
  %v28 = vld [vmem:[#allocation2 + $0x10] sm:$0xff]
  %v29 = vld [vmem:[#allocation2 + $0x18] sm:$0xff]
  %v30 = vld [vmem:[%s0] sm:$0xff]
  %v31 = vld [vmem:[%s0 + $0x8] sm:$0xff]
  %v32 = vld [vmem:[%s0 + $0x10] sm:$0xff]
  %v33 = vld [vmem:[%s0 + $0x18] sm:$0xff]
  %v34 = vld [vmem:[%s1] sm:$0xf]
  %v35 = vld [vmem:[%s1 + $0x4] sm:$0xf]
  %v36 = vld [vmem:[%s1 + $0x8] sm:$0xf]
  %v37 = vld [vmem:[%s1 + $0xc] sm:$0xf]
  %v38 = vld [vmem:[%s1 + $0x10] sm:$0xf]
  %v39 = vld [vmem:[%s1 + $0x14] sm:$0xf]
  %v40 = vld [vmem:[%s1 + $0x18] sm:$0xf]
  %v41 = vld [vmem:[%s1 + $0x1c] sm:$0xf]
  %v42 = vld [vmem:[%s1 + $0x20] sm:$0xf]
  %v43 = vld [vmem:[%s1 + $0x24] sm:$0xf]
  %v44 = vld [vmem:[%s1 + $0x28] sm:$0xf]
  %v45 = vld [vmem:[%s1 + $0x2c] sm:$0xf]
  %v46 = vld [vmem:[%s1 + $0x30] sm:$0xf]
  %v47 = vld [vmem:[%s1 + $0x34] sm:$0xf]
  %v48 = vld [vmem:[%s1 + $0x38] sm:$0xf]
  %v49 = vld [vmem:[%s1 + $0x3c] sm:$0xf]
  %v50 = vld [vmem:[%s1 + $0x40] sm:$0xf]
  %v51 = vld [vmem:[%s1 + $0x44] sm:$0xf]
  %v52 = vld [vmem:[%s1 + $0x48] sm:$0xf]
  %v53 = vld [vmem:[%s1 + $0x4c] sm:$0xf]
  %v54 = vld [vmem:[%s1 + $0x50] sm:$0xf]
  %v55 = vld [vmem:[%s1 + $0x54] sm:$0xf]
  %v56 = vld [vmem:[%s1 + $0x58] sm:$0xf]
  %v57 = vld [vmem:[%s1 + $0x5c] sm:$0xf]
  %v58 = vld [vmem:[%s1 + $0x60] sm:$0xf]
  %v59 = vld [vmem:[%s1 + $0x64] sm:$0xf]
  %v60 = vld [vmem:[%s1 + $0x68] sm:$0xf]
  %v61 = vld [vmem:[%s1 + $0x6c] sm:$0xf]
  %v62 = vld [vmem:[%s1 + $0x70] sm:$0xf]
  %v63 = vld [vmem:[%s1 + $0x74] sm:$0xf]
  %v64 = vld [vmem:[%s1 + $0x78] sm:$0xf]
  %v65 = vld [vmem:[%s1 + $0x7c] sm:$0xf]
  %v70 = vunpack.c.l.b16 %v30
  %v71 = vunpack.c.h.b16 %v30
  %v72 = vunpack.c.l.b16 %v31
  %v73 = vunpack.c.h.b16 %v31
  %v74 = vunpack.c.l.b16 %v32
  %v75 = vunpack.c.h.b16 %v32
  %v76 = vunpack.c.l.b16 %v33
  %v77 = vunpack.c.h.b16 %v33
  %v78 = vpack.c.b16 %v72, %v70
  %v79 = vpack.c.b16 %v73, %v71
  %v80 = vpack.c.b16 %v76, %v74
  %v81 = vpack.c.b16 %v77, %v75
  %v118 = vunpack.c.l.b16 %v34
  %v119 = vunpack.c.l.b16 %v35
  %v120 = vunpack.c.l.b16 %v36
  %v121 = vunpack.c.l.b16 %v37
  %v122 = vunpack.c.l.b16 %v38
  %v123 = vunpack.c.l.b16 %v39
  %v124 = vunpack.c.l.b16 %v40
  %v125 = vunpack.c.l.b16 %v41
  %v126 = vunpack.c.l.b16 %v42
  %v127 = vunpack.c.l.b16 %v43
  %v128 = vunpack.c.l.b16 %v44
  %v129 = vunpack.c.l.b16 %v45
  %v130 = vunpack.c.l.b16 %v46
  %v131 = vunpack.c.l.b16 %v47
  %v132 = vunpack.c.l.b16 %v48
  %v133 = vunpack.c.l.b16 %v49
  %v134 = vunpack.c.l.b16 %v50
  %v135 = vunpack.c.l.b16 %v51
  %v136 = vunpack.c.l.b16 %v52
  %v137 = vunpack.c.l.b16 %v53
  %v138 = vunpack.c.l.b16 %v54
  %v139 = vunpack.c.l.b16 %v55
  %v140 = vunpack.c.l.b16 %v56
  %v141 = vunpack.c.l.b16 %v57
  %v142 = vunpack.c.l.b16 %v58
  %v143 = vunpack.c.l.b16 %v59
  %v144 = vunpack.c.l.b16 %v60
  %v145 = vunpack.c.l.b16 %v61
  %v146 = vunpack.c.l.b16 %v62
  %v147 = vunpack.c.l.b16 %v63
  %v148 = vunpack.c.l.b16 %v64
  %v149 = vunpack.c.l.b16 %v65
  %v150 = vpack.c.b16 %v119, %v118
  %v151 = vpack.c.b16 %v121, %v120
  %v152 = vpack.c.b16 %v123, %v122
  %v153 = vpack.c.b16 %v125, %v124
  %v154 = vpack.c.b16 %v127, %v126
  %v155 = vpack.c.b16 %v129, %v128
  %v156 = vpack.c.b16 %v131, %v130
  %v157 = vpack.c.b16 %v133, %v132
  %v158 = vpack.c.b16 %v135, %v134
  %v159 = vpack.c.b16 %v137, %v136
  %v160 = vpack.c.b16 %v139, %v138
  %v161 = vpack.c.b16 %v141, %v140
  %v162 = vpack.c.b16 %v143, %v142
  %v163 = vpack.c.b16 %v145, %v144
  %v164 = vpack.c.b16 %v147, %v146
  %v165 = vpack.c.b16 %v149, %v148
  %182 = vmatprep.subr.bf16.mxu0 0
  %183 = vmatpush1.bf16.msra.mxu0 %v157
  %184 = vmatprep.subr.bf16.mxu0 0
  %185 = vmatpush1.bf16.msra.mxu0 %v156
  %186 = vmatprep.subr.bf16.mxu0 0
  %187 = vmatpush1.bf16.msra.mxu0 %v155
  %188 = vmatprep.subr.bf16.mxu0 0
  %189 = vmatpush1.bf16.msra.mxu0 %v154
  %190 = vmatprep.subr.bf16.mxu0 0
  %191 = vmatpush1.bf16.msra.mxu0 %v153
  %192 = vmatprep.subr.bf16.mxu0 0
  %193 = vmatpush1.bf16.msra.mxu0 %v152
  %194 = vmatprep.subr.bf16.mxu0 0
  %195 = vmatpush1.bf16.msra.mxu0 %v151
  %196 = vmatprep.subr.bf16.mxu0 0
  %197 = vmatpush1.bf16.msra.mxu0 %v150
  %198 = vmatprep.subr.bf16.mxu0 0
  %199 = vmatpush2.bf16.msra.mxu0 %v165
  %200 = vmatprep.subr.bf16.mxu0 0
  %201 = vmatpush2.bf16.msra.mxu0 %v164
  %202 = vmatprep.subr.bf16.mxu0 0
  %203 = vmatpush2.bf16.msra.mxu0 %v163
  %204 = vmatprep.subr.bf16.mxu0 0
  %205 = vmatpush2.bf16.msra.mxu0 %v162
  %206 = vmatprep.subr.bf16.mxu0 0
  %207 = vmatpush2.bf16.msra.mxu0 %v161
  %208 = vmatprep.subr.bf16.mxu0 0
  %209 = vmatpush2.bf16.msra.mxu0 %v160
  %210 = vmatprep.subr.bf16.mxu0 0
  %211 = vmatpush2.bf16.msra.mxu0 %v159
  %212 = vmatprep.subr.bf16.mxu0 0
  %213 = vmatpush2.bf16.msra.mxu0 %v158
  %214 = vmatprep.mubr.bf16.mxu0 %v79
  %215 = vmatmul.mubr.bf16.gmra.mxu0 %v78
  %v216 = vpop.f32.mrf.mxu0
  %v217 = vadd.f32 0.0, %v216
  %v218 = vpop.f32.mrf.mxu0
  %v219 = vpop.f32.mrf.mxu0
  %v220 = vadd.f32 0.0, %v219
  %v221 = vpop.f32.mrf.mxu0
  %222 = vmatprep.mubr.bf16.mxu0 %v81
  %223 = vmatmul.mubr.bf16.gmra.mxu0 %v80
  %v224 = vpop.f32.mrf.mxu0
  %v225 = vadd.f32 0.0, %v224
  %v226 = vpop.f32.mrf.mxu0
  %v227 = vpop.f32.mrf.mxu0
  %v228 = vadd.f32 0.0, %v227
  %v229 = vpop.f32.mrf.mxu0
  %230 = vdwg.mxu0
  %v231 = vadd.f32 %v26, %v217
  %v232 = vadd.f32 %v27, %v220
  %v233 = vadd.f32 %v28, %v225
  %v234 = vadd.f32 %v29, %v228
  %235 = vst [vmem:[#allocation2] sm:$0xff] %v231
  %236 = vst [vmem:[#allocation2 + $0x8] sm:$0xff] %v232
  %237 = vst [vmem:[#allocation2 + $0x10] sm:$0xff] %v233
  %238 = vst [vmem:[#allocation2 + $0x18] sm:$0xff] %v234
  // Predicated region
  $region22: #{vpt_deep_forward.17} parent=0 // pred_check
    %p239 = pneg %p18
  $region23: #{vpt_deep_forward.17} parent=0 // pred_check_branch
    %241 = sbr.rel (%p239) target = $region25
  $region24: #{vpt_deep_forward.17} parent=0 // pred_region
    %v242 = vld [vmem:[#allocation2] sm:$0xff]
    %v243 = vld [vmem:[#allocation2 + $0x8] sm:$0xff]
    %v244 = vld [vmem:[#allocation2 + $0x10] sm:$0xff]
    %v245 = vld [vmem:[#allocation2 + $0x18] sm:$0xff]
    %v246 = vld [vmem:[%s2] sm:$0x1]
    %v248 = vlaneseq
    %v249 = vshrl.u32 %v248, 7
    %v250 = vsub.s32 0, %v249
    %v251 = vrot.slane %v246, %v250
    %v253 = vadd.f32 %v242, %v251
    %v254 = vadd.f32 %v243, %v251
    %v255 = vadd.f32 %v244, %v251
    %v256 = vadd.f32 %v245, %v251
    %v257 = vld [vmem:[%s3] sm:$0xf]
    %v258 = vld [vmem:[%s3 + $0x4] sm:$0xf]
    %v259 = vld [vmem:[%s3 + $0x8] sm:$0xf]
    %v260 = vld [vmem:[%s3 + $0xc] sm:$0xf]
    %v261 = vunpack.c.l.bf16 %v257
    %v262 = vunpack.c.l.bf16 %v258
    %v263 = vunpack.c.l.bf16 %v259
    %v264 = vunpack.c.l.bf16 %v260
    %v265 = vadd.f32 %v253, %v261
    %v266 = vadd.f32 %v254, %v262
    %v267 = vadd.f32 %v255, %v263
    %v268 = vadd.f32 %v256, %v264
    %v269 = vpack.c.bf16 %v266, %v265
    %v270 = vpack.c.bf16 %v268, %v267
    %v273 = vunpack.c.l.b16 %v269
    %v274 = vunpack.c.h.b16 %v269
    %v275 = vunpack.c.l.b16 %v270
    %v276 = vunpack.c.h.b16 %v270
    %v277 = vpack.c.b16 %v273, %v273
    %v278 = vpack.c.b16 %v274, %v274
    %v279 = vpack.c.b16 %v275, %v275
    %v280 = vpack.c.b16 %v276, %v276
    %285 = vst [vmem:[%s4] sm:$0xf] %v277
    %286 = vst [vmem:[%s4 + $0x4] sm:$0xf] %v278
    %287 = vst [vmem:[%s4 + $0x8] sm:$0xf] %v279
    %288 = vst [vmem:[%s4 + $0xc] sm:$0xf] %v280
  $region25: #{vpt_deep_forward.17} parent=0 // pred_fallthru
    _
  // Predicated region
  $region26: #{vpt_deep_forward.17} parent=0 // pred_check
    _
  $region27: #{vpt_deep_forward.17} parent=0 // pred_check_branch
    %290 = sbr.rel (0) target = $region29
  $region28: #{vpt_deep_forward.17} parent=0 // pred_region
    _
  $region29: #{vpt_deep_forward.17} parent=0 // pred_fallthru
    _
  // Predicated region
  $region30: #{vpt_deep_forward.17} parent=0 // pred_check
    _
  $region31: #{vpt_deep_forward.17} parent=0 // pred_check_branch
    %292 = sbr.rel (0) target = $region33
  $region32: #{vpt_deep_forward.17} parent=0 // pred_region
    _
  $region33: #{vpt_deep_forward.17} parent=0 // pred_fallthru
    _

// kernel: vpt_deep_forward.23
$region0: #{vpt_deep_forward.23}
  #allocation0 [shape = 'u32[]', space=smem, size = 0x4, offset = 0x4, fixed_abs, tag = 'smem constant byte address 0x4 - core index']
  #allocation1 [shape = 'u32[144,128]{1,0:T(1,128)}', space=vmem, size = 0x12000, scoped, tag = 'internal scratch']
  #allocation2 [shape = 'bf16[2,128]{1,0:T(2,128)(2,1)}', space=vmem, size = 0x200, scoped, tag = 'scratch operand']
  %s0 = inlined_call_operand.vmem [shape: bf16[2,128], index: 0, kind: input, shape index: {}]
  %s1 = inlined_call_operand.vmem [shape: f32[1,128], index: 1, kind: input, shape index: {}]
  %s2 = inlined_call_operand.vmem [shape: f32[1,128], index: 2, kind: input, shape index: {}]
  %s3 = inlined_call_operand.vmem [shape: bf16[128,10], index: 3, kind: input, shape index: {}]
  %s4 = inlined_call_operand.vmem [shape: f32[1,10], index: 4, kind: input, shape index: {}]
  %s5 = inlined_call_operand.hbm [shape: f32[2,10], index: 5, kind: output, shape index: {}]
  %s6 = sld [smem:[#allocation0]]
  $region34: #{vpt_deep_forward.23} parent=0
    _
  %s8 = ssub.s32 1, %s6
  %s9 = scalar_select 0, %s8, %s6
  $region1: #{vpt_deep_forward.23} parent=0
    #allocation3 [shape = 'u8[1024]{0}', space=vmem, size = 0x400, scoped, tag = 'output window, operand 0, single buffered']
    #allocation4 [shape = 's32[1]{0}', space=sflag, size = 0x4, scoped, tag = 'scoped memory for vpt_deep_forward.23']
    %10 = vsyncpa [#allocation4], 0
    // Predicated region
    $region2: #{vpt_deep_forward.23} parent=1 // pred_check
      _
    $region3: #{vpt_deep_forward.23} parent=1 // pred_check_branch
      %12 = sbr.rel (0) target = $region5
    $region4: #{vpt_deep_forward.23} parent=1 // pred_region
      _
    $region5: #{vpt_deep_forward.23} parent=1 // pred_fallthru
      _
    // Predicated region
    $region6: #{vpt_deep_forward.23} parent=1 // pred_check
      _
    $region7: #{vpt_deep_forward.23} parent=1 // pred_check_branch
      %14 = sbr.rel (0) target = $region9
    $region8: #{vpt_deep_forward.23} parent=1 // pred_region
      _
    $region9: #{vpt_deep_forward.23} parent=1 // pred_fallthru
      _
    // Predicated region
    $region10: #{vpt_deep_forward.23} parent=1 // pred_check
      _
    $region11: #{vpt_deep_forward.23} parent=1 // pred_check_branch
      %16 = sbr.rel (0) target = $region13
    $region12: #{vpt_deep_forward.23} parent=1 // pred_region
      _
    $region13: #{vpt_deep_forward.23} parent=1 // pred_fallthru
      _
    // Predicated region
    $region14: #{vpt_deep_forward.23} parent=1 // pred_check
      _
    $region15: #{vpt_deep_forward.23} parent=1 // pred_check_branch
      %18 = sbr.rel (0) target = $region17
    $region16: #{vpt_deep_forward.23} parent=1 // pred_region
      _
    $region17: #{vpt_deep_forward.23} parent=1 // pred_fallthru
      _
    // Predicated region
    $region18: #{vpt_deep_forward.23} parent=1 // pred_check
      _
    $region19: #{vpt_deep_forward.23} parent=1 // pred_check_branch
      %20 = sbr.rel (0) target = $region21
    $region20: #{vpt_deep_forward.23} parent=1 // pred_region
      _
    $region21: #{vpt_deep_forward.23} parent=1 // pred_fallthru
      _
    %p22 = scmp.eq.s32.totalorder 0, 0
    // Predicated region
    $region22: #{vpt_deep_forward.23} parent=1 // pred_check
      %p23 = pneg %p22
    $region23: #{vpt_deep_forward.23} parent=1 // pred_check_branch
      %25 = sbr.rel (%p23) target = $region25
    $region24: #{vpt_deep_forward.23} parent=1 // pred_region
      %v26 = vld [vmem:[%s0] sm:$0x1]
      %v27 = vunpack.c.l.bf16 %v26
      %vm28 = vcmask 1041408
      %v29 = vsel %vm28, %v27, 0.0
      %30 = vadd.xlane.f32.xlu0 %v29
      %v31 = vpop.xlane.xlu0 %30
      %v32 = vrcp.pop 128.0
      %v33 = vmul.f32 %v31, %v32
      %v34 = vsub.f32 %v27, %v33
      %v35 = vmul.f32 %v34, %v34
      %v36 = vsel %vm28, %v35, 0.0
      %37 = vadd.xlane.f32.xlu0 %v36
      %v38 = vpop.xlane.xlu0 %37
      %v39 = vmul.f32 %v38, %v32
      %v40 = vadd.f32 %v39, 1e-06
      %v41 = vrsqrt.pop %v40
      %v42 = vmul.f32 %v34, %v41
      %v43 = vld [vmem:[%s1] sm:$0x1]
      %v45 = vlaneseq
      %v46 = vshrl.u32 %v45, 7
      %v47 = vsub.s32 0, %v46
      %v48 = vrot.slane %v43, %v47
      %v50 = vmul.f32 %v42, %v48
      %v51 = vld [vmem:[%s2] sm:$0x1]
      %v53 = vlaneseq
      %v54 = vshrl.u32 %v53, 7
      %v55 = vsub.s32 0, %v54
      %v56 = vrot.slane %v51, %v55
      %v58 = vadd.f32 %v50, %v56
      %v59 = vpack.c.bf16 %v58, %v58
      %60 = vst [vmem:[#allocation2] sm:$0x1] %v59
    $region25: #{vpt_deep_forward.23} parent=1 // pred_fallthru
      _
    %v61 = vld [vmem:[#allocation2] sm:$0x1]
    %v62 = vld [vmem:[%s3] sm:$0xf]
    %v63 = vld [vmem:[%s3 + $0x4] sm:$0xf]
    %v64 = vld [vmem:[%s3 + $0x8] sm:$0xf]
    %v65 = vld [vmem:[%s3 + $0xc] sm:$0xf]
    %v66 = vld [vmem:[%s3 + $0x10] sm:$0xf]
    %v67 = vld [vmem:[%s3 + $0x14] sm:$0xf]
    %v68 = vld [vmem:[%s3 + $0x18] sm:$0xf]
    %v69 = vld [vmem:[%s3 + $0x1c] sm:$0xf]
    %v70 = vld [vmem:[%s3 + $0x20] sm:$0xf]
    %v71 = vld [vmem:[%s3 + $0x24] sm:$0xf]
    %v72 = vld [vmem:[%s3 + $0x28] sm:$0xf]
    %v73 = vld [vmem:[%s3 + $0x2c] sm:$0xf]
    %v74 = vld [vmem:[%s3 + $0x30] sm:$0xf]
    %v75 = vld [vmem:[%s3 + $0x34] sm:$0xf]
    %v76 = vld [vmem:[%s3 + $0x38] sm:$0xf]
    %v77 = vld [vmem:[%s3 + $0x3c] sm:$0xf]
    %v78 = vld [vmem:[%s4] sm:$0x1]
    %v80 = vlaneseq
    %v81 = vshrl.u32 %v80, 7
    %v82 = vsub.s32 0, %v81
    %v83 = vrot.slane %v78, %v82
    %v101 = vunpack.c.l.b16 %v62
    %v102 = vunpack.c.l.b16 %v63
    %v103 = vunpack.c.l.b16 %v64
    %v104 = vunpack.c.l.b16 %v65
    %v105 = vunpack.c.l.b16 %v66
    %v106 = vunpack.c.l.b16 %v67
    %v107 = vunpack.c.l.b16 %v68
    %v108 = vunpack.c.l.b16 %v69
    %v109 = vunpack.c.l.b16 %v70
    %v110 = vunpack.c.l.b16 %v71
    %v111 = vunpack.c.l.b16 %v72
    %v112 = vunpack.c.l.b16 %v73
    %v113 = vunpack.c.l.b16 %v74
    %v114 = vunpack.c.l.b16 %v75
    %v115 = vunpack.c.l.b16 %v76
    %v116 = vunpack.c.l.b16 %v77
    %v117 = vpack.c.b16 %v102, %v101
    %v118 = vpack.c.b16 %v104, %v103
    %v119 = vpack.c.b16 %v106, %v105
    %v120 = vpack.c.b16 %v108, %v107
    %v121 = vpack.c.b16 %v110, %v109
    %v122 = vpack.c.b16 %v112, %v111
    %v123 = vpack.c.b16 %v114, %v113
    %v124 = vpack.c.b16 %v116, %v115
    %133 = vmatprep.subr.bf16.mxu0 0
    %134 = vmatpush1.bf16.msra.mxu0 %v124
    %135 = vmatprep.subr.bf16.mxu0 0
    %136 = vmatpush1.bf16.msra.mxu0 %v123
    %137 = vmatprep.subr.bf16.mxu0 0
    %138 = vmatpush1.bf16.msra.mxu0 %v122
    %139 = vmatprep.subr.bf16.mxu0 0
    %140 = vmatpush1.bf16.msra.mxu0 %v121
    %141 = vmatprep.subr.bf16.mxu0 0
    %142 = vmatpush1.bf16.msra.mxu0 %v120
    %143 = vmatprep.subr.bf16.mxu0 0
    %144 = vmatpush1.bf16.msra.mxu0 %v119
    %145 = vmatprep.subr.bf16.mxu0 0
    %146 = vmatpush1.bf16.msra.mxu0 %v118
    %147 = vmatprep.subr.bf16.mxu0 0
    %148 = vmatpush1.bf16.msra.mxu0 %v117
    %149 = vmatprep.subr.bf16.mxu0 0
    %150 = vmatpush2.bf16.msra.mxu0 0
    %151 = vmatprep.subr.bf16.mxu0 0
    %152 = vmatpush2.bf16.msra.mxu0 0
    %153 = vmatprep.subr.bf16.mxu0 0
    %154 = vmatpush2.bf16.msra.mxu0 0
    %155 = vmatprep.subr.bf16.mxu0 0
    %156 = vmatpush2.bf16.msra.mxu0 0
    %157 = vmatprep.subr.bf16.mxu0 0
    %158 = vmatpush2.bf16.msra.mxu0 0
    %159 = vmatprep.subr.bf16.mxu0 0
    %160 = vmatpush2.bf16.msra.mxu0 0
    %161 = vmatprep.subr.bf16.mxu0 0
    %162 = vmatpush2.bf16.msra.mxu0 0
    %163 = vmatprep.subr.bf16.mxu0 0
    %164 = vmatpush2.bf16.msra.mxu0 0
    %165 = vmatprep.mubr.bf16.mxu0 0
    %166 = vmatmul.mubr.bf16.gmra.mxu0 %v61
    %v167 = vpop.f32.mrf.mxu0
    %v168 = vadd.f32 %v83, %v167
    %v169 = vpop.f32.mrf.mxu0
    %v170 = vpop.f32.mrf.mxu0
    %v171 = vpop.f32.mrf.mxu0
    %172 = vdwg.mxu0
    %vm173 = vcmask 74752
    %174 = vst.msk [vmem:[#allocation3] sm:$0x3] %vm173, %v168
    // Predicated region
    $region26: #{vpt_deep_forward.23} parent=1 // pred_check
      _
    $region27: #{vpt_deep_forward.23} parent=1 // pred_check_branch
      %176 = sbr.rel (0) target = $region29
    $region28: #{vpt_deep_forward.23} parent=1 // pred_region
      %s178 = ssub.s32 32, 32
      %179 = vsyncadd [#allocation4], %s178
      %s181 = sshll.u32 [#allocation3], 4
      %s182 = int_to_ptr.vmem [resolvable:$true] %s181
      %184 = dma.vmem_to_hbm [thread:$0]  %s182, 32, %s5, [#allocation4]
    $region29: #{vpt_deep_forward.23} parent=1 // pred_fallthru
      _
    // Predicated region
    $region30: #{vpt_deep_forward.23} parent=1 // pred_check
      _
    $region31: #{vpt_deep_forward.23} parent=1 // pred_check_branch
      %186 = sbr.rel (0) target = $region33
    $region32: #{vpt_deep_forward.23} parent=1 // pred_region
      %187 = dma.done [#allocation4], 32
    $region33: #{vpt_deep_forward.23} parent=1 // pred_fallthru
      _
    %188 = vsyncpa [#allocation4], 1

</llo_original>
